<compile_context>
chip_gen: v5e
topology: v5e:2x2
jax: 0.10.0
libtpu: 0.0.40
codegen_flags: <defaults>
</compile_context>

<pallas_src>
import jax
import jax.numpy as jnp
from jax.experimental import pallas as pl
from jax.experimental.pallas import tpu as pltpu  # noqa: F401  (TPU backend)

# ---- module hyper-parameters (small, synthetic) -----------------------------
N_MELS = 16
HIDDEN_SIZE = 32
NUM_LAYERS = 2
NUM_EMOTIONAL_FEATURES = 8
DROPOUT = 0.1          # identity at inference
BATCH = 2
SEQ = 8

_NUM_LSTM_LAYERS_TOTAL = 2 * NUM_LAYERS   # lstm (2 layers) + lstm2 (2 layers)


# =============================================================================
# Fused Pallas kernel: 4 LSTM layers + emotional_fc + final_fc, one invocation.
# Argument order: x, emo, [wih_t, whh_t, bias] * 4, we_t, be, w1_t, b1, w2_t, b2,
#                 out_ref
# =============================================================================
def _fused_kernel(x_ref, emo_ref, *refs):
    layer_refs = refs[:3 * _NUM_LSTM_LAYERS_TOTAL]
    we_ref, be_ref, w1_ref, b1_ref, w2_ref, b2_ref = refs[
        3 * _NUM_LSTM_LAYERS_TOTAL: 3 * _NUM_LSTM_LAYERS_TOTAL + 6]
    out_ref = refs[-1]

    H = HIDDEN_SIZE
    x = x_ref[...]                          # (T, B, D) time-major, VMEM-resident
    T, B, _ = x.shape

    def run_layer(x_seq, wih_t, whh_t, bias):
        """x_seq: (T, B, Din) -> (T, B, H), plus last hidden state."""
        d_in = x_seq.shape[-1]
        # Hoist input-to-hidden gates out of the recurrence: one matmul for all T.
        gx = jnp.dot(x_seq.reshape(T * B, d_in), wih_t,
                     preferred_element_type=jnp.float32) + bias     # (T*B, 4H)
        gx = gx.reshape(T, B, 4 * H)

        h = jnp.zeros((B, H), jnp.float32)
        c = jnp.zeros((B, H), jnp.float32)
        hs = []
        for t in range(T):                                          # fully unrolled
            gates = gx[t] + jnp.dot(h, whh_t,
                                    preferred_element_type=jnp.float32)  # (B, 4H)
            s = jax.nn.sigmoid(gates)            # vreg-wide sigmoid (i, f, ., o)
            g = jnp.tanh(gates[:, 2 * H:3 * H])  # only g-range needs tanh
            c = s[:, H:2 * H] * c + s[:, 0:H] * g
            h = s[:, 3 * H:4 * H] * jnp.tanh(c)
            hs.append(h)
        return jnp.stack(hs, axis=0), h

    seq = x
    h_last = None
    for l in range(_NUM_LSTM_LAYERS_TOTAL):
        wih_t = layer_refs[3 * l][...]
        whh_t = layer_refs[3 * l + 1][...]
        bias = layer_refs[3 * l + 2][...]
        seq, h_last = run_layer(seq, wih_t, whh_t, bias)
        # dropout between layers: identity at eval

    audio = h_last                                                  # (B, H)
    emo_h = jnp.maximum(
        jnp.dot(emo_ref[...], we_ref[...], preferred_element_type=jnp.float32)
        + be_ref[...], 0.0)                                         # (B, H)
    combined = jnp.concatenate([audio, emo_h], axis=-1)             # (B, 2H)
    h1 = jnp.maximum(
        jnp.dot(combined, w1_ref[...], preferred_element_type=jnp.float32)
        + b1_ref[...], 0.0)                                         # (B, H)
    out_ref[...] = (jnp.dot(h1, w2_ref[...], preferred_element_type=jnp.float32)
                    + b2_ref[...])                                  # (B, NEF)


# =============================================================================
# Wrapper: whole problem fits in VMEM -> no grid, whole-array blocks.
# =============================================================================
def emotion_predictor_forward(kernel_params, mel_data, emotional_features):
    # mel_data: (B, T, N_MELS) batch-first -> time-major for the kernel
    x = jnp.transpose(mel_data, (1, 0, 2)).astype(jnp.float32)      # (T, B, D)
    emo = emotional_features.astype(jnp.float32)                    # (B, NEF)
    B = mel_data.shape[0]
    NEF = kernel_params["head"][4].shape[1]                         # w2_t: (H, NEF)

    inputs = [x, emo] + list(kernel_params["lstm"]) + list(kernel_params["head"])
    return pl.pallas_call(
        _fused_kernel,
        out_shape=jax.ShapeDtypeStruct((B, NEF), jnp.float32),
    )(*inputs)


# =============================================================================
# Deterministic parameter init (PyTorch nn.LSTM / nn.Linear layouts)
# =============================================================================
def init_params(key):
    H, D, NEF, L = HIDDEN_SIZE, N_MELS, NUM_EMOTIONAL_FEATURES, NUM_LAYERS

    def lstm_stack(key, in_dim):
        layers = []
        for l in range(L):
            d = in_dim if l == 0 else H
            key, k1, k2, k3, k4 = jax.random.split(key, 5)
            layers.append((
                jax.random.normal(k1, (4 * H, d), jnp.float32) * 0.1,   # w_ih
                jax.random.normal(k2, (4 * H, H), jnp.float32) * 0.1,   # w_hh
                jax.random.normal(k3, (4 * H,), jnp.float32) * 0.1,     # b_ih
                jax.random.normal(k4, (4 * H,), jnp.float32) * 0.1,     # b_hh
            ))
        return key, layers

    key, lstm1 = lstm_stack(key, D)
    key, lstm2 = lstm_stack(key, H)
    key, ke, kbe, k1, kb1, k2, kb2 = jax.random.split(key, 7)
    head = dict(
        we=jax.random.normal(ke, (H, NEF), jnp.float32) * 0.1,          # emotional_fc
        be=jax.random.normal(kbe, (H,), jnp.float32) * 0.1,
        w1=jax.random.normal(k1, (H, 2 * H), jnp.float32) * 0.1,        # final_fc[0]
        b1=jax.random.normal(kb1, (H,), jnp.float32) * 0.1,
        w2=jax.random.normal(k2, (NEF, H), jnp.float32) * 0.1,          # final_fc[3]
        b2=jax.random.normal(kb2, (NEF,), jnp.float32) * 0.1,
    )
    return dict(lstm1=lstm1, lstm2=lstm2, head=head)


def prepare_params(params):
    """One-time conversion to the kernel layout: transposed weights, fused biases."""
    lstm_flat = []
    for (w_ih, w_hh, b_ih, b_hh) in params["lstm1"] + params["lstm2"]:
        lstm_flat += [w_ih.T,                           # (Din, 4H)
                      w_hh.T,                           # (H, 4H)
                      (b_ih + b_hh).reshape(1, -1)]     # (1, 4H)
    p = params["head"]
    head = [p["we"].T, p["be"].reshape(1, -1),
            p["w1"].T, p["b1"].reshape(1, -1),
            p["w2"].T, p["b2"].reshape(1, -1)]
    return dict(lstm=lstm_flat, head=head)


# =============================================================================
# Pure-JAX reference (for correctness check)
# =============================================================================
def _ref_lstm_layer(x_tbd, w_ih, w_hh, b_ih, b_hh):
    H = w_hh.shape[1]
    B = x_tbd.shape[1]

    def step(carry, x_t):
        h, c = carry
        gates = x_t @ w_ih.T + b_ih + h @ w_hh.T + b_hh
        i = jax.nn.sigmoid(gates[:, 0 * H:1 * H])
        f = jax.nn.sigmoid(gates[:, 1 * H:2 * H])
        g = jnp.tanh(gates[:, 2 * H:3 * H])
        o = jax.nn.sigmoid(gates[:, 3 * H:4 * H])
        c = f * c + i * g
        h = o * jnp.tanh(c)
        return (h, c), h

    init = (jnp.zeros((B, H), jnp.float32), jnp.zeros((B, H), jnp.float32))
    _, ys = jax.lax.scan(step, init, x_tbd)
    return ys


def _ref_forward(params, mel_data, emo):
    x = jnp.transpose(mel_data, (1, 0, 2)).astype(jnp.float32)
    for layer in params["lstm1"]:
        x = _ref_lstm_layer(x, *layer)
    for layer in params["lstm2"]:
        x = _ref_lstm_layer(x, *layer)
    audio = x[-1]
    p = params["head"]
    emo_h = jax.nn.relu(emo @ p["we"].T + p["be"])
    comb = jnp.concatenate([audio, emo_h], axis=1)
    h1 = jax.nn.relu(comb @ p["w1"].T + p["b1"])
    return h1 @ p["w2"].T + p["b2"]


# =============================================================================
if __name__ == "__main__":
    key = jax.random.PRNGKey(0)
    k_mel, k_emo = jax.random.split(key)
    mel_data = jax.random.normal(k_mel, (BATCH, SEQ, N_MELS), jnp.float32)
    emotional_features = jax.random.normal(
        k_emo, (BATCH, NUM_EMOTIONAL_FEATURES), jnp.float32)

    params = init_params(jax.random.PRNGKey(42))
    kernel_params = prepare_params(params)          # one-time layout conversion

    fwd = jax.jit(emotion_predictor_forward)
    out = jax.block_until_ready(fwd(kernel_params, mel_data, emotional_features))

    ref = _ref_forward(params, mel_data, emotional_features)
    assert out.shape == (BATCH, NUM_EMOTIONAL_FEATURES)
    assert jnp.allclose(out, ref, atol=1e-4, rtol=1e-4), "mismatch vs reference"

    print("KERNEL_OK")
</pallas_src>

<mosaic_0001>
module attributes {stable_mosaic.version = 11 : i64} {
  func.func @_fused_kernel(%arg0: memref<8x2x16xf32, #tpu.memory_space<vmem>>, %arg1: memref<2x8xf32, #tpu.memory_space<vmem>>, %arg2: memref<16x128xf32, #tpu.memory_space<vmem>>, %arg3: memref<32x128xf32, #tpu.memory_space<vmem>>, %arg4: memref<1x128xf32, #tpu.memory_space<vmem>>, %arg5: memref<32x128xf32, #tpu.memory_space<vmem>>, %arg6: memref<32x128xf32, #tpu.memory_space<vmem>>, %arg7: memref<1x128xf32, #tpu.memory_space<vmem>>, %arg8: memref<32x128xf32, #tpu.memory_space<vmem>>, %arg9: memref<32x128xf32, #tpu.memory_space<vmem>>, %arg10: memref<1x128xf32, #tpu.memory_space<vmem>>, %arg11: memref<32x128xf32, #tpu.memory_space<vmem>>, %arg12: memref<32x128xf32, #tpu.memory_space<vmem>>, %arg13: memref<1x128xf32, #tpu.memory_space<vmem>>, %arg14: memref<8x32xf32, #tpu.memory_space<vmem>>, %arg15: memref<1x32xf32, #tpu.memory_space<vmem>>, %arg16: memref<64x32xf32, #tpu.memory_space<vmem>>, %arg17: memref<1x32xf32, #tpu.memory_space<vmem>>, %arg18: memref<32x8xf32, #tpu.memory_space<vmem>>, %arg19: memref<1x8xf32, #tpu.memory_space<vmem>>, %arg20: memref<2x8xf32, #tpu.memory_space<vmem>>) attributes {dimension_semantics = [], scalar_prefetch = 0 : i64, scratch_operands = 0 : i64, tpu.core_type = #tpu.core_type<tc>} {
    %c0 = arith.constant 0 : index
    %c0_0 = arith.constant 0 : index
    %c0_1 = arith.constant 0 : index
    %0 = vector.load %arg0[%c0, %c0_0, %c0_1] : memref<8x2x16xf32, #tpu.memory_space<vmem>>, vector<8x2x16xf32>
    %c0_2 = arith.constant 0 : index
    %c0_3 = arith.constant 0 : index
    %1 = vector.load %arg2[%c0_2, %c0_3] : memref<16x128xf32, #tpu.memory_space<vmem>>, vector<16x128xf32>
    %c0_4 = arith.constant 0 : index
    %c0_5 = arith.constant 0 : index
    %2 = vector.load %arg3[%c0_4, %c0_5] : memref<32x128xf32, #tpu.memory_space<vmem>>, vector<32x128xf32>
    %c0_6 = arith.constant 0 : index
    %c0_7 = arith.constant 0 : index
    %3 = vector.load %arg4[%c0_6, %c0_7] : memref<1x128xf32, #tpu.memory_space<vmem>>, vector<1x128xf32>
    %4 = vector.shape_cast %0 : vector<8x2x16xf32> to vector<16x16xf32>
    %cst = arith.constant dense<0.000000e+00> : vector<16x128xf32>
    %5 = tpu.matmul %4, %1, %cst {dimension_numbers = #tpu.dot_dimension_numbers<[1], [0], [0], [1], [0, 0, 1, 1], [], []>} : vector<16x16xf32>, vector<16x128xf32>, vector<16x128xf32> -> vector<16x128xf32>
    %6 = vector.broadcast %3 : vector<1x128xf32> to vector<16x128xf32>
    %7 = arith.addf %5, %6 : vector<16x128xf32>
    %8 = vector.shape_cast %7 : vector<16x128xf32> to vector<8x2x128xf32>
    %cst_8 = arith.constant 0.000000e+00 : f32
    %9 = vector.broadcast %cst_8 : f32 to vector<2x32xf32>
    %cst_9 = arith.constant 0.000000e+00 : f32
    %10 = vector.broadcast %cst_9 : f32 to vector<2x32xf32>
    %11 = vector.extract_strided_slice %8 {offsets = [0, 0, 0], sizes = [1, 2, 128], strides = [1, 1, 1]} : vector<8x2x128xf32> to vector<1x2x128xf32>
    %12 = vector.shape_cast %11 : vector<1x2x128xf32> to vector<2x128xf32>
    %cst_10 = arith.constant dense<0.000000e+00> : vector<2x128xf32>
    %13 = tpu.matmul %9, %2, %cst_10 {dimension_numbers = #tpu.dot_dimension_numbers<[1], [0], [0], [1], [0, 0, 1, 1], [], []>} : vector<2x32xf32>, vector<32x128xf32>, vector<2x128xf32> -> vector<2x128xf32>
    %14 = arith.addf %12, %13 : vector<2x128xf32>
    %15 = arith.negf %14 : vector<2x128xf32>
    %16 = math.exp %15 : vector<2x128xf32>
    %cst_11 = arith.constant 1.000000e+00 : f32
    %17 = vector.broadcast %cst_11 : f32 to vector<2x128xf32>
    %18 = arith.addf %17, %16 : vector<2x128xf32>
    %19 = arith.divf %17, %18 : vector<2x128xf32>
    %20 = vector.extract_strided_slice %14 {offsets = [0, 64], sizes = [2, 32], strides = [1, 1]} : vector<2x128xf32> to vector<2x32xf32>
    %21 = math.tanh %20 : vector<2x32xf32>
    %22 = vector.extract_strided_slice %19 {offsets = [0, 32], sizes = [2, 32], strides = [1, 1]} : vector<2x128xf32> to vector<2x32xf32>
    %23 = arith.mulf %22, %10 : vector<2x32xf32>
    %24 = vector.extract_strided_slice %19 {offsets = [0, 0], sizes = [2, 32], strides = [1, 1]} : vector<2x128xf32> to vector<2x32xf32>
    %25 = arith.mulf %24, %21 : vector<2x32xf32>
    %26 = arith.addf %23, %25 : vector<2x32xf32>
    %27 = vector.extract_strided_slice %19 {offsets = [0, 96], sizes = [2, 32], strides = [1, 1]} : vector<2x128xf32> to vector<2x32xf32>
    %28 = math.tanh %26 : vector<2x32xf32>
    %29 = arith.mulf %27, %28 : vector<2x32xf32>
    %30 = vector.extract_strided_slice %8 {offsets = [1, 0, 0], sizes = [1, 2, 128], strides = [1, 1, 1]} : vector<8x2x128xf32> to vector<1x2x128xf32>
    %31 = vector.shape_cast %30 : vector<1x2x128xf32> to vector<2x128xf32>
    %cst_12 = arith.constant dense<0.000000e+00> : vector<2x128xf32>
    %32 = tpu.matmul %29, %2, %cst_12 {dimension_numbers = #tpu.dot_dimension_numbers<[1], [0], [0], [1], [0, 0, 1, 1], [], []>} : vector<2x32xf32>, vector<32x128xf32>, vector<2x128xf32> -> vector<2x128xf32>
    %33 = arith.addf %31, %32 : vector<2x128xf32>
    %34 = arith.negf %33 : vector<2x128xf32>
    %35 = math.exp %34 : vector<2x128xf32>
    %cst_13 = arith.constant 1.000000e+00 : f32
    %36 = vector.broadcast %cst_13 : f32 to vector<2x128xf32>
    %37 = arith.addf %36, %35 : vector<2x128xf32>
    %38 = arith.divf %36, %37 : vector<2x128xf32>
    %39 = vector.extract_strided_slice %33 {offsets = [0, 64], sizes = [2, 32], strides = [1, 1]} : vector<2x128xf32> to vector<2x32xf32>
    %40 = math.tanh %39 : vector<2x32xf32>
    %41 = vector.extract_strided_slice %38 {offsets = [0, 32], sizes = [2, 32], strides = [1, 1]} : vector<2x128xf32> to vector<2x32xf32>
    %42 = arith.mulf %41, %26 : vector<2x32xf32>
    %43 = vector.extract_strided_slice %38 {offsets = [0, 0], sizes = [2, 32], strides = [1, 1]} : vector<2x128xf32> to vector<2x32xf32>
    %44 = arith.mulf %43, %40 : vector<2x32xf32>
    %45 = arith.addf %42, %44 : vector<2x32xf32>
    %46 = vector.extract_strided_slice %38 {offsets = [0, 96], sizes = [2, 32], strides = [1, 1]} : vector<2x128xf32> to vector<2x32xf32>
    %47 = math.tanh %45 : vector<2x32xf32>
    %48 = arith.mulf %46, %47 : vector<2x32xf32>
    %49 = vector.extract_strided_slice %8 {offsets = [2, 0, 0], sizes = [1, 2, 128], strides = [1, 1, 1]} : vector<8x2x128xf32> to vector<1x2x128xf32>
    %50 = vector.shape_cast %49 : vector<1x2x128xf32> to vector<2x128xf32>
    %cst_14 = arith.constant dense<0.000000e+00> : vector<2x128xf32>
    %51 = tpu.matmul %48, %2, %cst_14 {dimension_numbers = #tpu.dot_dimension_numbers<[1], [0], [0], [1], [0, 0, 1, 1], [], []>} : vector<2x32xf32>, vector<32x128xf32>, vector<2x128xf32> -> vector<2x128xf32>
    %52 = arith.addf %50, %51 : vector<2x128xf32>
    %53 = arith.negf %52 : vector<2x128xf32>
    %54 = math.exp %53 : vector<2x128xf32>
    %cst_15 = arith.constant 1.000000e+00 : f32
    %55 = vector.broadcast %cst_15 : f32 to vector<2x128xf32>
    %56 = arith.addf %55, %54 : vector<2x128xf32>
    %57 = arith.divf %55, %56 : vector<2x128xf32>
    %58 = vector.extract_strided_slice %52 {offsets = [0, 64], sizes = [2, 32], strides = [1, 1]} : vector<2x128xf32> to vector<2x32xf32>
    %59 = math.tanh %58 : vector<2x32xf32>
    %60 = vector.extract_strided_slice %57 {offsets = [0, 32], sizes = [2, 32], strides = [1, 1]} : vector<2x128xf32> to vector<2x32xf32>
    %61 = arith.mulf %60, %45 : vector<2x32xf32>
    %62 = vector.extract_strided_slice %57 {offsets = [0, 0], sizes = [2, 32], strides = [1, 1]} : vector<2x128xf32> to vector<2x32xf32>
    %63 = arith.mulf %62, %59 : vector<2x32xf32>
    %64 = arith.addf %61, %63 : vector<2x32xf32>
    %65 = vector.extract_strided_slice %57 {offsets = [0, 96], sizes = [2, 32], strides = [1, 1]} : vector<2x128xf32> to vector<2x32xf32>
    %66 = math.tanh %64 : vector<2x32xf32>
    %67 = arith.mulf %65, %66 : vector<2x32xf32>
    %68 = vector.extract_strided_slice %8 {offsets = [3, 0, 0], sizes = [1, 2, 128], strides = [1, 1, 1]} : vector<8x2x128xf32> to vector<1x2x128xf32>
    %69 = vector.shape_cast %68 : vector<1x2x128xf32> to vector<2x128xf32>
    %cst_16 = arith.constant dense<0.000000e+00> : vector<2x128xf32>
    %70 = tpu.matmul %67, %2, %cst_16 {dimension_numbers = #tpu.dot_dimension_numbers<[1], [0], [0], [1], [0, 0, 1, 1], [], []>} : vector<2x32xf32>, vector<32x128xf32>, vector<2x128xf32> -> vector<2x128xf32>
    %71 = arith.addf %69, %70 : vector<2x128xf32>
    %72 = arith.negf %71 : vector<2x128xf32>
    %73 = math.exp %72 : vector<2x128xf32>
    %cst_17 = arith.constant 1.000000e+00 : f32
    %74 = vector.broadcast %cst_17 : f32 to vector<2x128xf32>
    %75 = arith.addf %74, %73 : vector<2x128xf32>
    %76 = arith.divf %74, %75 : vector<2x128xf32>
    %77 = vector.extract_strided_slice %71 {offsets = [0, 64], sizes = [2, 32], strides = [1, 1]} : vector<2x128xf32> to vector<2x32xf32>
    %78 = math.tanh %77 : vector<2x32xf32>
    %79 = vector.extract_strided_slice %76 {offsets = [0, 32], sizes = [2, 32], strides = [1, 1]} : vector<2x128xf32> to vector<2x32xf32>
    %80 = arith.mulf %79, %64 : vector<2x32xf32>
    %81 = vector.extract_strided_slice %76 {offsets = [0, 0], sizes = [2, 32], strides = [1, 1]} : vector<2x128xf32> to vector<2x32xf32>
    %82 = arith.mulf %81, %78 : vector<2x32xf32>
    %83 = arith.addf %80, %82 : vector<2x32xf32>
    %84 = vector.extract_strided_slice %76 {offsets = [0, 96], sizes = [2, 32], strides = [1, 1]} : vector<2x128xf32> to vector<2x32xf32>
    %85 = math.tanh %83 : vector<2x32xf32>
    %86 = arith.mulf %84, %85 : vector<2x32xf32>
    %87 = vector.extract_strided_slice %8 {offsets = [4, 0, 0], sizes = [1, 2, 128], strides = [1, 1, 1]} : vector<8x2x128xf32> to vector<1x2x128xf32>
    %88 = vector.shape_cast %87 : vector<1x2x128xf32> to vector<2x128xf32>
    %cst_18 = arith.constant dense<0.000000e+00> : vector<2x128xf32>
    %89 = tpu.matmul %86, %2, %cst_18 {dimension_numbers = #tpu.dot_dimension_numbers<[1], [0], [0], [1], [0, 0, 1, 1], [], []>} : vector<2x32xf32>, vector<32x128xf32>, vector<2x128xf32> -> vector<2x128xf32>
    %90 = arith.addf %88, %89 : vector<2x128xf32>
    %91 = arith.negf %90 : vector<2x128xf32>
    %92 = math.exp %91 : vector<2x128xf32>
    %cst_19 = arith.constant 1.000000e+00 : f32
    %93 = vector.broadcast %cst_19 : f32 to vector<2x128xf32>
    %94 = arith.addf %93, %92 : vector<2x128xf32>
    %95 = arith.divf %93, %94 : vector<2x128xf32>
    %96 = vector.extract_strided_slice %90 {offsets = [0, 64], sizes = [2, 32], strides = [1, 1]} : vector<2x128xf32> to vector<2x32xf32>
    %97 = math.tanh %96 : vector<2x32xf32>
    %98 = vector.extract_strided_slice %95 {offsets = [0, 32], sizes = [2, 32], strides = [1, 1]} : vector<2x128xf32> to vector<2x32xf32>
    %99 = arith.mulf %98, %83 : vector<2x32xf32>
    %100 = vector.extract_strided_slice %95 {offsets = [0, 0], sizes = [2, 32], strides = [1, 1]} : vector<2x128xf32> to vector<2x32xf32>
    %101 = arith.mulf %100, %97 : vector<2x32xf32>
    %102 = arith.addf %99, %101 : vector<2x32xf32>
    %103 = vector.extract_strided_slice %95 {offsets = [0, 96], sizes = [2, 32], strides = [1, 1]} : vector<2x128xf32> to vector<2x32xf32>
    %104 = math.tanh %102 : vector<2x32xf32>
    %105 = arith.mulf %103, %104 : vector<2x32xf32>
    %106 = vector.extract_strided_slice %8 {offsets = [5, 0, 0], sizes = [1, 2, 128], strides = [1, 1, 1]} : vector<8x2x128xf32> to vector<1x2x128xf32>
    %107 = vector.shape_cast %106 : vector<1x2x128xf32> to vector<2x128xf32>
    %cst_20 = arith.constant dense<0.000000e+00> : vector<2x128xf32>
    %108 = tpu.matmul %105, %2, %cst_20 {dimension_numbers = #tpu.dot_dimension_numbers<[1], [0], [0], [1], [0, 0, 1, 1], [], []>} : vector<2x32xf32>, vector<32x128xf32>, vector<2x128xf32> -> vector<2x128xf32>
    %109 = arith.addf %107, %108 : vector<2x128xf32>
    %110 = arith.negf %109 : vector<2x128xf32>
    %111 = math.exp %110 : vector<2x128xf32>
    %cst_21 = arith.constant 1.000000e+00 : f32
    %112 = vector.broadcast %cst_21 : f32 to vector<2x128xf32>
    %113 = arith.addf %112, %111 : vector<2x128xf32>
    %114 = arith.divf %112, %113 : vector<2x128xf32>
    %115 = vector.extract_strided_slice %109 {offsets = [0, 64], sizes = [2, 32], strides = [1, 1]} : vector<2x128xf32> to vector<2x32xf32>
    %116 = math.tanh %115 : vector<2x32xf32>
    %117 = vector.extract_strided_slice %114 {offsets = [0, 32], sizes = [2, 32], strides = [1, 1]} : vector<2x128xf32> to vector<2x32xf32>
    %118 = arith.mulf %117, %102 : vector<2x32xf32>
    %119 = vector.extract_strided_slice %114 {offsets = [0, 0], sizes = [2, 32], strides = [1, 1]} : vector<2x128xf32> to vector<2x32xf32>
    %120 = arith.mulf %119, %116 : vector<2x32xf32>
    %121 = arith.addf %118, %120 : vector<2x32xf32>
    %122 = vector.extract_strided_slice %114 {offsets = [0, 96], sizes = [2, 32], strides = [1, 1]} : vector<2x128xf32> to vector<2x32xf32>
    %123 = math.tanh %121 : vector<2x32xf32>
    %124 = arith.mulf %122, %123 : vector<2x32xf32>
    %125 = vector.extract_strided_slice %8 {offsets = [6, 0, 0], sizes = [1, 2, 128], strides = [1, 1, 1]} : vector<8x2x128xf32> to vector<1x2x128xf32>
    %126 = vector.shape_cast %125 : vector<1x2x128xf32> to vector<2x128xf32>
    %cst_22 = arith.constant dense<0.000000e+00> : vector<2x128xf32>
    %127 = tpu.matmul %124, %2, %cst_22 {dimension_numbers = #tpu.dot_dimension_numbers<[1], [0], [0], [1], [0, 0, 1, 1], [], []>} : vector<2x32xf32>, vector<32x128xf32>, vector<2x128xf32> -> vector<2x128xf32>
    %128 = arith.addf %126, %127 : vector<2x128xf32>
    %129 = arith.negf %128 : vector<2x128xf32>
    %130 = math.exp %129 : vector<2x128xf32>
    %cst_23 = arith.constant 1.000000e+00 : f32
    %131 = vector.broadcast %cst_23 : f32 to vector<2x128xf32>
    %132 = arith.addf %131, %130 : vector<2x128xf32>
    %133 = arith.divf %131, %132 : vector<2x128xf32>
    %134 = vector.extract_strided_slice %128 {offsets = [0, 64], sizes = [2, 32], strides = [1, 1]} : vector<2x128xf32> to vector<2x32xf32>
    %135 = math.tanh %134 : vector<2x32xf32>
    %136 = vector.extract_strided_slice %133 {offsets = [0, 32], sizes = [2, 32], strides = [1, 1]} : vector<2x128xf32> to vector<2x32xf32>
    %137 = arith.mulf %136, %121 : vector<2x32xf32>
    %138 = vector.extract_strided_slice %133 {offsets = [0, 0], sizes = [2, 32], strides = [1, 1]} : vector<2x128xf32> to vector<2x32xf32>
    %139 = arith.mulf %138, %135 : vector<2x32xf32>
    %140 = arith.addf %137, %139 : vector<2x32xf32>
    %141 = vector.extract_strided_slice %133 {offsets = [0, 96], sizes = [2, 32], strides = [1, 1]} : vector<2x128xf32> to vector<2x32xf32>
    %142 = math.tanh %140 : vector<2x32xf32>
    %143 = arith.mulf %141, %142 : vector<2x32xf32>
    %144 = vector.extract_strided_slice %8 {offsets = [7, 0, 0], sizes = [1, 2, 128], strides = [1, 1, 1]} : vector<8x2x128xf32> to vector<1x2x128xf32>
    %145 = vector.shape_cast %144 : vector<1x2x128xf32> to vector<2x128xf32>
    %cst_24 = arith.constant dense<0.000000e+00> : vector<2x128xf32>
    %146 = tpu.matmul %143, %2, %cst_24 {dimension_numbers = #tpu.dot_dimension_numbers<[1], [0], [0], [1], [0, 0, 1, 1], [], []>} : vector<2x32xf32>, vector<32x128xf32>, vector<2x128xf32> -> vector<2x128xf32>
    %147 = arith.addf %145, %146 : vector<2x128xf32>
    %148 = arith.negf %147 : vector<2x128xf32>
    %149 = math.exp %148 : vector<2x128xf32>
    %cst_25 = arith.constant 1.000000e+00 : f32
    %150 = vector.broadcast %cst_25 : f32 to vector<2x128xf32>
    %151 = arith.addf %150, %149 : vector<2x128xf32>
    %152 = arith.divf %150, %151 : vector<2x128xf32>
    %153 = vector.extract_strided_slice %147 {offsets = [0, 64], sizes = [2, 32], strides = [1, 1]} : vector<2x128xf32> to vector<2x32xf32>
    %154 = math.tanh %153 : vector<2x32xf32>
    %155 = vector.extract_strided_slice %152 {offsets = [0, 32], sizes = [2, 32], strides = [1, 1]} : vector<2x128xf32> to vector<2x32xf32>
    %156 = arith.mulf %155, %140 : vector<2x32xf32>
    %157 = vector.extract_strided_slice %152 {offsets = [0, 0], sizes = [2, 32], strides = [1, 1]} : vector<2x128xf32> to vector<2x32xf32>
    %158 = arith.mulf %157, %154 : vector<2x32xf32>
    %159 = arith.addf %156, %158 : vector<2x32xf32>
    %160 = vector.extract_strided_slice %152 {offsets = [0, 96], sizes = [2, 32], strides = [1, 1]} : vector<2x128xf32> to vector<2x32xf32>
    %161 = math.tanh %159 : vector<2x32xf32>
    %162 = arith.mulf %160, %161 : vector<2x32xf32>
    %163 = vector.shape_cast %29 : vector<2x32xf32> to vector<1x2x32xf32>
    %164 = vector.shape_cast %48 : vector<2x32xf32> to vector<1x2x32xf32>
    %165 = vector.shape_cast %67 : vector<2x32xf32> to vector<1x2x32xf32>
    %166 = vector.shape_cast %86 : vector<2x32xf32> to vector<1x2x32xf32>
    %167 = vector.shape_cast %105 : vector<2x32xf32> to vector<1x2x32xf32>
    %168 = vector.shape_cast %124 : vector<2x32xf32> to vector<1x2x32xf32>
    %169 = vector.shape_cast %143 : vector<2x32xf32> to vector<1x2x32xf32>
    %170 = vector.shape_cast %162 : vector<2x32xf32> to vector<1x2x32xf32>
    %171 = tpu.concatenate %163, %164, %165, %166, %167, %168, %169, %170 in 0 : vector<1x2x32xf32>, vector<1x2x32xf32>, vector<1x2x32xf32>, vector<1x2x32xf32>, vector<1x2x32xf32>, vector<1x2x32xf32>, vector<1x2x32xf32>, vector<1x2x32xf32> -> vector<8x2x32xf32>
    %c0_26 = arith.constant 0 : index
    %c0_27 = arith.constant 0 : index
    %172 = vector.load %arg5[%c0_26, %c0_27] : memref<32x128xf32, #tpu.memory_space<vmem>>, vector<32x128xf32>
    %c0_28 = arith.constant 0 : index
    %c0_29 = arith.constant 0 : index
    %173 = vector.load %arg6[%c0_28, %c0_29] : memref<32x128xf32, #tpu.memory_space<vmem>>, vector<32x128xf32>
    %c0_30 = arith.constant 0 : index
    %c0_31 = arith.constant 0 : index
    %174 = vector.load %arg7[%c0_30, %c0_31] : memref<1x128xf32, #tpu.memory_space<vmem>>, vector<1x128xf32>
    %175 = vector.shape_cast %171 : vector<8x2x32xf32> to vector<16x32xf32>
    %cst_32 = arith.constant dense<0.000000e+00> : vector<16x128xf32>
    %176 = tpu.matmul %175, %172, %cst_32 {dimension_numbers = #tpu.dot_dimension_numbers<[1], [0], [0], [1], [0, 0, 1, 1], [], []>} : vector<16x32xf32>, vector<32x128xf32>, vector<16x128xf32> -> vector<16x128xf32>
    %177 = vector.broadcast %174 : vector<1x128xf32> to vector<16x128xf32>
    %178 = arith.addf %176, %177 : vector<16x128xf32>
    %179 = vector.shape_cast %178 : vector<16x128xf32> to vector<8x2x128xf32>
    %cst_33 = arith.constant 0.000000e+00 : f32
    %180 = vector.broadcast %cst_33 : f32 to vector<2x32xf32>
    %cst_34 = arith.constant 0.000000e+00 : f32
    %181 = vector.broadcast %cst_34 : f32 to vector<2x32xf32>
    %182 = vector.extract_strided_slice %179 {offsets = [0, 0, 0], sizes = [1, 2, 128], strides = [1, 1, 1]} : vector<8x2x128xf32> to vector<1x2x128xf32>
    %183 = vector.shape_cast %182 : vector<1x2x128xf32> to vector<2x128xf32>
    %cst_35 = arith.constant dense<0.000000e+00> : vector<2x128xf32>
    %184 = tpu.matmul %180, %173, %cst_35 {dimension_numbers = #tpu.dot_dimension_numbers<[1], [0], [0], [1], [0, 0, 1, 1], [], []>} : vector<2x32xf32>, vector<32x128xf32>, vector<2x128xf32> -> vector<2x128xf32>
    %185 = arith.addf %183, %184 : vector<2x128xf32>
    %186 = arith.negf %185 : vector<2x128xf32>
    %187 = math.exp %186 : vector<2x128xf32>
    %cst_36 = arith.constant 1.000000e+00 : f32
    %188 = vector.broadcast %cst_36 : f32 to vector<2x128xf32>
    %189 = arith.addf %188, %187 : vector<2x128xf32>
    %190 = arith.divf %188, %189 : vector<2x128xf32>
    %191 = vector.extract_strided_slice %185 {offsets = [0, 64], sizes = [2, 32], strides = [1, 1]} : vector<2x128xf32> to vector<2x32xf32>
    %192 = math.tanh %191 : vector<2x32xf32>
    %193 = vector.extract_strided_slice %190 {offsets = [0, 32], sizes = [2, 32], strides = [1, 1]} : vector<2x128xf32> to vector<2x32xf32>
    %194 = arith.mulf %193, %181 : vector<2x32xf32>
    %195 = vector.extract_strided_slice %190 {offsets = [0, 0], sizes = [2, 32], strides = [1, 1]} : vector<2x128xf32> to vector<2x32xf32>
    %196 = arith.mulf %195, %192 : vector<2x32xf32>
    %197 = arith.addf %194, %196 : vector<2x32xf32>
    %198 = vector.extract_strided_slice %190 {offsets = [0, 96], sizes = [2, 32], strides = [1, 1]} : vector<2x128xf32> to vector<2x32xf32>
    %199 = math.tanh %197 : vector<2x32xf32>
    %200 = arith.mulf %198, %199 : vector<2x32xf32>
    %201 = vector.extract_strided_slice %179 {offsets = [1, 0, 0], sizes = [1, 2, 128], strides = [1, 1, 1]} : vector<8x2x128xf32> to vector<1x2x128xf32>
    %202 = vector.shape_cast %201 : vector<1x2x128xf32> to vector<2x128xf32>
    %cst_37 = arith.constant dense<0.000000e+00> : vector<2x128xf32>
    %203 = tpu.matmul %200, %173, %cst_37 {dimension_numbers = #tpu.dot_dimension_numbers<[1], [0], [0], [1], [0, 0, 1, 1], [], []>} : vector<2x32xf32>, vector<32x128xf32>, vector<2x128xf32> -> vector<2x128xf32>
    %204 = arith.addf %202, %203 : vector<2x128xf32>
    %205 = arith.negf %204 : vector<2x128xf32>
    %206 = math.exp %205 : vector<2x128xf32>
    %cst_38 = arith.constant 1.000000e+00 : f32
    %207 = vector.broadcast %cst_38 : f32 to vector<2x128xf32>
    %208 = arith.addf %207, %206 : vector<2x128xf32>
    %209 = arith.divf %207, %208 : vector<2x128xf32>
    %210 = vector.extract_strided_slice %204 {offsets = [0, 64], sizes = [2, 32], strides = [1, 1]} : vector<2x128xf32> to vector<2x32xf32>
    %211 = math.tanh %210 : vector<2x32xf32>
    %212 = vector.extract_strided_slice %209 {offsets = [0, 32], sizes = [2, 32], strides = [1, 1]} : vector<2x128xf32> to vector<2x32xf32>
    %213 = arith.mulf %212, %197 : vector<2x32xf32>
    %214 = vector.extract_strided_slice %209 {offsets = [0, 0], sizes = [2, 32], strides = [1, 1]} : vector<2x128xf32> to vector<2x32xf32>
    %215 = arith.mulf %214, %211 : vector<2x32xf32>
    %216 = arith.addf %213, %215 : vector<2x32xf32>
    %217 = vector.extract_strided_slice %209 {offsets = [0, 96], sizes = [2, 32], strides = [1, 1]} : vector<2x128xf32> to vector<2x32xf32>
    %218 = math.tanh %216 : vector<2x32xf32>
    %219 = arith.mulf %217, %218 : vector<2x32xf32>
    %220 = vector.extract_strided_slice %179 {offsets = [2, 0, 0], sizes = [1, 2, 128], strides = [1, 1, 1]} : vector<8x2x128xf32> to vector<1x2x128xf32>
    %221 = vector.shape_cast %220 : vector<1x2x128xf32> to vector<2x128xf32>
    %cst_39 = arith.constant dense<0.000000e+00> : vector<2x128xf32>
    %222 = tpu.matmul %219, %173, %cst_39 {dimension_numbers = #tpu.dot_dimension_numbers<[1], [0], [0], [1], [0, 0, 1, 1], [], []>} : vector<2x32xf32>, vector<32x128xf32>, vector<2x128xf32> -> vector<2x128xf32>
    %223 = arith.addf %221, %222 : vector<2x128xf32>
    %224 = arith.negf %223 : vector<2x128xf32>
    %225 = math.exp %224 : vector<2x128xf32>
    %cst_40 = arith.constant 1.000000e+00 : f32
    %226 = vector.broadcast %cst_40 : f32 to vector<2x128xf32>
    %227 = arith.addf %226, %225 : vector<2x128xf32>
    %228 = arith.divf %226, %227 : vector<2x128xf32>
    %229 = vector.extract_strided_slice %223 {offsets = [0, 64], sizes = [2, 32], strides = [1, 1]} : vector<2x128xf32> to vector<2x32xf32>
    %230 = math.tanh %229 : vector<2x32xf32>
    %231 = vector.extract_strided_slice %228 {offsets = [0, 32], sizes = [2, 32], strides = [1, 1]} : vector<2x128xf32> to vector<2x32xf32>
    %232 = arith.mulf %231, %216 : vector<2x32xf32>
    %233 = vector.extract_strided_slice %228 {offsets = [0, 0], sizes = [2, 32], strides = [1, 1]} : vector<2x128xf32> to vector<2x32xf32>
    %234 = arith.mulf %233, %230 : vector<2x32xf32>
    %235 = arith.addf %232, %234 : vector<2x32xf32>
    %236 = vector.extract_strided_slice %228 {offsets = [0, 96], sizes = [2, 32], strides = [1, 1]} : vector<2x128xf32> to vector<2x32xf32>
    %237 = math.tanh %235 : vector<2x32xf32>
    %238 = arith.mulf %236, %237 : vector<2x32xf32>
    %239 = vector.extract_strided_slice %179 {offsets = [3, 0, 0], sizes = [1, 2, 128], strides = [1, 1, 1]} : vector<8x2x128xf32> to vector<1x2x128xf32>
    %240 = vector.shape_cast %239 : vector<1x2x128xf32> to vector<2x128xf32>
    %cst_41 = arith.constant dense<0.000000e+00> : vector<2x128xf32>
    %241 = tpu.matmul %238, %173, %cst_41 {dimension_numbers = #tpu.dot_dimension_numbers<[1], [0], [0], [1], [0, 0, 1, 1], [], []>} : vector<2x32xf32>, vector<32x128xf32>, vector<2x128xf32> -> vector<2x128xf32>
    %242 = arith.addf %240, %241 : vector<2x128xf32>
    %243 = arith.negf %242 : vector<2x128xf32>
    %244 = math.exp %243 : vector<2x128xf32>
    %cst_42 = arith.constant 1.000000e+00 : f32
    %245 = vector.broadcast %cst_42 : f32 to vector<2x128xf32>
    %246 = arith.addf %245, %244 : vector<2x128xf32>
    %247 = arith.divf %245, %246 : vector<2x128xf32>
    %248 = vector.extract_strided_slice %242 {offsets = [0, 64], sizes = [2, 32], strides = [1, 1]} : vector<2x128xf32> to vector<2x32xf32>
    %249 = math.tanh %248 : vector<2x32xf32>
    %250 = vector.extract_strided_slice %247 {offsets = [0, 32], sizes = [2, 32], strides = [1, 1]} : vector<2x128xf32> to vector<2x32xf32>
    %251 = arith.mulf %250, %235 : vector<2x32xf32>
    %252 = vector.extract_strided_slice %247 {offsets = [0, 0], sizes = [2, 32], strides = [1, 1]} : vector<2x128xf32> to vector<2x32xf32>
    %253 = arith.mulf %252, %249 : vector<2x32xf32>
    %254 = arith.addf %251, %253 : vector<2x32xf32>
    %255 = vector.extract_strided_slice %247 {offsets = [0, 96], sizes = [2, 32], strides = [1, 1]} : vector<2x128xf32> to vector<2x32xf32>
    %256 = math.tanh %254 : vector<2x32xf32>
    %257 = arith.mulf %255, %256 : vector<2x32xf32>
    %258 = vector.extract_strided_slice %179 {offsets = [4, 0, 0], sizes = [1, 2, 128], strides = [1, 1, 1]} : vector<8x2x128xf32> to vector<1x2x128xf32>
    %259 = vector.shape_cast %258 : vector<1x2x128xf32> to vector<2x128xf32>
    %cst_43 = arith.constant dense<0.000000e+00> : vector<2x128xf32>
    %260 = tpu.matmul %257, %173, %cst_43 {dimension_numbers = #tpu.dot_dimension_numbers<[1], [0], [0], [1], [0, 0, 1, 1], [], []>} : vector<2x32xf32>, vector<32x128xf32>, vector<2x128xf32> -> vector<2x128xf32>
    %261 = arith.addf %259, %260 : vector<2x128xf32>
    %262 = arith.negf %261 : vector<2x128xf32>
    %263 = math.exp %262 : vector<2x128xf32>
    %cst_44 = arith.constant 1.000000e+00 : f32
    %264 = vector.broadcast %cst_44 : f32 to vector<2x128xf32>
    %265 = arith.addf %264, %263 : vector<2x128xf32>
    %266 = arith.divf %264, %265 : vector<2x128xf32>
    %267 = vector.extract_strided_slice %261 {offsets = [0, 64], sizes = [2, 32], strides = [1, 1]} : vector<2x128xf32> to vector<2x32xf32>
    %268 = math.tanh %267 : vector<2x32xf32>
    %269 = vector.extract_strided_slice %266 {offsets = [0, 32], sizes = [2, 32], strides = [1, 1]} : vector<2x128xf32> to vector<2x32xf32>
    %270 = arith.mulf %269, %254 : vector<2x32xf32>
    %271 = vector.extract_strided_slice %266 {offsets = [0, 0], sizes = [2, 32], strides = [1, 1]} : vector<2x128xf32> to vector<2x32xf32>
    %272 = arith.mulf %271, %268 : vector<2x32xf32>
    %273 = arith.addf %270, %272 : vector<2x32xf32>
    %274 = vector.extract_strided_slice %266 {offsets = [0, 96], sizes = [2, 32], strides = [1, 1]} : vector<2x128xf32> to vector<2x32xf32>
    %275 = math.tanh %273 : vector<2x32xf32>
    %276 = arith.mulf %274, %275 : vector<2x32xf32>
    %277 = vector.extract_strided_slice %179 {offsets = [5, 0, 0], sizes = [1, 2, 128], strides = [1, 1, 1]} : vector<8x2x128xf32> to vector<1x2x128xf32>
    %278 = vector.shape_cast %277 : vector<1x2x128xf32> to vector<2x128xf32>
    %cst_45 = arith.constant dense<0.000000e+00> : vector<2x128xf32>
    %279 = tpu.matmul %276, %173, %cst_45 {dimension_numbers = #tpu.dot_dimension_numbers<[1], [0], [0], [1], [0, 0, 1, 1], [], []>} : vector<2x32xf32>, vector<32x128xf32>, vector<2x128xf32> -> vector<2x128xf32>
    %280 = arith.addf %278, %279 : vector<2x128xf32>
    %281 = arith.negf %280 : vector<2x128xf32>
    %282 = math.exp %281 : vector<2x128xf32>
    %cst_46 = arith.constant 1.000000e+00 : f32
    %283 = vector.broadcast %cst_46 : f32 to vector<2x128xf32>
    %284 = arith.addf %283, %282 : vector<2x128xf32>
    %285 = arith.divf %283, %284 : vector<2x128xf32>
    %286 = vector.extract_strided_slice %280 {offsets = [0, 64], sizes = [2, 32], strides = [1, 1]} : vector<2x128xf32> to vector<2x32xf32>
    %287 = math.tanh %286 : vector<2x32xf32>
    %288 = vector.extract_strided_slice %285 {offsets = [0, 32], sizes = [2, 32], strides = [1, 1]} : vector<2x128xf32> to vector<2x32xf32>
    %289 = arith.mulf %288, %273 : vector<2x32xf32>
    %290 = vector.extract_strided_slice %285 {offsets = [0, 0], sizes = [2, 32], strides = [1, 1]} : vector<2x128xf32> to vector<2x32xf32>
    %291 = arith.mulf %290, %287 : vector<2x32xf32>
    %292 = arith.addf %289, %291 : vector<2x32xf32>
    %293 = vector.extract_strided_slice %285 {offsets = [0, 96], sizes = [2, 32], strides = [1, 1]} : vector<2x128xf32> to vector<2x32xf32>
    %294 = math.tanh %292 : vector<2x32xf32>
    %295 = arith.mulf %293, %294 : vector<2x32xf32>
    %296 = vector.extract_strided_slice %179 {offsets = [6, 0, 0], sizes = [1, 2, 128], strides = [1, 1, 1]} : vector<8x2x128xf32> to vector<1x2x128xf32>
    %297 = vector.shape_cast %296 : vector<1x2x128xf32> to vector<2x128xf32>
    %cst_47 = arith.constant dense<0.000000e+00> : vector<2x128xf32>
    %298 = tpu.matmul %295, %173, %cst_47 {dimension_numbers = #tpu.dot_dimension_numbers<[1], [0], [0], [1], [0, 0, 1, 1], [], []>} : vector<2x32xf32>, vector<32x128xf32>, vector<2x128xf32> -> vector<2x128xf32>
    %299 = arith.addf %297, %298 : vector<2x128xf32>
    %300 = arith.negf %299 : vector<2x128xf32>
    %301 = math.exp %300 : vector<2x128xf32>
    %cst_48 = arith.constant 1.000000e+00 : f32
    %302 = vector.broadcast %cst_48 : f32 to vector<2x128xf32>
    %303 = arith.addf %302, %301 : vector<2x128xf32>
    %304 = arith.divf %302, %303 : vector<2x128xf32>
    %305 = vector.extract_strided_slice %299 {offsets = [0, 64], sizes = [2, 32], strides = [1, 1]} : vector<2x128xf32> to vector<2x32xf32>
    %306 = math.tanh %305 : vector<2x32xf32>
    %307 = vector.extract_strided_slice %304 {offsets = [0, 32], sizes = [2, 32], strides = [1, 1]} : vector<2x128xf32> to vector<2x32xf32>
    %308 = arith.mulf %307, %292 : vector<2x32xf32>
    %309 = vector.extract_strided_slice %304 {offsets = [0, 0], sizes = [2, 32], strides = [1, 1]} : vector<2x128xf32> to vector<2x32xf32>
    %310 = arith.mulf %309, %306 : vector<2x32xf32>
    %311 = arith.addf %308, %310 : vector<2x32xf32>
    %312 = vector.extract_strided_slice %304 {offsets = [0, 96], sizes = [2, 32], strides = [1, 1]} : vector<2x128xf32> to vector<2x32xf32>
    %313 = math.tanh %311 : vector<2x32xf32>
    %314 = arith.mulf %312, %313 : vector<2x32xf32>
    %315 = vector.extract_strided_slice %179 {offsets = [7, 0, 0], sizes = [1, 2, 128], strides = [1, 1, 1]} : vector<8x2x128xf32> to vector<1x2x128xf32>
    %316 = vector.shape_cast %315 : vector<1x2x128xf32> to vector<2x128xf32>
    %cst_49 = arith.constant dense<0.000000e+00> : vector<2x128xf32>
    %317 = tpu.matmul %314, %173, %cst_49 {dimension_numbers = #tpu.dot_dimension_numbers<[1], [0], [0], [1], [0, 0, 1, 1], [], []>} : vector<2x32xf32>, vector<32x128xf32>, vector<2x128xf32> -> vector<2x128xf32>
    %318 = arith.addf %316, %317 : vector<2x128xf32>
    %319 = arith.negf %318 : vector<2x128xf32>
    %320 = math.exp %319 : vector<2x128xf32>
    %cst_50 = arith.constant 1.000000e+00 : f32
    %321 = vector.broadcast %cst_50 : f32 to vector<2x128xf32>
    %322 = arith.addf %321, %320 : vector<2x128xf32>
    %323 = arith.divf %321, %322 : vector<2x128xf32>
    %324 = vector.extract_strided_slice %318 {offsets = [0, 64], sizes = [2, 32], strides = [1, 1]} : vector<2x128xf32> to vector<2x32xf32>
    %325 = math.tanh %324 : vector<2x32xf32>
    %326 = vector.extract_strided_slice %323 {offsets = [0, 32], sizes = [2, 32], strides = [1, 1]} : vector<2x128xf32> to vector<2x32xf32>
    %327 = arith.mulf %326, %311 : vector<2x32xf32>
    %328 = vector.extract_strided_slice %323 {offsets = [0, 0], sizes = [2, 32], strides = [1, 1]} : vector<2x128xf32> to vector<2x32xf32>
    %329 = arith.mulf %328, %325 : vector<2x32xf32>
    %330 = arith.addf %327, %329 : vector<2x32xf32>
    %331 = vector.extract_strided_slice %323 {offsets = [0, 96], sizes = [2, 32], strides = [1, 1]} : vector<2x128xf32> to vector<2x32xf32>
    %332 = math.tanh %330 : vector<2x32xf32>
    %333 = arith.mulf %331, %332 : vector<2x32xf32>
    %334 = vector.shape_cast %200 : vector<2x32xf32> to vector<1x2x32xf32>
    %335 = vector.shape_cast %219 : vector<2x32xf32> to vector<1x2x32xf32>
    %336 = vector.shape_cast %238 : vector<2x32xf32> to vector<1x2x32xf32>
    %337 = vector.shape_cast %257 : vector<2x32xf32> to vector<1x2x32xf32>
    %338 = vector.shape_cast %276 : vector<2x32xf32> to vector<1x2x32xf32>
    %339 = vector.shape_cast %295 : vector<2x32xf32> to vector<1x2x32xf32>
    %340 = vector.shape_cast %314 : vector<2x32xf32> to vector<1x2x32xf32>
    %341 = vector.shape_cast %333 : vector<2x32xf32> to vector<1x2x32xf32>
    %342 = tpu.concatenate %334, %335, %336, %337, %338, %339, %340, %341 in 0 : vector<1x2x32xf32>, vector<1x2x32xf32>, vector<1x2x32xf32>, vector<1x2x32xf32>, vector<1x2x32xf32>, vector<1x2x32xf32>, vector<1x2x32xf32>, vector<1x2x32xf32> -> vector<8x2x32xf32>
    %c0_51 = arith.constant 0 : index
    %c0_52 = arith.constant 0 : index
    %343 = vector.load %arg8[%c0_51, %c0_52] : memref<32x128xf32, #tpu.memory_space<vmem>>, vector<32x128xf32>
    %c0_53 = arith.constant 0 : index
    %c0_54 = arith.constant 0 : index
    %344 = vector.load %arg9[%c0_53, %c0_54] : memref<32x128xf32, #tpu.memory_space<vmem>>, vector<32x128xf32>
    %c0_55 = arith.constant 0 : index
    %c0_56 = arith.constant 0 : index
    %345 = vector.load %arg10[%c0_55, %c0_56] : memref<1x128xf32, #tpu.memory_space<vmem>>, vector<1x128xf32>
    %346 = vector.shape_cast %342 : vector<8x2x32xf32> to vector<16x32xf32>
    %cst_57 = arith.constant dense<0.000000e+00> : vector<16x128xf32>
    %347 = tpu.matmul %346, %343, %cst_57 {dimension_numbers = #tpu.dot_dimension_numbers<[1], [0], [0], [1], [0, 0, 1, 1], [], []>} : vector<16x32xf32>, vector<32x128xf32>, vector<16x128xf32> -> vector<16x128xf32>
    %348 = vector.broadcast %345 : vector<1x128xf32> to vector<16x128xf32>
    %349 = arith.addf %347, %348 : vector<16x128xf32>
    %350 = vector.shape_cast %349 : vector<16x128xf32> to vector<8x2x128xf32>
    %cst_58 = arith.constant 0.000000e+00 : f32
    %351 = vector.broadcast %cst_58 : f32 to vector<2x32xf32>
    %cst_59 = arith.constant 0.000000e+00 : f32
    %352 = vector.broadcast %cst_59 : f32 to vector<2x32xf32>
    %353 = vector.extract_strided_slice %350 {offsets = [0, 0, 0], sizes = [1, 2, 128], strides = [1, 1, 1]} : vector<8x2x128xf32> to vector<1x2x128xf32>
    %354 = vector.shape_cast %353 : vector<1x2x128xf32> to vector<2x128xf32>
    %cst_60 = arith.constant dense<0.000000e+00> : vector<2x128xf32>
    %355 = tpu.matmul %351, %344, %cst_60 {dimension_numbers = #tpu.dot_dimension_numbers<[1], [0], [0], [1], [0, 0, 1, 1], [], []>} : vector<2x32xf32>, vector<32x128xf32>, vector<2x128xf32> -> vector<2x128xf32>
    %356 = arith.addf %354, %355 : vector<2x128xf32>
    %357 = arith.negf %356 : vector<2x128xf32>
    %358 = math.exp %357 : vector<2x128xf32>
    %cst_61 = arith.constant 1.000000e+00 : f32
    %359 = vector.broadcast %cst_61 : f32 to vector<2x128xf32>
    %360 = arith.addf %359, %358 : vector<2x128xf32>
    %361 = arith.divf %359, %360 : vector<2x128xf32>
    %362 = vector.extract_strided_slice %356 {offsets = [0, 64], sizes = [2, 32], strides = [1, 1]} : vector<2x128xf32> to vector<2x32xf32>
    %363 = math.tanh %362 : vector<2x32xf32>
    %364 = vector.extract_strided_slice %361 {offsets = [0, 32], sizes = [2, 32], strides = [1, 1]} : vector<2x128xf32> to vector<2x32xf32>
    %365 = arith.mulf %364, %352 : vector<2x32xf32>
    %366 = vector.extract_strided_slice %361 {offsets = [0, 0], sizes = [2, 32], strides = [1, 1]} : vector<2x128xf32> to vector<2x32xf32>
    %367 = arith.mulf %366, %363 : vector<2x32xf32>
    %368 = arith.addf %365, %367 : vector<2x32xf32>
    %369 = vector.extract_strided_slice %361 {offsets = [0, 96], sizes = [2, 32], strides = [1, 1]} : vector<2x128xf32> to vector<2x32xf32>
    %370 = math.tanh %368 : vector<2x32xf32>
    %371 = arith.mulf %369, %370 : vector<2x32xf32>
    %372 = vector.extract_strided_slice %350 {offsets = [1, 0, 0], sizes = [1, 2, 128], strides = [1, 1, 1]} : vector<8x2x128xf32> to vector<1x2x128xf32>
    %373 = vector.shape_cast %372 : vector<1x2x128xf32> to vector<2x128xf32>
    %cst_62 = arith.constant dense<0.000000e+00> : vector<2x128xf32>
    %374 = tpu.matmul %371, %344, %cst_62 {dimension_numbers = #tpu.dot_dimension_numbers<[1], [0], [0], [1], [0, 0, 1, 1], [], []>} : vector<2x32xf32>, vector<32x128xf32>, vector<2x128xf32> -> vector<2x128xf32>
    %375 = arith.addf %373, %374 : vector<2x128xf32>
    %376 = arith.negf %375 : vector<2x128xf32>
    %377 = math.exp %376 : vector<2x128xf32>
    %cst_63 = arith.constant 1.000000e+00 : f32
    %378 = vector.broadcast %cst_63 : f32 to vector<2x128xf32>
    %379 = arith.addf %378, %377 : vector<2x128xf32>
    %380 = arith.divf %378, %379 : vector<2x128xf32>
    %381 = vector.extract_strided_slice %375 {offsets = [0, 64], sizes = [2, 32], strides = [1, 1]} : vector<2x128xf32> to vector<2x32xf32>
    %382 = math.tanh %381 : vector<2x32xf32>
    %383 = vector.extract_strided_slice %380 {offsets = [0, 32], sizes = [2, 32], strides = [1, 1]} : vector<2x128xf32> to vector<2x32xf32>
    %384 = arith.mulf %383, %368 : vector<2x32xf32>
    %385 = vector.extract_strided_slice %380 {offsets = [0, 0], sizes = [2, 32], strides = [1, 1]} : vector<2x128xf32> to vector<2x32xf32>
    %386 = arith.mulf %385, %382 : vector<2x32xf32>
    %387 = arith.addf %384, %386 : vector<2x32xf32>
    %388 = vector.extract_strided_slice %380 {offsets = [0, 96], sizes = [2, 32], strides = [1, 1]} : vector<2x128xf32> to vector<2x32xf32>
    %389 = math.tanh %387 : vector<2x32xf32>
    %390 = arith.mulf %388, %389 : vector<2x32xf32>
    %391 = vector.extract_strided_slice %350 {offsets = [2, 0, 0], sizes = [1, 2, 128], strides = [1, 1, 1]} : vector<8x2x128xf32> to vector<1x2x128xf32>
    %392 = vector.shape_cast %391 : vector<1x2x128xf32> to vector<2x128xf32>
    %cst_64 = arith.constant dense<0.000000e+00> : vector<2x128xf32>
    %393 = tpu.matmul %390, %344, %cst_64 {dimension_numbers = #tpu.dot_dimension_numbers<[1], [0], [0], [1], [0, 0, 1, 1], [], []>} : vector<2x32xf32>, vector<32x128xf32>, vector<2x128xf32> -> vector<2x128xf32>
    %394 = arith.addf %392, %393 : vector<2x128xf32>
    %395 = arith.negf %394 : vector<2x128xf32>
    %396 = math.exp %395 : vector<2x128xf32>
    %cst_65 = arith.constant 1.000000e+00 : f32
    %397 = vector.broadcast %cst_65 : f32 to vector<2x128xf32>
    %398 = arith.addf %397, %396 : vector<2x128xf32>
    %399 = arith.divf %397, %398 : vector<2x128xf32>
    %400 = vector.extract_strided_slice %394 {offsets = [0, 64], sizes = [2, 32], strides = [1, 1]} : vector<2x128xf32> to vector<2x32xf32>
    %401 = math.tanh %400 : vector<2x32xf32>
    %402 = vector.extract_strided_slice %399 {offsets = [0, 32], sizes = [2, 32], strides = [1, 1]} : vector<2x128xf32> to vector<2x32xf32>
    %403 = arith.mulf %402, %387 : vector<2x32xf32>
    %404 = vector.extract_strided_slice %399 {offsets = [0, 0], sizes = [2, 32], strides = [1, 1]} : vector<2x128xf32> to vector<2x32xf32>
    %405 = arith.mulf %404, %401 : vector<2x32xf32>
    %406 = arith.addf %403, %405 : vector<2x32xf32>
    %407 = vector.extract_strided_slice %399 {offsets = [0, 96], sizes = [2, 32], strides = [1, 1]} : vector<2x128xf32> to vector<2x32xf32>
    %408 = math.tanh %406 : vector<2x32xf32>
    %409 = arith.mulf %407, %408 : vector<2x32xf32>
    %410 = vector.extract_strided_slice %350 {offsets = [3, 0, 0], sizes = [1, 2, 128], strides = [1, 1, 1]} : vector<8x2x128xf32> to vector<1x2x128xf32>
    %411 = vector.shape_cast %410 : vector<1x2x128xf32> to vector<2x128xf32>
    %cst_66 = arith.constant dense<0.000000e+00> : vector<2x128xf32>
    %412 = tpu.matmul %409, %344, %cst_66 {dimension_numbers = #tpu.dot_dimension_numbers<[1], [0], [0], [1], [0, 0, 1, 1], [], []>} : vector<2x32xf32>, vector<32x128xf32>, vector<2x128xf32> -> vector<2x128xf32>
    %413 = arith.addf %411, %412 : vector<2x128xf32>
    %414 = arith.negf %413 : vector<2x128xf32>
    %415 = math.exp %414 : vector<2x128xf32>
    %cst_67 = arith.constant 1.000000e+00 : f32
    %416 = vector.broadcast %cst_67 : f32 to vector<2x128xf32>
    %417 = arith.addf %416, %415 : vector<2x128xf32>
    %418 = arith.divf %416, %417 : vector<2x128xf32>
    %419 = vector.extract_strided_slice %413 {offsets = [0, 64], sizes = [2, 32], strides = [1, 1]} : vector<2x128xf32> to vector<2x32xf32>
    %420 = math.tanh %419 : vector<2x32xf32>
    %421 = vector.extract_strided_slice %418 {offsets = [0, 32], sizes = [2, 32], strides = [1, 1]} : vector<2x128xf32> to vector<2x32xf32>
    %422 = arith.mulf %421, %406 : vector<2x32xf32>
    %423 = vector.extract_strided_slice %418 {offsets = [0, 0], sizes = [2, 32], strides = [1, 1]} : vector<2x128xf32> to vector<2x32xf32>
    %424 = arith.mulf %423, %420 : vector<2x32xf32>
    %425 = arith.addf %422, %424 : vector<2x32xf32>
    %426 = vector.extract_strided_slice %418 {offsets = [0, 96], sizes = [2, 32], strides = [1, 1]} : vector<2x128xf32> to vector<2x32xf32>
    %427 = math.tanh %425 : vector<2x32xf32>
    %428 = arith.mulf %426, %427 : vector<2x32xf32>
    %429 = vector.extract_strided_slice %350 {offsets = [4, 0, 0], sizes = [1, 2, 128], strides = [1, 1, 1]} : vector<8x2x128xf32> to vector<1x2x128xf32>
    %430 = vector.shape_cast %429 : vector<1x2x128xf32> to vector<2x128xf32>
    %cst_68 = arith.constant dense<0.000000e+00> : vector<2x128xf32>
    %431 = tpu.matmul %428, %344, %cst_68 {dimension_numbers = #tpu.dot_dimension_numbers<[1], [0], [0], [1], [0, 0, 1, 1], [], []>} : vector<2x32xf32>, vector<32x128xf32>, vector<2x128xf32> -> vector<2x128xf32>
    %432 = arith.addf %430, %431 : vector<2x128xf32>
    %433 = arith.negf %432 : vector<2x128xf32>
    %434 = math.exp %433 : vector<2x128xf32>
    %cst_69 = arith.constant 1.000000e+00 : f32
    %435 = vector.broadcast %cst_69 : f32 to vector<2x128xf32>
    %436 = arith.addf %435, %434 : vector<2x128xf32>
    %437 = arith.divf %435, %436 : vector<2x128xf32>
    %438 = vector.extract_strided_slice %432 {offsets = [0, 64], sizes = [2, 32], strides = [1, 1]} : vector<2x128xf32> to vector<2x32xf32>
    %439 = math.tanh %438 : vector<2x32xf32>
    %440 = vector.extract_strided_slice %437 {offsets = [0, 32], sizes = [2, 32], strides = [1, 1]} : vector<2x128xf32> to vector<2x32xf32>
    %441 = arith.mulf %440, %425 : vector<2x32xf32>
    %442 = vector.extract_strided_slice %437 {offsets = [0, 0], sizes = [2, 32], strides = [1, 1]} : vector<2x128xf32> to vector<2x32xf32>
    %443 = arith.mulf %442, %439 : vector<2x32xf32>
    %444 = arith.addf %441, %443 : vector<2x32xf32>
    %445 = vector.extract_strided_slice %437 {offsets = [0, 96], sizes = [2, 32], strides = [1, 1]} : vector<2x128xf32> to vector<2x32xf32>
    %446 = math.tanh %444 : vector<2x32xf32>
    %447 = arith.mulf %445, %446 : vector<2x32xf32>
    %448 = vector.extract_strided_slice %350 {offsets = [5, 0, 0], sizes = [1, 2, 128], strides = [1, 1, 1]} : vector<8x2x128xf32> to vector<1x2x128xf32>
    %449 = vector.shape_cast %448 : vector<1x2x128xf32> to vector<2x128xf32>
    %cst_70 = arith.constant dense<0.000000e+00> : vector<2x128xf32>
    %450 = tpu.matmul %447, %344, %cst_70 {dimension_numbers = #tpu.dot_dimension_numbers<[1], [0], [0], [1], [0, 0, 1, 1], [], []>} : vector<2x32xf32>, vector<32x128xf32>, vector<2x128xf32> -> vector<2x128xf32>
    %451 = arith.addf %449, %450 : vector<2x128xf32>
    %452 = arith.negf %451 : vector<2x128xf32>
    %453 = math.exp %452 : vector<2x128xf32>
    %cst_71 = arith.constant 1.000000e+00 : f32
    %454 = vector.broadcast %cst_71 : f32 to vector<2x128xf32>
    %455 = arith.addf %454, %453 : vector<2x128xf32>
    %456 = arith.divf %454, %455 : vector<2x128xf32>
    %457 = vector.extract_strided_slice %451 {offsets = [0, 64], sizes = [2, 32], strides = [1, 1]} : vector<2x128xf32> to vector<2x32xf32>
    %458 = math.tanh %457 : vector<2x32xf32>
    %459 = vector.extract_strided_slice %456 {offsets = [0, 32], sizes = [2, 32], strides = [1, 1]} : vector<2x128xf32> to vector<2x32xf32>
    %460 = arith.mulf %459, %444 : vector<2x32xf32>
    %461 = vector.extract_strided_slice %456 {offsets = [0, 0], sizes = [2, 32], strides = [1, 1]} : vector<2x128xf32> to vector<2x32xf32>
    %462 = arith.mulf %461, %458 : vector<2x32xf32>
    %463 = arith.addf %460, %462 : vector<2x32xf32>
    %464 = vector.extract_strided_slice %456 {offsets = [0, 96], sizes = [2, 32], strides = [1, 1]} : vector<2x128xf32> to vector<2x32xf32>
    %465 = math.tanh %463 : vector<2x32xf32>
    %466 = arith.mulf %464, %465 : vector<2x32xf32>
    %467 = vector.extract_strided_slice %350 {offsets = [6, 0, 0], sizes = [1, 2, 128], strides = [1, 1, 1]} : vector<8x2x128xf32> to vector<1x2x128xf32>
    %468 = vector.shape_cast %467 : vector<1x2x128xf32> to vector<2x128xf32>
    %cst_72 = arith.constant dense<0.000000e+00> : vector<2x128xf32>
    %469 = tpu.matmul %466, %344, %cst_72 {dimension_numbers = #tpu.dot_dimension_numbers<[1], [0], [0], [1], [0, 0, 1, 1], [], []>} : vector<2x32xf32>, vector<32x128xf32>, vector<2x128xf32> -> vector<2x128xf32>
    %470 = arith.addf %468, %469 : vector<2x128xf32>
    %471 = arith.negf %470 : vector<2x128xf32>
    %472 = math.exp %471 : vector<2x128xf32>
    %cst_73 = arith.constant 1.000000e+00 : f32
    %473 = vector.broadcast %cst_73 : f32 to vector<2x128xf32>
    %474 = arith.addf %473, %472 : vector<2x128xf32>
    %475 = arith.divf %473, %474 : vector<2x128xf32>
    %476 = vector.extract_strided_slice %470 {offsets = [0, 64], sizes = [2, 32], strides = [1, 1]} : vector<2x128xf32> to vector<2x32xf32>
    %477 = math.tanh %476 : vector<2x32xf32>
    %478 = vector.extract_strided_slice %475 {offsets = [0, 32], sizes = [2, 32], strides = [1, 1]} : vector<2x128xf32> to vector<2x32xf32>
    %479 = arith.mulf %478, %463 : vector<2x32xf32>
    %480 = vector.extract_strided_slice %475 {offsets = [0, 0], sizes = [2, 32], strides = [1, 1]} : vector<2x128xf32> to vector<2x32xf32>
    %481 = arith.mulf %480, %477 : vector<2x32xf32>
    %482 = arith.addf %479, %481 : vector<2x32xf32>
    %483 = vector.extract_strided_slice %475 {offsets = [0, 96], sizes = [2, 32], strides = [1, 1]} : vector<2x128xf32> to vector<2x32xf32>
    %484 = math.tanh %482 : vector<2x32xf32>
    %485 = arith.mulf %483, %484 : vector<2x32xf32>
    %486 = vector.extract_strided_slice %350 {offsets = [7, 0, 0], sizes = [1, 2, 128], strides = [1, 1, 1]} : vector<8x2x128xf32> to vector<1x2x128xf32>
    %487 = vector.shape_cast %486 : vector<1x2x128xf32> to vector<2x128xf32>
    %cst_74 = arith.constant dense<0.000000e+00> : vector<2x128xf32>
    %488 = tpu.matmul %485, %344, %cst_74 {dimension_numbers = #tpu.dot_dimension_numbers<[1], [0], [0], [1], [0, 0, 1, 1], [], []>} : vector<2x32xf32>, vector<32x128xf32>, vector<2x128xf32> -> vector<2x128xf32>
    %489 = arith.addf %487, %488 : vector<2x128xf32>
    %490 = arith.negf %489 : vector<2x128xf32>
    %491 = math.exp %490 : vector<2x128xf32>
    %cst_75 = arith.constant 1.000000e+00 : f32
    %492 = vector.broadcast %cst_75 : f32 to vector<2x128xf32>
    %493 = arith.addf %492, %491 : vector<2x128xf32>
    %494 = arith.divf %492, %493 : vector<2x128xf32>
    %495 = vector.extract_strided_slice %489 {offsets = [0, 64], sizes = [2, 32], strides = [1, 1]} : vector<2x128xf32> to vector<2x32xf32>
    %496 = math.tanh %495 : vector<2x32xf32>
    %497 = vector.extract_strided_slice %494 {offsets = [0, 32], sizes = [2, 32], strides = [1, 1]} : vector<2x128xf32> to vector<2x32xf32>
    %498 = arith.mulf %497, %482 : vector<2x32xf32>
    %499 = vector.extract_strided_slice %494 {offsets = [0, 0], sizes = [2, 32], strides = [1, 1]} : vector<2x128xf32> to vector<2x32xf32>
    %500 = arith.mulf %499, %496 : vector<2x32xf32>
    %501 = arith.addf %498, %500 : vector<2x32xf32>
    %502 = vector.extract_strided_slice %494 {offsets = [0, 96], sizes = [2, 32], strides = [1, 1]} : vector<2x128xf32> to vector<2x32xf32>
    %503 = math.tanh %501 : vector<2x32xf32>
    %504 = arith.mulf %502, %503 : vector<2x32xf32>
    %505 = vector.shape_cast %371 : vector<2x32xf32> to vector<1x2x32xf32>
    %506 = vector.shape_cast %390 : vector<2x32xf32> to vector<1x2x32xf32>
    %507 = vector.shape_cast %409 : vector<2x32xf32> to vector<1x2x32xf32>
    %508 = vector.shape_cast %428 : vector<2x32xf32> to vector<1x2x32xf32>
    %509 = vector.shape_cast %447 : vector<2x32xf32> to vector<1x2x32xf32>
    %510 = vector.shape_cast %466 : vector<2x32xf32> to vector<1x2x32xf32>
    %511 = vector.shape_cast %485 : vector<2x32xf32> to vector<1x2x32xf32>
    %512 = vector.shape_cast %504 : vector<2x32xf32> to vector<1x2x32xf32>
    %513 = tpu.concatenate %505, %506, %507, %508, %509, %510, %511, %512 in 0 : vector<1x2x32xf32>, vector<1x2x32xf32>, vector<1x2x32xf32>, vector<1x2x32xf32>, vector<1x2x32xf32>, vector<1x2x32xf32>, vector<1x2x32xf32>, vector<1x2x32xf32> -> vector<8x2x32xf32>
    %c0_76 = arith.constant 0 : index
    %c0_77 = arith.constant 0 : index
    %514 = vector.load %arg11[%c0_76, %c0_77] : memref<32x128xf32, #tpu.memory_space<vmem>>, vector<32x128xf32>
    %c0_78 = arith.constant 0 : index
    %c0_79 = arith.constant 0 : index
    %515 = vector.load %arg12[%c0_78, %c0_79] : memref<32x128xf32, #tpu.memory_space<vmem>>, vector<32x128xf32>
    %c0_80 = arith.constant 0 : index
    %c0_81 = arith.constant 0 : index
    %516 = vector.load %arg13[%c0_80, %c0_81] : memref<1x128xf32, #tpu.memory_space<vmem>>, vector<1x128xf32>
    %517 = vector.shape_cast %513 : vector<8x2x32xf32> to vector<16x32xf32>
    %cst_82 = arith.constant dense<0.000000e+00> : vector<16x128xf32>
    %518 = tpu.matmul %517, %514, %cst_82 {dimension_numbers = #tpu.dot_dimension_numbers<[1], [0], [0], [1], [0, 0, 1, 1], [], []>} : vector<16x32xf32>, vector<32x128xf32>, vector<16x128xf32> -> vector<16x128xf32>
    %519 = vector.broadcast %516 : vector<1x128xf32> to vector<16x128xf32>
    %520 = arith.addf %518, %519 : vector<16x128xf32>
    %521 = vector.shape_cast %520 : vector<16x128xf32> to vector<8x2x128xf32>
    %cst_83 = arith.constant 0.000000e+00 : f32
    %522 = vector.broadcast %cst_83 : f32 to vector<2x32xf32>
    %cst_84 = arith.constant 0.000000e+00 : f32
    %523 = vector.broadcast %cst_84 : f32 to vector<2x32xf32>
    %524 = vector.extract_strided_slice %521 {offsets = [0, 0, 0], sizes = [1, 2, 128], strides = [1, 1, 1]} : vector<8x2x128xf32> to vector<1x2x128xf32>
    %525 = vector.shape_cast %524 : vector<1x2x128xf32> to vector<2x128xf32>
    %cst_85 = arith.constant dense<0.000000e+00> : vector<2x128xf32>
    %526 = tpu.matmul %522, %515, %cst_85 {dimension_numbers = #tpu.dot_dimension_numbers<[1], [0], [0], [1], [0, 0, 1, 1], [], []>} : vector<2x32xf32>, vector<32x128xf32>, vector<2x128xf32> -> vector<2x128xf32>
    %527 = arith.addf %525, %526 : vector<2x128xf32>
    %528 = arith.negf %527 : vector<2x128xf32>
    %529 = math.exp %528 : vector<2x128xf32>
    %cst_86 = arith.constant 1.000000e+00 : f32
    %530 = vector.broadcast %cst_86 : f32 to vector<2x128xf32>
    %531 = arith.addf %530, %529 : vector<2x128xf32>
    %532 = arith.divf %530, %531 : vector<2x128xf32>
    %533 = vector.extract_strided_slice %527 {offsets = [0, 64], sizes = [2, 32], strides = [1, 1]} : vector<2x128xf32> to vector<2x32xf32>
    %534 = math.tanh %533 : vector<2x32xf32>
    %535 = vector.extract_strided_slice %532 {offsets = [0, 32], sizes = [2, 32], strides = [1, 1]} : vector<2x128xf32> to vector<2x32xf32>
    %536 = arith.mulf %535, %523 : vector<2x32xf32>
    %537 = vector.extract_strided_slice %532 {offsets = [0, 0], sizes = [2, 32], strides = [1, 1]} : vector<2x128xf32> to vector<2x32xf32>
    %538 = arith.mulf %537, %534 : vector<2x32xf32>
    %539 = arith.addf %536, %538 : vector<2x32xf32>
    %540 = vector.extract_strided_slice %532 {offsets = [0, 96], sizes = [2, 32], strides = [1, 1]} : vector<2x128xf32> to vector<2x32xf32>
    %541 = math.tanh %539 : vector<2x32xf32>
    %542 = arith.mulf %540, %541 : vector<2x32xf32>
    %543 = vector.extract_strided_slice %521 {offsets = [1, 0, 0], sizes = [1, 2, 128], strides = [1, 1, 1]} : vector<8x2x128xf32> to vector<1x2x128xf32>
    %544 = vector.shape_cast %543 : vector<1x2x128xf32> to vector<2x128xf32>
    %cst_87 = arith.constant dense<0.000000e+00> : vector<2x128xf32>
    %545 = tpu.matmul %542, %515, %cst_87 {dimension_numbers = #tpu.dot_dimension_numbers<[1], [0], [0], [1], [0, 0, 1, 1], [], []>} : vector<2x32xf32>, vector<32x128xf32>, vector<2x128xf32> -> vector<2x128xf32>
    %546 = arith.addf %544, %545 : vector<2x128xf32>
    %547 = arith.negf %546 : vector<2x128xf32>
    %548 = math.exp %547 : vector<2x128xf32>
    %cst_88 = arith.constant 1.000000e+00 : f32
    %549 = vector.broadcast %cst_88 : f32 to vector<2x128xf32>
    %550 = arith.addf %549, %548 : vector<2x128xf32>
    %551 = arith.divf %549, %550 : vector<2x128xf32>
    %552 = vector.extract_strided_slice %546 {offsets = [0, 64], sizes = [2, 32], strides = [1, 1]} : vector<2x128xf32> to vector<2x32xf32>
    %553 = math.tanh %552 : vector<2x32xf32>
    %554 = vector.extract_strided_slice %551 {offsets = [0, 32], sizes = [2, 32], strides = [1, 1]} : vector<2x128xf32> to vector<2x32xf32>
    %555 = arith.mulf %554, %539 : vector<2x32xf32>
    %556 = vector.extract_strided_slice %551 {offsets = [0, 0], sizes = [2, 32], strides = [1, 1]} : vector<2x128xf32> to vector<2x32xf32>
    %557 = arith.mulf %556, %553 : vector<2x32xf32>
    %558 = arith.addf %555, %557 : vector<2x32xf32>
    %559 = vector.extract_strided_slice %551 {offsets = [0, 96], sizes = [2, 32], strides = [1, 1]} : vector<2x128xf32> to vector<2x32xf32>
    %560 = math.tanh %558 : vector<2x32xf32>
    %561 = arith.mulf %559, %560 : vector<2x32xf32>
    %562 = vector.extract_strided_slice %521 {offsets = [2, 0, 0], sizes = [1, 2, 128], strides = [1, 1, 1]} : vector<8x2x128xf32> to vector<1x2x128xf32>
    %563 = vector.shape_cast %562 : vector<1x2x128xf32> to vector<2x128xf32>
    %cst_89 = arith.constant dense<0.000000e+00> : vector<2x128xf32>
    %564 = tpu.matmul %561, %515, %cst_89 {dimension_numbers = #tpu.dot_dimension_numbers<[1], [0], [0], [1], [0, 0, 1, 1], [], []>} : vector<2x32xf32>, vector<32x128xf32>, vector<2x128xf32> -> vector<2x128xf32>
    %565 = arith.addf %563, %564 : vector<2x128xf32>
    %566 = arith.negf %565 : vector<2x128xf32>
    %567 = math.exp %566 : vector<2x128xf32>
    %cst_90 = arith.constant 1.000000e+00 : f32
    %568 = vector.broadcast %cst_90 : f32 to vector<2x128xf32>
    %569 = arith.addf %568, %567 : vector<2x128xf32>
    %570 = arith.divf %568, %569 : vector<2x128xf32>
    %571 = vector.extract_strided_slice %565 {offsets = [0, 64], sizes = [2, 32], strides = [1, 1]} : vector<2x128xf32> to vector<2x32xf32>
    %572 = math.tanh %571 : vector<2x32xf32>
    %573 = vector.extract_strided_slice %570 {offsets = [0, 32], sizes = [2, 32], strides = [1, 1]} : vector<2x128xf32> to vector<2x32xf32>
    %574 = arith.mulf %573, %558 : vector<2x32xf32>
    %575 = vector.extract_strided_slice %570 {offsets = [0, 0], sizes = [2, 32], strides = [1, 1]} : vector<2x128xf32> to vector<2x32xf32>
    %576 = arith.mulf %575, %572 : vector<2x32xf32>
    %577 = arith.addf %574, %576 : vector<2x32xf32>
    %578 = vector.extract_strided_slice %570 {offsets = [0, 96], sizes = [2, 32], strides = [1, 1]} : vector<2x128xf32> to vector<2x32xf32>
    %579 = math.tanh %577 : vector<2x32xf32>
    %580 = arith.mulf %578, %579 : vector<2x32xf32>
    %581 = vector.extract_strided_slice %521 {offsets = [3, 0, 0], sizes = [1, 2, 128], strides = [1, 1, 1]} : vector<8x2x128xf32> to vector<1x2x128xf32>
    %582 = vector.shape_cast %581 : vector<1x2x128xf32> to vector<2x128xf32>
    %cst_91 = arith.constant dense<0.000000e+00> : vector<2x128xf32>
    %583 = tpu.matmul %580, %515, %cst_91 {dimension_numbers = #tpu.dot_dimension_numbers<[1], [0], [0], [1], [0, 0, 1, 1], [], []>} : vector<2x32xf32>, vector<32x128xf32>, vector<2x128xf32> -> vector<2x128xf32>
    %584 = arith.addf %582, %583 : vector<2x128xf32>
    %585 = arith.negf %584 : vector<2x128xf32>
    %586 = math.exp %585 : vector<2x128xf32>
    %cst_92 = arith.constant 1.000000e+00 : f32
    %587 = vector.broadcast %cst_92 : f32 to vector<2x128xf32>
    %588 = arith.addf %587, %586 : vector<2x128xf32>
    %589 = arith.divf %587, %588 : vector<2x128xf32>
    %590 = vector.extract_strided_slice %584 {offsets = [0, 64], sizes = [2, 32], strides = [1, 1]} : vector<2x128xf32> to vector<2x32xf32>
    %591 = math.tanh %590 : vector<2x32xf32>
    %592 = vector.extract_strided_slice %589 {offsets = [0, 32], sizes = [2, 32], strides = [1, 1]} : vector<2x128xf32> to vector<2x32xf32>
    %593 = arith.mulf %592, %577 : vector<2x32xf32>
    %594 = vector.extract_strided_slice %589 {offsets = [0, 0], sizes = [2, 32], strides = [1, 1]} : vector<2x128xf32> to vector<2x32xf32>
    %595 = arith.mulf %594, %591 : vector<2x32xf32>
    %596 = arith.addf %593, %595 : vector<2x32xf32>
    %597 = vector.extract_strided_slice %589 {offsets = [0, 96], sizes = [2, 32], strides = [1, 1]} : vector<2x128xf32> to vector<2x32xf32>
    %598 = math.tanh %596 : vector<2x32xf32>
    %599 = arith.mulf %597, %598 : vector<2x32xf32>
    %600 = vector.extract_strided_slice %521 {offsets = [4, 0, 0], sizes = [1, 2, 128], strides = [1, 1, 1]} : vector<8x2x128xf32> to vector<1x2x128xf32>
    %601 = vector.shape_cast %600 : vector<1x2x128xf32> to vector<2x128xf32>
    %cst_93 = arith.constant dense<0.000000e+00> : vector<2x128xf32>
    %602 = tpu.matmul %599, %515, %cst_93 {dimension_numbers = #tpu.dot_dimension_numbers<[1], [0], [0], [1], [0, 0, 1, 1], [], []>} : vector<2x32xf32>, vector<32x128xf32>, vector<2x128xf32> -> vector<2x128xf32>
    %603 = arith.addf %601, %602 : vector<2x128xf32>
    %604 = arith.negf %603 : vector<2x128xf32>
    %605 = math.exp %604 : vector<2x128xf32>
    %cst_94 = arith.constant 1.000000e+00 : f32
    %606 = vector.broadcast %cst_94 : f32 to vector<2x128xf32>
    %607 = arith.addf %606, %605 : vector<2x128xf32>
    %608 = arith.divf %606, %607 : vector<2x128xf32>
    %609 = vector.extract_strided_slice %603 {offsets = [0, 64], sizes = [2, 32], strides = [1, 1]} : vector<2x128xf32> to vector<2x32xf32>
    %610 = math.tanh %609 : vector<2x32xf32>
    %611 = vector.extract_strided_slice %608 {offsets = [0, 32], sizes = [2, 32], strides = [1, 1]} : vector<2x128xf32> to vector<2x32xf32>
    %612 = arith.mulf %611, %596 : vector<2x32xf32>
    %613 = vector.extract_strided_slice %608 {offsets = [0, 0], sizes = [2, 32], strides = [1, 1]} : vector<2x128xf32> to vector<2x32xf32>
    %614 = arith.mulf %613, %610 : vector<2x32xf32>
    %615 = arith.addf %612, %614 : vector<2x32xf32>
    %616 = vector.extract_strided_slice %608 {offsets = [0, 96], sizes = [2, 32], strides = [1, 1]} : vector<2x128xf32> to vector<2x32xf32>
    %617 = math.tanh %615 : vector<2x32xf32>
    %618 = arith.mulf %616, %617 : vector<2x32xf32>
    %619 = vector.extract_strided_slice %521 {offsets = [5, 0, 0], sizes = [1, 2, 128], strides = [1, 1, 1]} : vector<8x2x128xf32> to vector<1x2x128xf32>
    %620 = vector.shape_cast %619 : vector<1x2x128xf32> to vector<2x128xf32>
    %cst_95 = arith.constant dense<0.000000e+00> : vector<2x128xf32>
    %621 = tpu.matmul %618, %515, %cst_95 {dimension_numbers = #tpu.dot_dimension_numbers<[1], [0], [0], [1], [0, 0, 1, 1], [], []>} : vector<2x32xf32>, vector<32x128xf32>, vector<2x128xf32> -> vector<2x128xf32>
    %622 = arith.addf %620, %621 : vector<2x128xf32>
    %623 = arith.negf %622 : vector<2x128xf32>
    %624 = math.exp %623 : vector<2x128xf32>
    %cst_96 = arith.constant 1.000000e+00 : f32
    %625 = vector.broadcast %cst_96 : f32 to vector<2x128xf32>
    %626 = arith.addf %625, %624 : vector<2x128xf32>
    %627 = arith.divf %625, %626 : vector<2x128xf32>
    %628 = vector.extract_strided_slice %622 {offsets = [0, 64], sizes = [2, 32], strides = [1, 1]} : vector<2x128xf32> to vector<2x32xf32>
    %629 = math.tanh %628 : vector<2x32xf32>
    %630 = vector.extract_strided_slice %627 {offsets = [0, 32], sizes = [2, 32], strides = [1, 1]} : vector<2x128xf32> to vector<2x32xf32>
    %631 = arith.mulf %630, %615 : vector<2x32xf32>
    %632 = vector.extract_strided_slice %627 {offsets = [0, 0], sizes = [2, 32], strides = [1, 1]} : vector<2x128xf32> to vector<2x32xf32>
    %633 = arith.mulf %632, %629 : vector<2x32xf32>
    %634 = arith.addf %631, %633 : vector<2x32xf32>
    %635 = vector.extract_strided_slice %627 {offsets = [0, 96], sizes = [2, 32], strides = [1, 1]} : vector<2x128xf32> to vector<2x32xf32>
    %636 = math.tanh %634 : vector<2x32xf32>
    %637 = arith.mulf %635, %636 : vector<2x32xf32>
    %638 = vector.extract_strided_slice %521 {offsets = [6, 0, 0], sizes = [1, 2, 128], strides = [1, 1, 1]} : vector<8x2x128xf32> to vector<1x2x128xf32>
    %639 = vector.shape_cast %638 : vector<1x2x128xf32> to vector<2x128xf32>
    %cst_97 = arith.constant dense<0.000000e+00> : vector<2x128xf32>
    %640 = tpu.matmul %637, %515, %cst_97 {dimension_numbers = #tpu.dot_dimension_numbers<[1], [0], [0], [1], [0, 0, 1, 1], [], []>} : vector<2x32xf32>, vector<32x128xf32>, vector<2x128xf32> -> vector<2x128xf32>
    %641 = arith.addf %639, %640 : vector<2x128xf32>
    %642 = arith.negf %641 : vector<2x128xf32>
    %643 = math.exp %642 : vector<2x128xf32>
    %cst_98 = arith.constant 1.000000e+00 : f32
    %644 = vector.broadcast %cst_98 : f32 to vector<2x128xf32>
    %645 = arith.addf %644, %643 : vector<2x128xf32>
    %646 = arith.divf %644, %645 : vector<2x128xf32>
    %647 = vector.extract_strided_slice %641 {offsets = [0, 64], sizes = [2, 32], strides = [1, 1]} : vector<2x128xf32> to vector<2x32xf32>
    %648 = math.tanh %647 : vector<2x32xf32>
    %649 = vector.extract_strided_slice %646 {offsets = [0, 32], sizes = [2, 32], strides = [1, 1]} : vector<2x128xf32> to vector<2x32xf32>
    %650 = arith.mulf %649, %634 : vector<2x32xf32>
    %651 = vector.extract_strided_slice %646 {offsets = [0, 0], sizes = [2, 32], strides = [1, 1]} : vector<2x128xf32> to vector<2x32xf32>
    %652 = arith.mulf %651, %648 : vector<2x32xf32>
    %653 = arith.addf %650, %652 : vector<2x32xf32>
    %654 = vector.extract_strided_slice %646 {offsets = [0, 96], sizes = [2, 32], strides = [1, 1]} : vector<2x128xf32> to vector<2x32xf32>
    %655 = math.tanh %653 : vector<2x32xf32>
    %656 = arith.mulf %654, %655 : vector<2x32xf32>
    %657 = vector.extract_strided_slice %521 {offsets = [7, 0, 0], sizes = [1, 2, 128], strides = [1, 1, 1]} : vector<8x2x128xf32> to vector<1x2x128xf32>
    %658 = vector.shape_cast %657 : vector<1x2x128xf32> to vector<2x128xf32>
    %cst_99 = arith.constant dense<0.000000e+00> : vector<2x128xf32>
    %659 = tpu.matmul %656, %515, %cst_99 {dimension_numbers = #tpu.dot_dimension_numbers<[1], [0], [0], [1], [0, 0, 1, 1], [], []>} : vector<2x32xf32>, vector<32x128xf32>, vector<2x128xf32> -> vector<2x128xf32>
    %660 = arith.addf %658, %659 : vector<2x128xf32>
    %661 = arith.negf %660 : vector<2x128xf32>
    %662 = math.exp %661 : vector<2x128xf32>
    %cst_100 = arith.constant 1.000000e+00 : f32
    %663 = vector.broadcast %cst_100 : f32 to vector<2x128xf32>
    %664 = arith.addf %663, %662 : vector<2x128xf32>
    %665 = arith.divf %663, %664 : vector<2x128xf32>
    %666 = vector.extract_strided_slice %660 {offsets = [0, 64], sizes = [2, 32], strides = [1, 1]} : vector<2x128xf32> to vector<2x32xf32>
    %667 = math.tanh %666 : vector<2x32xf32>
    %668 = vector.extract_strided_slice %665 {offsets = [0, 32], sizes = [2, 32], strides = [1, 1]} : vector<2x128xf32> to vector<2x32xf32>
    %669 = arith.mulf %668, %653 : vector<2x32xf32>
    %670 = vector.extract_strided_slice %665 {offsets = [0, 0], sizes = [2, 32], strides = [1, 1]} : vector<2x128xf32> to vector<2x32xf32>
    %671 = arith.mulf %670, %667 : vector<2x32xf32>
    %672 = arith.addf %669, %671 : vector<2x32xf32>
    %673 = vector.extract_strided_slice %665 {offsets = [0, 96], sizes = [2, 32], strides = [1, 1]} : vector<2x128xf32> to vector<2x32xf32>
    %674 = math.tanh %672 : vector<2x32xf32>
    %675 = arith.mulf %673, %674 : vector<2x32xf32>
    %c0_101 = arith.constant 0 : index
    %c0_102 = arith.constant 0 : index
    %676 = vector.load %arg1[%c0_101, %c0_102] : memref<2x8xf32, #tpu.memory_space<vmem>>, vector<2x8xf32>
    %c0_103 = arith.constant 0 : index
    %c0_104 = arith.constant 0 : index
    %677 = vector.load %arg14[%c0_103, %c0_104] : memref<8x32xf32, #tpu.memory_space<vmem>>, vector<8x32xf32>
    %cst_105 = arith.constant dense<0.000000e+00> : vector<2x32xf32>
    %678 = tpu.matmul %676, %677, %cst_105 {dimension_numbers = #tpu.dot_dimension_numbers<[1], [0], [0], [1], [0, 0, 1, 1], [], []>} : vector<2x8xf32>, vector<8x32xf32>, vector<2x32xf32> -> vector<2x32xf32>
    %c0_106 = arith.constant 0 : index
    %c0_107 = arith.constant 0 : index
    %679 = vector.load %arg15[%c0_106, %c0_107] : memref<1x32xf32, #tpu.memory_space<vmem>>, vector<1x32xf32>
    %680 = vector.broadcast %679 : vector<1x32xf32> to vector<2x32xf32>
    %681 = arith.addf %678, %680 : vector<2x32xf32>
    %cst_108 = arith.constant 0.000000e+00 : f32
    %682 = vector.broadcast %cst_108 : f32 to vector<2x32xf32>
    %683 = arith.maximumf %681, %682 : vector<2x32xf32>
    %684 = tpu.concatenate %675, %683 in 1 : vector<2x32xf32>, vector<2x32xf32> -> vector<2x64xf32>
    %c0_109 = arith.constant 0 : index
    %c0_110 = arith.constant 0 : index
    %685 = vector.load %arg16[%c0_109, %c0_110] : memref<64x32xf32, #tpu.memory_space<vmem>>, vector<64x32xf32>
    %cst_111 = arith.constant dense<0.000000e+00> : vector<2x32xf32>
    %686 = tpu.matmul %684, %685, %cst_111 {dimension_numbers = #tpu.dot_dimension_numbers<[1], [0], [0], [1], [0, 0, 1, 1], [], []>} : vector<2x64xf32>, vector<64x32xf32>, vector<2x32xf32> -> vector<2x32xf32>
    %c0_112 = arith.constant 0 : index
    %c0_113 = arith.constant 0 : index
    %687 = vector.load %arg17[%c0_112, %c0_113] : memref<1x32xf32, #tpu.memory_space<vmem>>, vector<1x32xf32>
    %688 = vector.broadcast %687 : vector<1x32xf32> to vector<2x32xf32>
    %689 = arith.addf %686, %688 : vector<2x32xf32>
    %cst_114 = arith.constant 0.000000e+00 : f32
    %690 = vector.broadcast %cst_114 : f32 to vector<2x32xf32>
    %691 = arith.maximumf %689, %690 : vector<2x32xf32>
    %c0_115 = arith.constant 0 : index
    %c0_116 = arith.constant 0 : index
    %692 = vector.load %arg18[%c0_115, %c0_116] : memref<32x8xf32, #tpu.memory_space<vmem>>, vector<32x8xf32>
    %cst_117 = arith.constant dense<0.000000e+00> : vector<2x8xf32>
    %693 = tpu.matmul %691, %692, %cst_117 {dimension_numbers = #tpu.dot_dimension_numbers<[1], [0], [0], [1], [0, 0, 1, 1], [], []>} : vector<2x32xf32>, vector<32x8xf32>, vector<2x8xf32> -> vector<2x8xf32>
    %c0_118 = arith.constant 0 : index
    %c0_119 = arith.constant 0 : index
    %694 = vector.load %arg19[%c0_118, %c0_119] : memref<1x8xf32, #tpu.memory_space<vmem>>, vector<1x8xf32>
    %695 = vector.broadcast %694 : vector<1x8xf32> to vector<2x8xf32>
    %696 = arith.addf %693, %695 : vector<2x8xf32>
    %c0_120 = arith.constant 0 : index
    %c0_121 = arith.constant 0 : index
    %697 = vector.load %arg20[%c0_120, %c0_121] : memref<2x8xf32, #tpu.memory_space<vmem>>, vector<2x8xf32>
    tpu.vector_store %arg20[%c0_120, %c0_121], %696 {strides = array<i32>} : memref<2x8xf32, #tpu.memory_space<vmem>>, vector<2x8xf32>,
    return
  }
}

</mosaic_0001>

<llo_original>
// kernel: emotion_predictor_forward.1
$region0: #{emotion_predictor_forward.1}
  #allocation0 [shape = 'u32[]', space=smem, size = 0x4, offset = 0x4, fixed_abs, tag = 'smem constant byte address 0x4 - core index']
  #allocation1 [shape = 'u32[72,128]{1,0:T(1,128)}', space=vmem, size = 0x9000, scoped, tag = 'internal scratch']
  %s0 = inlined_call_operand.vmem [shape: f32[8,2,16], index: 0, kind: input, shape index: {}]
  %s1 = inlined_call_operand.hbm [shape: f32[2,8], index: 1, kind: input, shape index: {}]
  %s2 = inlined_call_operand.hbm [shape: f32[16,128], index: 2, kind: input, shape index: {}]
  %s3 = inlined_call_operand.vmem [shape: f32[32,128], index: 3, kind: input, shape index: {}]
  %s4 = inlined_call_operand.vmem [shape: f32[1,128], index: 4, kind: input, shape index: {}]
  %s5 = inlined_call_operand.vmem [shape: f32[32,128], index: 5, kind: input, shape index: {}]
  %s6 = inlined_call_operand.vmem [shape: f32[32,128], index: 6, kind: input, shape index: {}]
  %s7 = inlined_call_operand.hbm [shape: f32[1,128], index: 7, kind: input, shape index: {}]
  %s8 = inlined_call_operand.vmem [shape: f32[32,128], index: 8, kind: input, shape index: {}]
  %s9 = inlined_call_operand.hbm [shape: f32[32,128], index: 9, kind: input, shape index: {}]
  %s10 = inlined_call_operand.hbm [shape: f32[1,128], index: 10, kind: input, shape index: {}]
  %s11 = inlined_call_operand.hbm [shape: f32[32,128], index: 11, kind: input, shape index: {}]
  %s12 = inlined_call_operand.hbm [shape: f32[32,128], index: 12, kind: input, shape index: {}]
  %s13 = inlined_call_operand.hbm [shape: f32[1,128], index: 13, kind: input, shape index: {}]
  %s14 = inlined_call_operand.hbm [shape: f32[8,32], index: 14, kind: input, shape index: {}]
  %s15 = inlined_call_operand.hbm [shape: f32[1,32], index: 15, kind: input, shape index: {}]
  %s16 = inlined_call_operand.vmem [shape: f32[64,32], index: 16, kind: input, shape index: {}]
  %s17 = inlined_call_operand.hbm [shape: f32[1,32], index: 17, kind: input, shape index: {}]
  %s18 = inlined_call_operand.vmem [shape: f32[32,8], index: 18, kind: input, shape index: {}]
  %s19 = inlined_call_operand.hbm [shape: f32[1,8], index: 19, kind: input, shape index: {}]
  %s20 = inlined_call_operand.hbm [shape: f32[2,8], index: 20, kind: output, shape index: {}]
  %s21 = sld [smem:[#allocation0]]
  $region138: #{emotion_predictor_forward.1} parent=0
    _
  %s23 = ssub.s32 1, %s21
  %s24 = scalar_select 0, %s23, %s21
  $region1: #{emotion_predictor_forward.1} parent=0
    #allocation2 [shape = 'u8[1024]{0}', space=vmem, size = 0x400, scoped, tag = 'input window, operand 1, single buffered']
    #allocation3 [shape = 's32[1]{0}', space=sflag, size = 0x4, scoped, tag = 'scoped memory for emotion_predictor_forward.1']
    #allocation4 [shape = 's32[1]{0}', space=sflag, size = 0x4, scoped, tag = 'scoped memory for emotion_predictor_forward.1']
    #allocation5 [shape = 'u8[8192]{0}', space=vmem, size = 0x2000, scoped, tag = 'input window, operand 2, single buffered']
    #allocation6 [shape = 's32[1]{0}', space=sflag, size = 0x4, scoped, tag = 'scoped memory for emotion_predictor_forward.1']
    #allocation7 [shape = 'u8[512]{0}', space=vmem, size = 0x400, scoped, tag = 'input window, operand 7, single buffered']
    #allocation8 [shape = 'u8[16384]{0}', space=vmem, size = 0x4000, scoped, tag = 'input window, operand 9, single buffered']
    #allocation9 [shape = 's32[1]{0}', space=sflag, size = 0x4, scoped, tag = 'scoped memory for emotion_predictor_forward.1']
    #allocation10 [shape = 'u8[512]{0}', space=vmem, size = 0x400, scoped, tag = 'input window, operand 10, single buffered']
    #allocation11 [shape = 'u8[16384]{0}', space=vmem, size = 0x4000, scoped, tag = 'input window, operand 11, single buffered']
    #allocation12 [shape = 's32[1]{0}', space=sflag, size = 0x4, scoped, tag = 'scoped memory for emotion_predictor_forward.1']
    #allocation13 [shape = 'u8[16384]{0}', space=vmem, size = 0x4000, scoped, tag = 'input window, operand 12, single buffered']
    #allocation14 [shape = 'u8[512]{0}', space=vmem, size = 0x400, scoped, tag = 'input window, operand 13, single buffered']
    #allocation15 [shape = 's32[1]{0}', space=sflag, size = 0x4, scoped, tag = 'scoped memory for emotion_predictor_forward.1']
    #allocation16 [shape = 'u8[4096]{0}', space=vmem, size = 0x1000, scoped, tag = 'input window, operand 14, single buffered']
    #allocation17 [shape = 'u8[512]{0}', space=vmem, size = 0x400, scoped, tag = 'input window, operand 15, single buffered']
    #allocation18 [shape = 's32[1]{0}', space=sflag, size = 0x4, scoped, tag = 'scoped memory for emotion_predictor_forward.1']
    #allocation19 [shape = 'u8[512]{0}', space=vmem, size = 0x400, scoped, tag = 'input window, operand 17, single buffered']
    #allocation20 [shape = 'u8[512]{0}', space=vmem, size = 0x400, scoped, tag = 'input window, operand 19, single buffered']
    #allocation21 [shape = 's32[1]{0}', space=sflag, size = 0x4, scoped, tag = 'scoped memory for emotion_predictor_forward.1']
    #allocation22 [shape = 'u8[1024]{0}', space=vmem, size = 0x400, scoped, tag = 'output window, operand 0, single buffered']
    %25 = vsyncpa [#allocation3], 0
    %26 = vsyncpa [#allocation6], 0
    %27 = vsyncpa [#allocation9], 0
    %28 = vsyncpa [#allocation12], 0
    %29 = vsyncpa [#allocation15], 0
    %30 = vsyncpa [#allocation18], 0
    %31 = vsyncpa [#allocation21], 0
    %32 = vsyncpa [#allocation4], 0
    // Predicated region
    $region2: #{emotion_predictor_forward.1} parent=1 // pred_check
      _
    $region3: #{emotion_predictor_forward.1} parent=1 // pred_check_branch
      %34 = sbr.rel (0) target = $region5
    $region4: #{emotion_predictor_forward.1} parent=1 // pred_region
      _
    $region5: #{emotion_predictor_forward.1} parent=1 // pred_fallthru
      _
    // Predicated region
    $region6: #{emotion_predictor_forward.1} parent=1 // pred_check
      _
    $region7: #{emotion_predictor_forward.1} parent=1 // pred_check_branch
      %36 = sbr.rel (0) target = $region9
    $region8: #{emotion_predictor_forward.1} parent=1 // pred_region
      %38 = vsyncadd [#allocation3], 0
      %s40 = sshll.u32 %s1, 4
      %s41 = int_to_ptr.hbm [resolvable:$true] %s40
      %s42 = sshll.u32 [#allocation2], 4
      %s43 = int_to_ptr.vmem [resolvable:$true] %s42
      %45 = dma.hbm_to_vmem [thread:$0]  %s41, 32, %s43, [#allocation3]
    $region9: #{emotion_predictor_forward.1} parent=1 // pred_fallthru
      _
    // Predicated region
    $region10: #{emotion_predictor_forward.1} parent=1 // pred_check
      _
    $region11: #{emotion_predictor_forward.1} parent=1 // pred_check_branch
      %47 = sbr.rel (0) target = $region13
    $region12: #{emotion_predictor_forward.1} parent=1 // pred_region
      %49 = vsyncadd [#allocation6], 0
      %s50 = sshll.u32 %s2, 4
      %s51 = int_to_ptr.hbm [resolvable:$true] %s50
      %s52 = sshll.u32 [#allocation5], 4
      %s53 = int_to_ptr.vmem [resolvable:$true] %s52
      %58 = dma.hbm_to_vmem [thread:$0]  %s51, 256, %s53, [#allocation6], 128, 128, 8
    $region13: #{emotion_predictor_forward.1} parent=1 // pred_fallthru
      _
    // Predicated region
    $region14: #{emotion_predictor_forward.1} parent=1 // pred_check
      _
    $region15: #{emotion_predictor_forward.1} parent=1 // pred_check_branch
      %60 = sbr.rel (0) target = $region17
    $region16: #{emotion_predictor_forward.1} parent=1 // pred_region
      _
    $region17: #{emotion_predictor_forward.1} parent=1 // pred_fallthru
      _
    // Predicated region
    $region18: #{emotion_predictor_forward.1} parent=1 // pred_check
      _
    $region19: #{emotion_predictor_forward.1} parent=1 // pred_check_branch
      %62 = sbr.rel (0) target = $region21
    $region20: #{emotion_predictor_forward.1} parent=1 // pred_region
      _
    $region21: #{emotion_predictor_forward.1} parent=1 // pred_fallthru
      _
    // Predicated region
    $region22: #{emotion_predictor_forward.1} parent=1 // pred_check
      _
    $region23: #{emotion_predictor_forward.1} parent=1 // pred_check_branch
      %64 = sbr.rel (0) target = $region25
    $region24: #{emotion_predictor_forward.1} parent=1 // pred_region
      _
    $region25: #{emotion_predictor_forward.1} parent=1 // pred_fallthru
      _
    // Predicated region
    $region26: #{emotion_predictor_forward.1} parent=1 // pred_check
      _
    $region27: #{emotion_predictor_forward.1} parent=1 // pred_check_branch
      %66 = sbr.rel (0) target = $region29
    $region28: #{emotion_predictor_forward.1} parent=1 // pred_region
      _
    $region29: #{emotion_predictor_forward.1} parent=1 // pred_fallthru
      _
    // Predicated region
    $region30: #{emotion_predictor_forward.1} parent=1 // pred_check
      _
    $region31: #{emotion_predictor_forward.1} parent=1 // pred_check_branch
      %68 = sbr.rel (0) target = $region33
    $region32: #{emotion_predictor_forward.1} parent=1 // pred_region
      %70 = vsyncadd [#allocation6], 0
      %s72 = sshll.u32 %s7, 4
      %s73 = int_to_ptr.hbm [resolvable:$true] %s72
      %s74 = sshll.u32 [#allocation7], 4
      %s75 = int_to_ptr.vmem [resolvable:$true] %s74
      %77 = dma.hbm_to_vmem [thread:$0]  %s73, 16, %s75, [#allocation6]
    $region33: #{emotion_predictor_forward.1} parent=1 // pred_fallthru
      _
    // Predicated region
    $region34: #{emotion_predictor_forward.1} parent=1 // pred_check
      _
    $region35: #{emotion_predictor_forward.1} parent=1 // pred_check_branch
      %79 = sbr.rel (0) target = $region37
    $region36: #{emotion_predictor_forward.1} parent=1 // pred_region
      _
    $region37: #{emotion_predictor_forward.1} parent=1 // pred_fallthru
      _
    // Predicated region
    $region38: #{emotion_predictor_forward.1} parent=1 // pred_check
      _
    $region39: #{emotion_predictor_forward.1} parent=1 // pred_check_branch
      %81 = sbr.rel (0) target = $region41
    $region40: #{emotion_predictor_forward.1} parent=1 // pred_region
      %83 = vsyncadd [#allocation9], 0
      %s84 = sshll.u32 %s9, 4
      %s85 = int_to_ptr.hbm [resolvable:$true] %s84
      %s86 = sshll.u32 [#allocation8], 4
      %s87 = int_to_ptr.vmem [resolvable:$true] %s86
      %92 = dma.hbm_to_vmem [thread:$0]  %s85, 512, %s87, [#allocation9], 128, 128, 8
    $region41: #{emotion_predictor_forward.1} parent=1 // pred_fallthru
      _
    // Predicated region
    $region42: #{emotion_predictor_forward.1} parent=1 // pred_check
      _
    $region43: #{emotion_predictor_forward.1} parent=1 // pred_check_branch
      %94 = sbr.rel (0) target = $region45
    $region44: #{emotion_predictor_forward.1} parent=1 // pred_region
      %96 = vsyncadd [#allocation9], 0
      %s98 = sshll.u32 %s10, 4
      %s99 = int_to_ptr.hbm [resolvable:$true] %s98
      %s100 = sshll.u32 [#allocation10], 4
      %s101 = int_to_ptr.vmem [resolvable:$true] %s100
      %103 = dma.hbm_to_vmem [thread:$0]  %s99, 16, %s101, [#allocation9]
    $region45: #{emotion_predictor_forward.1} parent=1 // pred_fallthru
      _
    // Predicated region
    $region46: #{emotion_predictor_forward.1} parent=1 // pred_check
      _
    $region47: #{emotion_predictor_forward.1} parent=1 // pred_check_branch
      %105 = sbr.rel (0) target = $region49
    $region48: #{emotion_predictor_forward.1} parent=1 // pred_region
      %107 = vsyncadd [#allocation12], 0
      %s108 = sshll.u32 %s11, 4
      %s109 = int_to_ptr.hbm [resolvable:$true] %s108
      %s110 = sshll.u32 [#allocation11], 4
      %s111 = int_to_ptr.vmem [resolvable:$true] %s110
      %116 = dma.hbm_to_vmem [thread:$0]  %s109, 512, %s111, [#allocation12], 128, 128, 8
    $region49: #{emotion_predictor_forward.1} parent=1 // pred_fallthru
      _
    // Predicated region
    $region50: #{emotion_predictor_forward.1} parent=1 // pred_check
      _
    $region51: #{emotion_predictor_forward.1} parent=1 // pred_check_branch
      %118 = sbr.rel (0) target = $region53
    $region52: #{emotion_predictor_forward.1} parent=1 // pred_region
      %120 = vsyncadd [#allocation12], 0
      %s121 = sshll.u32 %s12, 4
      %s122 = int_to_ptr.hbm [resolvable:$true] %s121
      %s123 = sshll.u32 [#allocation13], 4
      %s124 = int_to_ptr.vmem [resolvable:$true] %s123
      %129 = dma.hbm_to_vmem [thread:$0]  %s122, 512, %s124, [#allocation12], 128, 128, 8
    $region53: #{emotion_predictor_forward.1} parent=1 // pred_fallthru
      _
    // Predicated region
    $region54: #{emotion_predictor_forward.1} parent=1 // pred_check
      _
    $region55: #{emotion_predictor_forward.1} parent=1 // pred_check_branch
      %131 = sbr.rel (0) target = $region57
    $region56: #{emotion_predictor_forward.1} parent=1 // pred_region
      %133 = vsyncadd [#allocation15], 0
      %s135 = sshll.u32 %s13, 4
      %s136 = int_to_ptr.hbm [resolvable:$true] %s135
      %s137 = sshll.u32 [#allocation14], 4
      %s138 = int_to_ptr.vmem [resolvable:$true] %s137
      %140 = dma.hbm_to_vmem [thread:$0]  %s136, 16, %s138, [#allocation15]
    $region57: #{emotion_predictor_forward.1} parent=1 // pred_fallthru
      _
    // Predicated region
    $region58: #{emotion_predictor_forward.1} parent=1 // pred_check
      _
    $region59: #{emotion_predictor_forward.1} parent=1 // pred_check_branch
      %142 = sbr.rel (0) target = $region61
    $region60: #{emotion_predictor_forward.1} parent=1 // pred_region
      %144 = vsyncadd [#allocation15], 0
      %s146 = sshll.u32 %s14, 4
      %s147 = int_to_ptr.hbm [resolvable:$true] %s146
      %s148 = sshll.u32 [#allocation16], 4
      %s149 = int_to_ptr.vmem [resolvable:$true] %s148
      %151 = dma.hbm_to_vmem [thread:$0]  %s147, 128, %s149, [#allocation15]
    $region61: #{emotion_predictor_forward.1} parent=1 // pred_fallthru
      _
    // Predicated region
    $region62: #{emotion_predictor_forward.1} parent=1 // pred_check
      _
    $region63: #{emotion_predictor_forward.1} parent=1 // pred_check_branch
      %153 = sbr.rel (0) target = $region65
    $region64: #{emotion_predictor_forward.1} parent=1 // pred_region
      %155 = vsyncadd [#allocation18], 0
      %s157 = sshll.u32 %s15, 4
      %s158 = int_to_ptr.hbm [resolvable:$true] %s157
      %s159 = sshll.u32 [#allocation17], 4
      %s160 = int_to_ptr.vmem [resolvable:$true] %s159
      %162 = dma.hbm_to_vmem [thread:$0]  %s158, 16, %s160, [#allocation18]
    $region65: #{emotion_predictor_forward.1} parent=1 // pred_fallthru
      _
    // Predicated region
    $region66: #{emotion_predictor_forward.1} parent=1 // pred_check
      _
    $region67: #{emotion_predictor_forward.1} parent=1 // pred_check_branch
      %164 = sbr.rel (0) target = $region69
    $region68: #{emotion_predictor_forward.1} parent=1 // pred_region
      _
    $region69: #{emotion_predictor_forward.1} parent=1 // pred_fallthru
      _
    // Predicated region
    $region70: #{emotion_predictor_forward.1} parent=1 // pred_check
      _
    $region71: #{emotion_predictor_forward.1} parent=1 // pred_check_branch
      %166 = sbr.rel (0) target = $region73
    $region72: #{emotion_predictor_forward.1} parent=1 // pred_region
      %168 = vsyncadd [#allocation18], 0
      %s170 = sshll.u32 %s17, 4
      %s171 = int_to_ptr.hbm [resolvable:$true] %s170
      %s172 = sshll.u32 [#allocation19], 4
      %s173 = int_to_ptr.vmem [resolvable:$true] %s172
      %175 = dma.hbm_to_vmem [thread:$0]  %s171, 16, %s173, [#allocation18]
    $region73: #{emotion_predictor_forward.1} parent=1 // pred_fallthru
      _
    // Predicated region
    $region74: #{emotion_predictor_forward.1} parent=1 // pred_check
      _
    $region75: #{emotion_predictor_forward.1} parent=1 // pred_check_branch
      %177 = sbr.rel (0) target = $region77
    $region76: #{emotion_predictor_forward.1} parent=1 // pred_region
      _
    $region77: #{emotion_predictor_forward.1} parent=1 // pred_fallthru
      _
    // Predicated region
    $region78: #{emotion_predictor_forward.1} parent=1 // pred_check
      _
    $region79: #{emotion_predictor_forward.1} parent=1 // pred_check_branch
      %179 = sbr.rel (0) target = $region81
    $region80: #{emotion_predictor_forward.1} parent=1 // pred_region
      %181 = vsyncadd [#allocation21], 0
      %s183 = sshll.u32 %s19, 4
      %s184 = int_to_ptr.hbm [resolvable:$true] %s183
      %s185 = sshll.u32 [#allocation20], 4
      %s186 = int_to_ptr.vmem [resolvable:$true] %s185
      %188 = dma.hbm_to_vmem [thread:$0]  %s184, 16, %s186, [#allocation21]
    $region81: #{emotion_predictor_forward.1} parent=1 // pred_fallthru
      _
    // Predicated region
    $region82: #{emotion_predictor_forward.1} parent=1 // pred_check
      _
    $region83: #{emotion_predictor_forward.1} parent=1 // pred_check_branch
      %190 = sbr.rel (0) target = $region85
    $region84: #{emotion_predictor_forward.1} parent=1 // pred_region
      %192 = dma.done [#allocation3], 32
    $region85: #{emotion_predictor_forward.1} parent=1 // pred_fallthru
      _
    // Predicated region
    $region86: #{emotion_predictor_forward.1} parent=1 // pred_check
      _
    $region87: #{emotion_predictor_forward.1} parent=1 // pred_check_branch
      %194 = sbr.rel (0) target = $region89
    $region88: #{emotion_predictor_forward.1} parent=1 // pred_region
      %196 = dma.done [#allocation6], 256
    $region89: #{emotion_predictor_forward.1} parent=1 // pred_fallthru
      _
    // Predicated region
    $region90: #{emotion_predictor_forward.1} parent=1 // pred_check
      _
    $region91: #{emotion_predictor_forward.1} parent=1 // pred_check_branch
      %198 = sbr.rel (0) target = $region93
    $region92: #{emotion_predictor_forward.1} parent=1 // pred_region
      %200 = dma.done [#allocation6], 16
    $region93: #{emotion_predictor_forward.1} parent=1 // pred_fallthru
      _
    // Predicated region
    $region94: #{emotion_predictor_forward.1} parent=1 // pred_check
      _
    $region95: #{emotion_predictor_forward.1} parent=1 // pred_check_branch
      %202 = sbr.rel (0) target = $region97
    $region96: #{emotion_predictor_forward.1} parent=1 // pred_region
      %204 = dma.done [#allocation9], 512
    $region97: #{emotion_predictor_forward.1} parent=1 // pred_fallthru
      _
    // Predicated region
    $region98: #{emotion_predictor_forward.1} parent=1 // pred_check
      _
    $region99: #{emotion_predictor_forward.1} parent=1 // pred_check_branch
      %206 = sbr.rel (0) target = $region101
    $region100: #{emotion_predictor_forward.1} parent=1 // pred_region
      %208 = dma.done [#allocation9], 16
    $region101: #{emotion_predictor_forward.1} parent=1 // pred_fallthru
      _
    // Predicated region
    $region102: #{emotion_predictor_forward.1} parent=1 // pred_check
      _
    $region103: #{emotion_predictor_forward.1} parent=1 // pred_check_branch
      %210 = sbr.rel (0) target = $region105
    $region104: #{emotion_predictor_forward.1} parent=1 // pred_region
      %212 = dma.done [#allocation12], 512
    $region105: #{emotion_predictor_forward.1} parent=1 // pred_fallthru
      _
    // Predicated region
    $region106: #{emotion_predictor_forward.1} parent=1 // pred_check
      _
    $region107: #{emotion_predictor_forward.1} parent=1 // pred_check_branch
      %214 = sbr.rel (0) target = $region109
    $region108: #{emotion_predictor_forward.1} parent=1 // pred_region
      %216 = dma.done [#allocation12], 512
    $region109: #{emotion_predictor_forward.1} parent=1 // pred_fallthru
      _
    // Predicated region
    $region110: #{emotion_predictor_forward.1} parent=1 // pred_check
      _
    $region111: #{emotion_predictor_forward.1} parent=1 // pred_check_branch
      %218 = sbr.rel (0) target = $region113
    $region112: #{emotion_predictor_forward.1} parent=1 // pred_region
      %220 = dma.done [#allocation15], 16
    $region113: #{emotion_predictor_forward.1} parent=1 // pred_fallthru
      _
    // Predicated region
    $region114: #{emotion_predictor_forward.1} parent=1 // pred_check
      _
    $region115: #{emotion_predictor_forward.1} parent=1 // pred_check_branch
      %222 = sbr.rel (0) target = $region117
    $region116: #{emotion_predictor_forward.1} parent=1 // pred_region
      %224 = dma.done [#allocation15], 128
    $region117: #{emotion_predictor_forward.1} parent=1 // pred_fallthru
      _
    // Predicated region
    $region118: #{emotion_predictor_forward.1} parent=1 // pred_check
      _
    $region119: #{emotion_predictor_forward.1} parent=1 // pred_check_branch
      %226 = sbr.rel (0) target = $region121
    $region120: #{emotion_predictor_forward.1} parent=1 // pred_region
      %228 = dma.done [#allocation18], 16
    $region121: #{emotion_predictor_forward.1} parent=1 // pred_fallthru
      _
    // Predicated region
    $region122: #{emotion_predictor_forward.1} parent=1 // pred_check
      _
    $region123: #{emotion_predictor_forward.1} parent=1 // pred_check_branch
      %230 = sbr.rel (0) target = $region125
    $region124: #{emotion_predictor_forward.1} parent=1 // pred_region
      %232 = dma.done [#allocation18], 16
    $region125: #{emotion_predictor_forward.1} parent=1 // pred_fallthru
      _
    // Predicated region
    $region126: #{emotion_predictor_forward.1} parent=1 // pred_check
      _
    $region127: #{emotion_predictor_forward.1} parent=1 // pred_check_branch
      %234 = sbr.rel (0) target = $region129
    $region128: #{emotion_predictor_forward.1} parent=1 // pred_region
      %236 = dma.done [#allocation21], 16
    $region129: #{emotion_predictor_forward.1} parent=1 // pred_fallthru
      _
    %v237 = vld [vmem:[%s0] sm:$0x3]
    %v238 = vld [vmem:[%s0 + $0x2] sm:$0x3]
    %v239 = vld [vmem:[%s0 + $0x4] sm:$0x3]
    %v240 = vld [vmem:[%s0 + $0x6] sm:$0x3]
    %v241 = vld [vmem:[%s0 + $0x8] sm:$0x3]
    %v242 = vld [vmem:[%s0 + $0xa] sm:$0x3]
    %v243 = vld [vmem:[%s0 + $0xc] sm:$0x3]
    %v244 = vld [vmem:[%s0 + $0xe] sm:$0x3]
    %v245 = vld [vmem:[#allocation5] sm:$0xff]
    %v246 = vld [vmem:[#allocation5 + $0x8] sm:$0xff]
    %v247 = vld [vmem:[%s3] sm:$0xff]
    %v248 = vld [vmem:[%s3 + $0x8] sm:$0xff]
    %v249 = vld [vmem:[%s3 + $0x10] sm:$0xff]
    %v250 = vld [vmem:[%s3 + $0x18] sm:$0xff]
    %v251 = vld [vmem:[%s4] sm:$0x1]
    %v253 = vperm.slane %v251, 0
    %263 = vst [vmem:[#allocation1] ss:$4 sm:$0xff] %v237
    %s264 = scalar_lea.vmem [#allocation1], 1
    %265 = vst [vmem:[%s264] ss:$4 sm:$0xff] %v238
    %s266 = scalar_lea.vmem [#allocation1], 2
    %267 = vst [vmem:[%s266] ss:$4 sm:$0xff] %v239
    %s268 = scalar_lea.vmem [#allocation1], 3
    %269 = vst [vmem:[%s268] ss:$4 sm:$0xff] %v240
    %s270 = scalar_lea.vmem [#allocation1], 32
    %271 = vst [vmem:[%s270] ss:$4 sm:$0xff] %v241
    %s272 = scalar_lea.vmem [#allocation1], 33
    %273 = vst [vmem:[%s272] ss:$4 sm:$0xff] %v242
    %s274 = scalar_lea.vmem [#allocation1], 34
    %275 = vst [vmem:[%s274] ss:$4 sm:$0xff] %v243
    %s276 = scalar_lea.vmem [#allocation1], 35
    %277 = vst [vmem:[%s276] ss:$4 sm:$0xff] %v244
    %v278 = vld.sshfl [vmem:[#allocation1] sm:$0xff pattern:$0x73625140]
    %v279 = vld.sshfl [vmem:[#allocation1 + $0x20] sm:$0xff pattern:$0x73625140]
    %vm280 = vcmask 130048
    %v281 = vsel %vm280, %v278, 0
    %v283 = vsel %vm280, %v279, 0
    %285 = vmatpush.msra.mxu0 0.0
    %286 = vmatpush.msra.mxu0 0.0
    %287 = vmatpush.msra.mxu0 0.0
    %288 = vmatpush.msra.mxu0 0.0
    %289 = vmatpush.msra.mxu0 0.0
    %290 = vmatpush.msra.mxu0 0.0
    %291 = vmatpush.msra.mxu0 0.0
    %292 = vmatpush.msra.mxu0 0.0
    %293 = vmatpush.msra.mxu0 0.0
    %294 = vmatpush.msra.mxu0 0.0
    %295 = vmatpush.msra.mxu0 0.0
    %296 = vmatpush.msra.mxu0 0.0
    %297 = vmatpush.msra.mxu0 0.0
    %298 = vmatpush.msra.mxu0 0.0
    %299 = vmatpush.msra.mxu0 %v246
    %300 = vmatpush.msra.mxu0 %v245
    %301 = vmatmul.f32.gmra.mxu0 %v281
    %v302 = vpop.f32.mrf.mxu0
    %v303 = vadd.f32 %v253, %v302
    %304 = vmatmul.f32.gmra.mxu0 %v283
    %v305 = vpop.f32.mrf.mxu0
    %v306 = vadd.f32 %v253, %v305
    %307 = vdwg.mxu0
    %v310 = vrot.slane %v303, 2
    %v311 = vrot.slane %v303, 4
    %v312 = vrot.slane %v303, 6
    %v313 = vrot.slane %v306, 2
    %v314 = vrot.slane %v306, 4
    %v315 = vrot.slane %v306, 6
    %vm322 = vcmask 261120
    %v324 = vsel %vm322, 0.0, 0
    %326 = vmatpush.msra.mxu0 0.0
    %327 = vmatpush.msra.mxu0 0.0
    %328 = vmatpush.msra.mxu0 0.0
    %329 = vmatpush.msra.mxu0 0.0
    %330 = vmatpush.msra.mxu0 0.0
    %331 = vmatpush.msra.mxu0 0.0
    %332 = vmatpush.msra.mxu0 0.0
    %333 = vmatpush.msra.mxu0 0.0
    %334 = vmatpush.msra.mxu0 0.0
    %335 = vmatpush.msra.mxu0 0.0
    %336 = vmatpush.msra.mxu0 0.0
    %337 = vmatpush.msra.mxu0 0.0
    %338 = vmatpush.msra.mxu0 %v250
    %339 = vmatpush.msra.mxu0 %v249
    %340 = vmatpush.msra.mxu0 %v248
    %341 = vmatpush.msra.mxu0 %v247
    %342 = vmatmul.f32.gmra.mxu0 %v324
    %v343 = vpop.f32.mrf.mxu0
    %v344 = vadd.f32 0.0, %v343
    %345 = vdwg.mxu0
    %v346 = vadd.f32 %v303, %v344
    %v347 = vxor.u32 %v346, 2147483648
    %v348 = vmul.f32 %v347, 1.442695
    %v349 = vpow.pop %v348
    %v350 = vadd.f32 %v349, 1.0
    %v351 = vrcp.pop %v350
    %v352 = vmul.f32 %v350, %v351
    %v353 = vsub.f32 1.0, %v352
    %v354 = vmul.f32 %v351, %v353
    %v355 = vadd.f32 %v351, %v354
    %vm356 = vweird.f32 %v350
    %vm357 = vweird.f32 %v351
    %vm358 = vmor %vm356, %vm357
    %v359 = vsel %vm358, %v351, %v355
    %v360 = vand.u32 2147483647, %v350
    %vm361 = vcmp.eq.f32.partialorder %v360, 8.507059e+37
    %v362 = vand.u32 %v350, 2147483648
    %v363 = vor.u32 1.1754944e-38, %v362
    %v364 = vsel %vm361, %v363, %v359
    %v365 = vmul.f32 1.0, %v364
    %v366 = vtanh.pop %v346
    %v367 = vmul.f32 %v365, 0.0
    %369 = vrot.lane.b32.xlu0 %v366, 64
    %v370 = vpop.permute.xlu0 %369
    %v372 = vmul.f32 %v365, %v370
    %374 = vrot.lane.b32.xlu0 %v372, 32
    %v375 = vpop.permute.xlu0 %374
    %v377 = vadd.f32 %v367, %v375
    %v378 = vtanh.pop %v377
    %380 = vrot.lane.b32.xlu0 %v378, 64
    %v381 = vpop.permute.xlu0 %380
    %v383 = vmul.f32 %v365, %v381
    %385 = vst [vmem:[#allocation1] ss:$4 sm:$0xff] %v383
    %v386 = vld.sshfl [vmem:[#allocation1] sm:$0xff pattern:$0x73625140]
    %387 = vrot.lane.b32.xlu0 %v386, 32
    %v388 = vpop.permute.xlu0 %387
    %v389 = vsel %vm322, %v388, 0
    %391 = vmatpush.msra.mxu0 0.0
    %392 = vmatpush.msra.mxu0 0.0
    %393 = vmatpush.msra.mxu0 0.0
    %394 = vmatpush.msra.mxu0 0.0
    %395 = vmatpush.msra.mxu0 0.0
    %396 = vmatpush.msra.mxu0 0.0
    %397 = vmatpush.msra.mxu0 0.0
    %398 = vmatpush.msra.mxu0 0.0
    %399 = vmatpush.msra.mxu0 0.0
    %400 = vmatpush.msra.mxu0 0.0
    %401 = vmatpush.msra.mxu0 0.0
    %402 = vmatpush.msra.mxu0 0.0
    %403 = vmatpush.msra.mxu0 %v250
    %404 = vmatpush.msra.mxu0 %v249
    %405 = vmatpush.msra.mxu0 %v248
    %406 = vmatpush.msra.mxu0 %v247
    %407 = vmatmul.f32.gmra.mxu0 %v389
    %v408 = vpop.f32.mrf.mxu0
    %v409 = vadd.f32 0.0, %v408
    %410 = vdwg.mxu0
    %v411 = vadd.f32 %v310, %v409
    %v412 = vxor.u32 %v411, 2147483648
    %v413 = vmul.f32 %v412, 1.442695
    %v414 = vpow.pop %v413
    %v415 = vadd.f32 %v414, 1.0
    %v416 = vrcp.pop %v415
    %v417 = vmul.f32 %v415, %v416
    %v418 = vsub.f32 1.0, %v417
    %v419 = vmul.f32 %v416, %v418
    %v420 = vadd.f32 %v416, %v419
    %vm421 = vweird.f32 %v415
    %vm422 = vweird.f32 %v416
    %vm423 = vmor %vm421, %vm422
    %v424 = vsel %vm423, %v416, %v420
    %v425 = vand.u32 2147483647, %v415
    %vm426 = vcmp.eq.f32.partialorder %v425, 8.507059e+37
    %v427 = vand.u32 %v415, 2147483648
    %v428 = vor.u32 1.1754944e-38, %v427
    %v429 = vsel %vm426, %v428, %v424
    %v430 = vmul.f32 1.0, %v429
    %v431 = vtanh.pop %v411
    %v432 = vmul.f32 %v430, %v377
    %434 = vrot.lane.b32.xlu0 %v431, 64
    %v435 = vpop.permute.xlu0 %434
    %v437 = vmul.f32 %v430, %v435
    %439 = vrot.lane.b32.xlu0 %v437, 32
    %v440 = vpop.permute.xlu0 %439
    %v442 = vadd.f32 %v432, %v440
    %v443 = vtanh.pop %v442
    %445 = vrot.lane.b32.xlu0 %v443, 64
    %v446 = vpop.permute.xlu0 %445
    %v448 = vmul.f32 %v430, %v446
    %450 = vst [vmem:[#allocation1] ss:$4 sm:$0xff] %v448
    %v451 = vld.sshfl [vmem:[#allocation1] sm:$0xff pattern:$0x73625140]
    %452 = vrot.lane.b32.xlu0 %v451, 32
    %v453 = vpop.permute.xlu0 %452
    %v454 = vsel %vm322, %v453, 0
    %456 = vmatpush.msra.mxu0 0.0
    %457 = vmatpush.msra.mxu0 0.0
    %458 = vmatpush.msra.mxu0 0.0
    %459 = vmatpush.msra.mxu0 0.0
    %460 = vmatpush.msra.mxu0 0.0
    %461 = vmatpush.msra.mxu0 0.0
    %462 = vmatpush.msra.mxu0 0.0
    %463 = vmatpush.msra.mxu0 0.0
    %464 = vmatpush.msra.mxu0 0.0
    %465 = vmatpush.msra.mxu0 0.0
    %466 = vmatpush.msra.mxu0 0.0
    %467 = vmatpush.msra.mxu0 0.0
    %468 = vmatpush.msra.mxu0 %v250
    %469 = vmatpush.msra.mxu0 %v249
    %470 = vmatpush.msra.mxu0 %v248
    %471 = vmatpush.msra.mxu0 %v247
    %472 = vmatmul.f32.gmra.mxu0 %v454
    %v473 = vpop.f32.mrf.mxu0
    %v474 = vadd.f32 0.0, %v473
    %475 = vdwg.mxu0
    %v476 = vadd.f32 %v311, %v474
    %v477 = vxor.u32 %v476, 2147483648
    %v478 = vmul.f32 %v477, 1.442695
    %v479 = vpow.pop %v478
    %v480 = vadd.f32 %v479, 1.0
    %v481 = vrcp.pop %v480
    %v482 = vmul.f32 %v480, %v481
    %v483 = vsub.f32 1.0, %v482
    %v484 = vmul.f32 %v481, %v483
    %v485 = vadd.f32 %v481, %v484
    %vm486 = vweird.f32 %v480
    %vm487 = vweird.f32 %v481
    %vm488 = vmor %vm486, %vm487
    %v489 = vsel %vm488, %v481, %v485
    %v490 = vand.u32 2147483647, %v480
    %vm491 = vcmp.eq.f32.partialorder %v490, 8.507059e+37
    %v492 = vand.u32 %v480, 2147483648
    %v493 = vor.u32 1.1754944e-38, %v492
    %v494 = vsel %vm491, %v493, %v489
    %v495 = vmul.f32 1.0, %v494
    %v496 = vtanh.pop %v476
    %v497 = vmul.f32 %v495, %v442
    %499 = vrot.lane.b32.xlu0 %v496, 64
    %v500 = vpop.permute.xlu0 %499
    %v502 = vmul.f32 %v495, %v500
    %504 = vrot.lane.b32.xlu0 %v502, 32
    %v505 = vpop.permute.xlu0 %504
    %v507 = vadd.f32 %v497, %v505
    %v508 = vtanh.pop %v507
    %510 = vrot.lane.b32.xlu0 %v508, 64
    %v511 = vpop.permute.xlu0 %510
    %v513 = vmul.f32 %v495, %v511
    %515 = vst [vmem:[#allocation1] ss:$4 sm:$0xff] %v513
    %v516 = vld.sshfl [vmem:[#allocation1] sm:$0xff pattern:$0x73625140]
    %517 = vrot.lane.b32.xlu0 %v516, 32
    %v518 = vpop.permute.xlu0 %517
    %v519 = vsel %vm322, %v518, 0
    %521 = vmatpush.msra.mxu0 0.0
    %522 = vmatpush.msra.mxu0 0.0
    %523 = vmatpush.msra.mxu0 0.0
    %524 = vmatpush.msra.mxu0 0.0
    %525 = vmatpush.msra.mxu0 0.0
    %526 = vmatpush.msra.mxu0 0.0
    %527 = vmatpush.msra.mxu0 0.0
    %528 = vmatpush.msra.mxu0 0.0
    %529 = vmatpush.msra.mxu0 0.0
    %530 = vmatpush.msra.mxu0 0.0
    %531 = vmatpush.msra.mxu0 0.0
    %532 = vmatpush.msra.mxu0 0.0
    %533 = vmatpush.msra.mxu0 %v250
    %534 = vmatpush.msra.mxu0 %v249
    %535 = vmatpush.msra.mxu0 %v248
    %536 = vmatpush.msra.mxu0 %v247
    %537 = vmatmul.f32.gmra.mxu0 %v519
    %v538 = vpop.f32.mrf.mxu0
    %v539 = vadd.f32 0.0, %v538
    %540 = vdwg.mxu0
    %v541 = vadd.f32 %v312, %v539
    %v542 = vxor.u32 %v541, 2147483648
    %v543 = vmul.f32 %v542, 1.442695
    %v544 = vpow.pop %v543
    %v545 = vadd.f32 %v544, 1.0
    %v546 = vrcp.pop %v545
    %v547 = vmul.f32 %v545, %v546
    %v548 = vsub.f32 1.0, %v547
    %v549 = vmul.f32 %v546, %v548
    %v550 = vadd.f32 %v546, %v549
    %vm551 = vweird.f32 %v545
    %vm552 = vweird.f32 %v546
    %vm553 = vmor %vm551, %vm552
    %v554 = vsel %vm553, %v546, %v550
    %v555 = vand.u32 2147483647, %v545
    %vm556 = vcmp.eq.f32.partialorder %v555, 8.507059e+37
    %v557 = vand.u32 %v545, 2147483648
    %v558 = vor.u32 1.1754944e-38, %v557
    %v559 = vsel %vm556, %v558, %v554
    %v560 = vmul.f32 1.0, %v559
    %v561 = vtanh.pop %v541
    %v562 = vmul.f32 %v560, %v507
    %564 = vrot.lane.b32.xlu0 %v561, 64
    %v565 = vpop.permute.xlu0 %564
    %v567 = vmul.f32 %v560, %v565
    %569 = vrot.lane.b32.xlu0 %v567, 32
    %v570 = vpop.permute.xlu0 %569
    %v572 = vadd.f32 %v562, %v570
    %v573 = vtanh.pop %v572
    %575 = vrot.lane.b32.xlu0 %v573, 64
    %v576 = vpop.permute.xlu0 %575
    %v578 = vmul.f32 %v560, %v576
    %580 = vst [vmem:[#allocation1] ss:$4 sm:$0xff] %v578
    %v581 = vld.sshfl [vmem:[#allocation1] sm:$0xff pattern:$0x73625140]
    %582 = vrot.lane.b32.xlu0 %v581, 32
    %v583 = vpop.permute.xlu0 %582
    %v584 = vsel %vm322, %v583, 0
    %586 = vmatpush.msra.mxu0 0.0
    %587 = vmatpush.msra.mxu0 0.0
    %588 = vmatpush.msra.mxu0 0.0
    %589 = vmatpush.msra.mxu0 0.0
    %590 = vmatpush.msra.mxu0 0.0
    %591 = vmatpush.msra.mxu0 0.0
    %592 = vmatpush.msra.mxu0 0.0
    %593 = vmatpush.msra.mxu0 0.0
    %594 = vmatpush.msra.mxu0 0.0
    %595 = vmatpush.msra.mxu0 0.0
    %596 = vmatpush.msra.mxu0 0.0
    %597 = vmatpush.msra.mxu0 0.0
    %598 = vmatpush.msra.mxu0 %v250
    %599 = vmatpush.msra.mxu0 %v249
    %600 = vmatpush.msra.mxu0 %v248
    %601 = vmatpush.msra.mxu0 %v247
    %602 = vmatmul.f32.gmra.mxu0 %v584
    %v603 = vpop.f32.mrf.mxu0
    %v604 = vadd.f32 0.0, %v603
    %605 = vdwg.mxu0
    %v606 = vadd.f32 %v306, %v604
    %v607 = vxor.u32 %v606, 2147483648
    %v608 = vmul.f32 %v607, 1.442695
    %v609 = vpow.pop %v608
    %v610 = vadd.f32 %v609, 1.0
    %v611 = vrcp.pop %v610
    %v612 = vmul.f32 %v610, %v611
    %v613 = vsub.f32 1.0, %v612
    %v614 = vmul.f32 %v611, %v613
    %v615 = vadd.f32 %v611, %v614
    %vm616 = vweird.f32 %v610
    %vm617 = vweird.f32 %v611
    %vm618 = vmor %vm616, %vm617
    %v619 = vsel %vm618, %v611, %v615
    %v620 = vand.u32 2147483647, %v610
    %vm621 = vcmp.eq.f32.partialorder %v620, 8.507059e+37
    %v622 = vand.u32 %v610, 2147483648
    %v623 = vor.u32 1.1754944e-38, %v622
    %v624 = vsel %vm621, %v623, %v619
    %v625 = vmul.f32 1.0, %v624
    %v626 = vtanh.pop %v606
    %v627 = vmul.f32 %v625, %v572
    %629 = vrot.lane.b32.xlu0 %v626, 64
    %v630 = vpop.permute.xlu0 %629
    %v632 = vmul.f32 %v625, %v630
    %634 = vrot.lane.b32.xlu0 %v632, 32
    %v635 = vpop.permute.xlu0 %634
    %v637 = vadd.f32 %v627, %v635
    %v638 = vtanh.pop %v637
    %640 = vrot.lane.b32.xlu0 %v638, 64
    %v641 = vpop.permute.xlu0 %640
    %v643 = vmul.f32 %v625, %v641
    %645 = vst [vmem:[#allocation1] ss:$4 sm:$0xff] %v643
    %v646 = vld.sshfl [vmem:[#allocation1] sm:$0xff pattern:$0x73625140]
    %647 = vrot.lane.b32.xlu0 %v646, 32
    %v648 = vpop.permute.xlu0 %647
    %v649 = vsel %vm322, %v648, 0
    %651 = vmatpush.msra.mxu0 0.0
    %652 = vmatpush.msra.mxu0 0.0
    %653 = vmatpush.msra.mxu0 0.0
    %654 = vmatpush.msra.mxu0 0.0
    %655 = vmatpush.msra.mxu0 0.0
    %656 = vmatpush.msra.mxu0 0.0
    %657 = vmatpush.msra.mxu0 0.0
    %658 = vmatpush.msra.mxu0 0.0
    %659 = vmatpush.msra.mxu0 0.0
    %660 = vmatpush.msra.mxu0 0.0
    %661 = vmatpush.msra.mxu0 0.0
    %662 = vmatpush.msra.mxu0 0.0
    %663 = vmatpush.msra.mxu0 %v250
    %664 = vmatpush.msra.mxu0 %v249
    %665 = vmatpush.msra.mxu0 %v248
    %666 = vmatpush.msra.mxu0 %v247
    %667 = vmatmul.f32.gmra.mxu0 %v649
    %v668 = vpop.f32.mrf.mxu0
    %v669 = vadd.f32 0.0, %v668
    %670 = vdwg.mxu0
    %v671 = vadd.f32 %v313, %v669
    %v672 = vxor.u32 %v671, 2147483648
    %v673 = vmul.f32 %v672, 1.442695
    %v674 = vpow.pop %v673
    %v675 = vadd.f32 %v674, 1.0
    %v676 = vrcp.pop %v675
    %v677 = vmul.f32 %v675, %v676
    %v678 = vsub.f32 1.0, %v677
    %v679 = vmul.f32 %v676, %v678
    %v680 = vadd.f32 %v676, %v679
    %vm681 = vweird.f32 %v675
    %vm682 = vweird.f32 %v676
    %vm683 = vmor %vm681, %vm682
    %v684 = vsel %vm683, %v676, %v680
    %v685 = vand.u32 2147483647, %v675
    %vm686 = vcmp.eq.f32.partialorder %v685, 8.507059e+37
    %v687 = vand.u32 %v675, 2147483648
    %v688 = vor.u32 1.1754944e-38, %v687
    %v689 = vsel %vm686, %v688, %v684
    %v690 = vmul.f32 1.0, %v689
    %v691 = vtanh.pop %v671
    %v692 = vmul.f32 %v690, %v637
    %694 = vrot.lane.b32.xlu0 %v691, 64
    %v695 = vpop.permute.xlu0 %694
    %v697 = vmul.f32 %v690, %v695
    %699 = vrot.lane.b32.xlu0 %v697, 32
    %v700 = vpop.permute.xlu0 %699
    %v702 = vadd.f32 %v692, %v700
    %v703 = vtanh.pop %v702
    %705 = vrot.lane.b32.xlu0 %v703, 64
    %v706 = vpop.permute.xlu0 %705
    %v708 = vmul.f32 %v690, %v706
    %710 = vst [vmem:[#allocation1] ss:$4 sm:$0xff] %v708
    %v711 = vld.sshfl [vmem:[#allocation1] sm:$0xff pattern:$0x73625140]
    %712 = vrot.lane.b32.xlu0 %v711, 32
    %v713 = vpop.permute.xlu0 %712
    %v714 = vsel %vm322, %v713, 0
    %716 = vmatpush.msra.mxu0 0.0
    %717 = vmatpush.msra.mxu0 0.0
    %718 = vmatpush.msra.mxu0 0.0
    %719 = vmatpush.msra.mxu0 0.0
    %720 = vmatpush.msra.mxu0 0.0
    %721 = vmatpush.msra.mxu0 0.0
    %722 = vmatpush.msra.mxu0 0.0
    %723 = vmatpush.msra.mxu0 0.0
    %724 = vmatpush.msra.mxu0 0.0
    %725 = vmatpush.msra.mxu0 0.0
    %726 = vmatpush.msra.mxu0 0.0
    %727 = vmatpush.msra.mxu0 0.0
    %728 = vmatpush.msra.mxu0 %v250
    %729 = vmatpush.msra.mxu0 %v249
    %730 = vmatpush.msra.mxu0 %v248
    %731 = vmatpush.msra.mxu0 %v247
    %732 = vmatmul.f32.gmra.mxu0 %v714
    %v733 = vpop.f32.mrf.mxu0
    %v734 = vadd.f32 0.0, %v733
    %735 = vdwg.mxu0
    %v736 = vadd.f32 %v314, %v734
    %v737 = vxor.u32 %v736, 2147483648
    %v738 = vmul.f32 %v737, 1.442695
    %v739 = vpow.pop %v738
    %v740 = vadd.f32 %v739, 1.0
    %v741 = vrcp.pop %v740
    %v742 = vmul.f32 %v740, %v741
    %v743 = vsub.f32 1.0, %v742
    %v744 = vmul.f32 %v741, %v743
    %v745 = vadd.f32 %v741, %v744
    %vm746 = vweird.f32 %v740
    %vm747 = vweird.f32 %v741
    %vm748 = vmor %vm746, %vm747
    %v749 = vsel %vm748, %v741, %v745
    %v750 = vand.u32 2147483647, %v740
    %vm751 = vcmp.eq.f32.partialorder %v750, 8.507059e+37
    %v752 = vand.u32 %v740, 2147483648
    %v753 = vor.u32 1.1754944e-38, %v752
    %v754 = vsel %vm751, %v753, %v749
    %v755 = vmul.f32 1.0, %v754
    %v756 = vtanh.pop %v736
    %v757 = vmul.f32 %v755, %v702
    %759 = vrot.lane.b32.xlu0 %v756, 64
    %v760 = vpop.permute.xlu0 %759
    %v762 = vmul.f32 %v755, %v760
    %764 = vrot.lane.b32.xlu0 %v762, 32
    %v765 = vpop.permute.xlu0 %764
    %v767 = vadd.f32 %v757, %v765
    %v768 = vtanh.pop %v767
    %770 = vrot.lane.b32.xlu0 %v768, 64
    %v771 = vpop.permute.xlu0 %770
    %v773 = vmul.f32 %v755, %v771
    %775 = vst [vmem:[#allocation1] ss:$4 sm:$0xff] %v773
    %v776 = vld.sshfl [vmem:[#allocation1] sm:$0xff pattern:$0x73625140]
    %777 = vrot.lane.b32.xlu0 %v776, 32
    %v778 = vpop.permute.xlu0 %777
    %v779 = vsel %vm322, %v778, 0
    %781 = vmatpush.msra.mxu0 0.0
    %782 = vmatpush.msra.mxu0 0.0
    %783 = vmatpush.msra.mxu0 0.0
    %784 = vmatpush.msra.mxu0 0.0
    %785 = vmatpush.msra.mxu0 0.0
    %786 = vmatpush.msra.mxu0 0.0
    %787 = vmatpush.msra.mxu0 0.0
    %788 = vmatpush.msra.mxu0 0.0
    %789 = vmatpush.msra.mxu0 0.0
    %790 = vmatpush.msra.mxu0 0.0
    %791 = vmatpush.msra.mxu0 0.0
    %792 = vmatpush.msra.mxu0 0.0
    %793 = vmatpush.msra.mxu0 %v250
    %794 = vmatpush.msra.mxu0 %v249
    %795 = vmatpush.msra.mxu0 %v248
    %796 = vmatpush.msra.mxu0 %v247
    %797 = vmatmul.f32.gmra.mxu0 %v779
    %v798 = vpop.f32.mrf.mxu0
    %v799 = vadd.f32 0.0, %v798
    %800 = vdwg.mxu0
    %v801 = vadd.f32 %v315, %v799
    %v802 = vxor.u32 %v801, 2147483648
    %v803 = vmul.f32 %v802, 1.442695
    %v804 = vpow.pop %v803
    %v805 = vadd.f32 %v804, 1.0
    %v806 = vrcp.pop %v805
    %v807 = vmul.f32 %v805, %v806
    %v808 = vsub.f32 1.0, %v807
    %v809 = vmul.f32 %v806, %v808
    %v810 = vadd.f32 %v806, %v809
    %vm811 = vweird.f32 %v805
    %vm812 = vweird.f32 %v806
    %vm813 = vmor %vm811, %vm812
    %v814 = vsel %vm813, %v806, %v810
    %v815 = vand.u32 2147483647, %v805
    %vm816 = vcmp.eq.f32.partialorder %v815, 8.507059e+37
    %v817 = vand.u32 %v805, 2147483648
    %v818 = vor.u32 1.1754944e-38, %v817
    %v819 = vsel %vm816, %v818, %v814
    %v820 = vmul.f32 1.0, %v819
    %v821 = vtanh.pop %v801
    %v822 = vmul.f32 %v820, %v767
    %824 = vrot.lane.b32.xlu0 %v821, 64
    %v825 = vpop.permute.xlu0 %824
    %v827 = vmul.f32 %v820, %v825
    %829 = vrot.lane.b32.xlu0 %v827, 32
    %v830 = vpop.permute.xlu0 %829
    %v832 = vadd.f32 %v822, %v830
    %v833 = vtanh.pop %v832
    %835 = vrot.lane.b32.xlu0 %v833, 64
    %v836 = vpop.permute.xlu0 %835
    %v838 = vmul.f32 %v820, %v836
    %v839 = vld [vmem:[%s5] sm:$0xff]
    %v840 = vld [vmem:[%s5 + $0x8] sm:$0xff]
    %v841 = vld [vmem:[%s5 + $0x10] sm:$0xff]
    %v842 = vld [vmem:[%s5 + $0x18] sm:$0xff]
    %v843 = vld [vmem:[%s6] sm:$0xff]
    %v844 = vld [vmem:[%s6 + $0x8] sm:$0xff]
    %v845 = vld [vmem:[%s6 + $0x10] sm:$0xff]
    %v846 = vld [vmem:[%s6 + $0x18] sm:$0xff]
    %v847 = vld [vmem:[#allocation7] sm:$0x1]
    %v849 = vperm.slane %v847, 0
    %852 = vst [vmem:[#allocation1] ss:$4 sm:$0xff] %v383
    %s853 = scalar_lea.vmem [#allocation1], 1
    %854 = vst [vmem:[%s853] ss:$4 sm:$0xff] %v448
    %s855 = scalar_lea.vmem [#allocation1], 2
    %856 = vst [vmem:[%s855] ss:$4 sm:$0xff] %v513
    %s857 = scalar_lea.vmem [#allocation1], 3
    %858 = vst [vmem:[%s857] ss:$4 sm:$0xff] %v578
    %s859 = scalar_lea.vmem [#allocation1], 32
    %860 = vst [vmem:[%s859] ss:$4 sm:$0xff] %v643
    %s861 = scalar_lea.vmem [#allocation1], 33
    %862 = vst [vmem:[%s861] ss:$4 sm:$0xff] %v708
    %s863 = scalar_lea.vmem [#allocation1], 34
    %864 = vst [vmem:[%s863] ss:$4 sm:$0xff] %v773
    %s865 = scalar_lea.vmem [#allocation1], 35
    %866 = vst [vmem:[%s865] ss:$4 sm:$0xff] %v838
    %v867 = vld.sshfl [vmem:[#allocation1] sm:$0xff pattern:$0x73625140]
    %v868 = vld.sshfl [vmem:[#allocation1 + $0x20] sm:$0xff pattern:$0x73625140]
    %869 = vrot.lane.b32.xlu0 %v867, 32
    %v870 = vpop.permute.xlu0 %869
    %871 = vrot.lane.b32.xlu0 %v868, 32
    %v872 = vpop.permute.xlu0 %871
    %v873 = vsel %vm322, %v870, 0
    %v875 = vsel %vm322, %v872, 0
    %877 = vmatpush.msra.mxu0 0.0
    %878 = vmatpush.msra.mxu0 0.0
    %879 = vmatpush.msra.mxu0 0.0
    %880 = vmatpush.msra.mxu0 0.0
    %881 = vmatpush.msra.mxu0 0.0
    %882 = vmatpush.msra.mxu0 0.0
    %883 = vmatpush.msra.mxu0 0.0
    %884 = vmatpush.msra.mxu0 0.0
    %885 = vmatpush.msra.mxu0 0.0
    %886 = vmatpush.msra.mxu0 0.0
    %887 = vmatpush.msra.mxu0 0.0
    %888 = vmatpush.msra.mxu0 0.0
    %889 = vmatpush.msra.mxu0 %v842
    %890 = vmatpush.msra.mxu0 %v841
    %891 = vmatpush.msra.mxu0 %v840
    %892 = vmatpush.msra.mxu0 %v839
    %893 = vmatmul.f32.gmra.mxu0 %v873
    %v894 = vpop.f32.mrf.mxu0
    %v895 = vadd.f32 %v849, %v894
    %896 = vmatmul.f32.gmra.mxu0 %v875
    %v897 = vpop.f32.mrf.mxu0
    %v898 = vadd.f32 %v849, %v897
    %899 = vdwg.mxu0
    %v902 = vrot.slane %v895, 2
    %v903 = vrot.slane %v895, 4
    %v904 = vrot.slane %v895, 6
    %v905 = vrot.slane %v898, 2
    %v906 = vrot.slane %v898, 4
    %v907 = vrot.slane %v898, 6
    %914 = vmatpush.msra.mxu0 0.0
    %915 = vmatpush.msra.mxu0 0.0
    %916 = vmatpush.msra.mxu0 0.0
    %917 = vmatpush.msra.mxu0 0.0
    %918 = vmatpush.msra.mxu0 0.0
    %919 = vmatpush.msra.mxu0 0.0
    %920 = vmatpush.msra.mxu0 0.0
    %921 = vmatpush.msra.mxu0 0.0
    %922 = vmatpush.msra.mxu0 0.0
    %923 = vmatpush.msra.mxu0 0.0
    %924 = vmatpush.msra.mxu0 0.0
    %925 = vmatpush.msra.mxu0 0.0
    %926 = vmatpush.msra.mxu0 %v846
    %927 = vmatpush.msra.mxu0 %v845
    %928 = vmatpush.msra.mxu0 %v844
    %929 = vmatpush.msra.mxu0 %v843
    %930 = vmatmul.f32.gmra.mxu0 %v324
    %v931 = vpop.f32.mrf.mxu0
    %v932 = vadd.f32 0.0, %v931
    %933 = vdwg.mxu0
    %v934 = vadd.f32 %v895, %v932
    %v935 = vxor.u32 %v934, 2147483648
    %v936 = vmul.f32 %v935, 1.442695
    %v937 = vpow.pop %v936
    %v938 = vadd.f32 %v937, 1.0
    %v939 = vrcp.pop %v938
    %v940 = vmul.f32 %v938, %v939
    %v941 = vsub.f32 1.0, %v940
    %v942 = vmul.f32 %v939, %v941
    %v943 = vadd.f32 %v939, %v942
    %vm944 = vweird.f32 %v938
    %vm945 = vweird.f32 %v939
    %vm946 = vmor %vm944, %vm945
    %v947 = vsel %vm946, %v939, %v943
    %v948 = vand.u32 2147483647, %v938
    %vm949 = vcmp.eq.f32.partialorder %v948, 8.507059e+37
    %v950 = vand.u32 %v938, 2147483648
    %v951 = vor.u32 1.1754944e-38, %v950
    %v952 = vsel %vm949, %v951, %v947
    %v953 = vmul.f32 1.0, %v952
    %v954 = vtanh.pop %v934
    %v955 = vmul.f32 %v953, 0.0
    %957 = vrot.lane.b32.xlu0 %v954, 64
    %v958 = vpop.permute.xlu0 %957
    %v960 = vmul.f32 %v953, %v958
    %962 = vrot.lane.b32.xlu0 %v960, 32
    %v963 = vpop.permute.xlu0 %962
    %v965 = vadd.f32 %v955, %v963
    %v966 = vtanh.pop %v965
    %968 = vrot.lane.b32.xlu0 %v966, 64
    %v969 = vpop.permute.xlu0 %968
    %v971 = vmul.f32 %v953, %v969
    %973 = vst [vmem:[#allocation1] ss:$4 sm:$0xff] %v971
    %v974 = vld.sshfl [vmem:[#allocation1] sm:$0xff pattern:$0x73625140]
    %975 = vrot.lane.b32.xlu0 %v974, 32
    %v976 = vpop.permute.xlu0 %975
    %v977 = vsel %vm322, %v976, 0
    %979 = vmatpush.msra.mxu0 0.0
    %980 = vmatpush.msra.mxu0 0.0
    %981 = vmatpush.msra.mxu0 0.0
    %982 = vmatpush.msra.mxu0 0.0
    %983 = vmatpush.msra.mxu0 0.0
    %984 = vmatpush.msra.mxu0 0.0
    %985 = vmatpush.msra.mxu0 0.0
    %986 = vmatpush.msra.mxu0 0.0
    %987 = vmatpush.msra.mxu0 0.0
    %988 = vmatpush.msra.mxu0 0.0
    %989 = vmatpush.msra.mxu0 0.0
    %990 = vmatpush.msra.mxu0 0.0
    %991 = vmatpush.msra.mxu0 %v846
    %992 = vmatpush.msra.mxu0 %v845
    %993 = vmatpush.msra.mxu0 %v844
    %994 = vmatpush.msra.mxu0 %v843
    %995 = vmatmul.f32.gmra.mxu0 %v977
    %v996 = vpop.f32.mrf.mxu0
    %v997 = vadd.f32 0.0, %v996
    %998 = vdwg.mxu0
    %v999 = vadd.f32 %v902, %v997
    %v1000 = vxor.u32 %v999, 2147483648
    %v1001 = vmul.f32 %v1000, 1.442695
    %v1002 = vpow.pop %v1001
    %v1003 = vadd.f32 %v1002, 1.0
    %v1004 = vrcp.pop %v1003
    %v1005 = vmul.f32 %v1003, %v1004
    %v1006 = vsub.f32 1.0, %v1005
    %v1007 = vmul.f32 %v1004, %v1006
    %v1008 = vadd.f32 %v1004, %v1007
    %vm1009 = vweird.f32 %v1003
    %vm1010 = vweird.f32 %v1004
    %vm1011 = vmor %vm1009, %vm1010
    %v1012 = vsel %vm1011, %v1004, %v1008
    %v1013 = vand.u32 2147483647, %v1003
    %vm1014 = vcmp.eq.f32.partialorder %v1013, 8.507059e+37
    %v1015 = vand.u32 %v1003, 2147483648
    %v1016 = vor.u32 1.1754944e-38, %v1015
    %v1017 = vsel %vm1014, %v1016, %v1012
    %v1018 = vmul.f32 1.0, %v1017
    %v1019 = vtanh.pop %v999
    %v1020 = vmul.f32 %v1018, %v965
    %1022 = vrot.lane.b32.xlu0 %v1019, 64
    %v1023 = vpop.permute.xlu0 %1022
    %v1025 = vmul.f32 %v1018, %v1023
    %1027 = vrot.lane.b32.xlu0 %v1025, 32
    %v1028 = vpop.permute.xlu0 %1027
    %v1030 = vadd.f32 %v1020, %v1028
    %v1031 = vtanh.pop %v1030
    %1033 = vrot.lane.b32.xlu0 %v1031, 64
    %v1034 = vpop.permute.xlu0 %1033
    %v1036 = vmul.f32 %v1018, %v1034
    %1038 = vst [vmem:[#allocation1] ss:$4 sm:$0xff] %v1036
    %v1039 = vld.sshfl [vmem:[#allocation1] sm:$0xff pattern:$0x73625140]
    %1040 = vrot.lane.b32.xlu0 %v1039, 32
    %v1041 = vpop.permute.xlu0 %1040
    %v1042 = vsel %vm322, %v1041, 0
    %1044 = vmatpush.msra.mxu0 0.0
    %1045 = vmatpush.msra.mxu0 0.0
    %1046 = vmatpush.msra.mxu0 0.0
    %1047 = vmatpush.msra.mxu0 0.0
    %1048 = vmatpush.msra.mxu0 0.0
    %1049 = vmatpush.msra.mxu0 0.0
    %1050 = vmatpush.msra.mxu0 0.0
    %1051 = vmatpush.msra.mxu0 0.0
    %1052 = vmatpush.msra.mxu0 0.0
    %1053 = vmatpush.msra.mxu0 0.0
    %1054 = vmatpush.msra.mxu0 0.0
    %1055 = vmatpush.msra.mxu0 0.0
    %1056 = vmatpush.msra.mxu0 %v846
    %1057 = vmatpush.msra.mxu0 %v845
    %1058 = vmatpush.msra.mxu0 %v844
    %1059 = vmatpush.msra.mxu0 %v843
    %1060 = vmatmul.f32.gmra.mxu0 %v1042
    %v1061 = vpop.f32.mrf.mxu0
    %v1062 = vadd.f32 0.0, %v1061
    %1063 = vdwg.mxu0
    %v1064 = vadd.f32 %v903, %v1062
    %v1065 = vxor.u32 %v1064, 2147483648
    %v1066 = vmul.f32 %v1065, 1.442695
    %v1067 = vpow.pop %v1066
    %v1068 = vadd.f32 %v1067, 1.0
    %v1069 = vrcp.pop %v1068
    %v1070 = vmul.f32 %v1068, %v1069
    %v1071 = vsub.f32 1.0, %v1070
    %v1072 = vmul.f32 %v1069, %v1071
    %v1073 = vadd.f32 %v1069, %v1072
    %vm1074 = vweird.f32 %v1068
    %vm1075 = vweird.f32 %v1069
    %vm1076 = vmor %vm1074, %vm1075
    %v1077 = vsel %vm1076, %v1069, %v1073
    %v1078 = vand.u32 2147483647, %v1068
    %vm1079 = vcmp.eq.f32.partialorder %v1078, 8.507059e+37
    %v1080 = vand.u32 %v1068, 2147483648
    %v1081 = vor.u32 1.1754944e-38, %v1080
    %v1082 = vsel %vm1079, %v1081, %v1077
    %v1083 = vmul.f32 1.0, %v1082
    %v1084 = vtanh.pop %v1064
    %v1085 = vmul.f32 %v1083, %v1030
    %1087 = vrot.lane.b32.xlu0 %v1084, 64
    %v1088 = vpop.permute.xlu0 %1087
    %v1090 = vmul.f32 %v1083, %v1088
    %1092 = vrot.lane.b32.xlu0 %v1090, 32
    %v1093 = vpop.permute.xlu0 %1092
    %v1095 = vadd.f32 %v1085, %v1093
    %v1096 = vtanh.pop %v1095
    %1098 = vrot.lane.b32.xlu0 %v1096, 64
    %v1099 = vpop.permute.xlu0 %1098
    %v1101 = vmul.f32 %v1083, %v1099
    %1103 = vst [vmem:[#allocation1] ss:$4 sm:$0xff] %v1101
    %v1104 = vld.sshfl [vmem:[#allocation1] sm:$0xff pattern:$0x73625140]
    %1105 = vrot.lane.b32.xlu0 %v1104, 32
    %v1106 = vpop.permute.xlu0 %1105
    %v1107 = vsel %vm322, %v1106, 0
    %1109 = vmatpush.msra.mxu0 0.0
    %1110 = vmatpush.msra.mxu0 0.0
    %1111 = vmatpush.msra.mxu0 0.0
    %1112 = vmatpush.msra.mxu0 0.0
    %1113 = vmatpush.msra.mxu0 0.0
    %1114 = vmatpush.msra.mxu0 0.0
    %1115 = vmatpush.msra.mxu0 0.0
    %1116 = vmatpush.msra.mxu0 0.0
    %1117 = vmatpush.msra.mxu0 0.0
    %1118 = vmatpush.msra.mxu0 0.0
    %1119 = vmatpush.msra.mxu0 0.0
    %1120 = vmatpush.msra.mxu0 0.0
    %1121 = vmatpush.msra.mxu0 %v846
    %1122 = vmatpush.msra.mxu0 %v845
    %1123 = vmatpush.msra.mxu0 %v844
    %1124 = vmatpush.msra.mxu0 %v843
    %1125 = vmatmul.f32.gmra.mxu0 %v1107
    %v1126 = vpop.f32.mrf.mxu0
    %v1127 = vadd.f32 0.0, %v1126
    %1128 = vdwg.mxu0
    %v1129 = vadd.f32 %v904, %v1127
    %v1130 = vxor.u32 %v1129, 2147483648
    %v1131 = vmul.f32 %v1130, 1.442695
    %v1132 = vpow.pop %v1131
    %v1133 = vadd.f32 %v1132, 1.0
    %v1134 = vrcp.pop %v1133
    %v1135 = vmul.f32 %v1133, %v1134
    %v1136 = vsub.f32 1.0, %v1135
    %v1137 = vmul.f32 %v1134, %v1136
    %v1138 = vadd.f32 %v1134, %v1137
    %vm1139 = vweird.f32 %v1133
    %vm1140 = vweird.f32 %v1134
    %vm1141 = vmor %vm1139, %vm1140
    %v1142 = vsel %vm1141, %v1134, %v1138
    %v1143 = vand.u32 2147483647, %v1133
    %vm1144 = vcmp.eq.f32.partialorder %v1143, 8.507059e+37
    %v1145 = vand.u32 %v1133, 2147483648
    %v1146 = vor.u32 1.1754944e-38, %v1145
    %v1147 = vsel %vm1144, %v1146, %v1142
    %v1148 = vmul.f32 1.0, %v1147
    %v1149 = vtanh.pop %v1129
    %v1150 = vmul.f32 %v1148, %v1095
    %1152 = vrot.lane.b32.xlu0 %v1149, 64
    %v1153 = vpop.permute.xlu0 %1152
    %v1155 = vmul.f32 %v1148, %v1153
    %1157 = vrot.lane.b32.xlu0 %v1155, 32
    %v1158 = vpop.permute.xlu0 %1157
    %v1160 = vadd.f32 %v1150, %v1158
    %v1161 = vtanh.pop %v1160
    %1163 = vrot.lane.b32.xlu0 %v1161, 64
    %v1164 = vpop.permute.xlu0 %1163
    %v1166 = vmul.f32 %v1148, %v1164
    %1168 = vst [vmem:[#allocation1] ss:$4 sm:$0xff] %v1166
    %v1169 = vld.sshfl [vmem:[#allocation1] sm:$0xff pattern:$0x73625140]
    %1170 = vrot.lane.b32.xlu0 %v1169, 32
    %v1171 = vpop.permute.xlu0 %1170
    %v1172 = vsel %vm322, %v1171, 0
    %1174 = vmatpush.msra.mxu0 0.0
    %1175 = vmatpush.msra.mxu0 0.0
    %1176 = vmatpush.msra.mxu0 0.0
    %1177 = vmatpush.msra.mxu0 0.0
    %1178 = vmatpush.msra.mxu0 0.0
    %1179 = vmatpush.msra.mxu0 0.0
    %1180 = vmatpush.msra.mxu0 0.0
    %1181 = vmatpush.msra.mxu0 0.0
    %1182 = vmatpush.msra.mxu0 0.0
    %1183 = vmatpush.msra.mxu0 0.0
    %1184 = vmatpush.msra.mxu0 0.0
    %1185 = vmatpush.msra.mxu0 0.0
    %1186 = vmatpush.msra.mxu0 %v846
    %1187 = vmatpush.msra.mxu0 %v845
    %1188 = vmatpush.msra.mxu0 %v844
    %1189 = vmatpush.msra.mxu0 %v843
    %1190 = vmatmul.f32.gmra.mxu0 %v1172
    %v1191 = vpop.f32.mrf.mxu0
    %v1192 = vadd.f32 0.0, %v1191
    %1193 = vdwg.mxu0
    %v1194 = vadd.f32 %v898, %v1192
    %v1195 = vxor.u32 %v1194, 2147483648
    %v1196 = vmul.f32 %v1195, 1.442695
    %v1197 = vpow.pop %v1196
    %v1198 = vadd.f32 %v1197, 1.0
    %v1199 = vrcp.pop %v1198
    %v1200 = vmul.f32 %v1198, %v1199
    %v1201 = vsub.f32 1.0, %v1200
    %v1202 = vmul.f32 %v1199, %v1201
    %v1203 = vadd.f32 %v1199, %v1202
    %vm1204 = vweird.f32 %v1198
    %vm1205 = vweird.f32 %v1199
    %vm1206 = vmor %vm1204, %vm1205
    %v1207 = vsel %vm1206, %v1199, %v1203
    %v1208 = vand.u32 2147483647, %v1198
    %vm1209 = vcmp.eq.f32.partialorder %v1208, 8.507059e+37
    %v1210 = vand.u32 %v1198, 2147483648
    %v1211 = vor.u32 1.1754944e-38, %v1210
    %v1212 = vsel %vm1209, %v1211, %v1207
    %v1213 = vmul.f32 1.0, %v1212
    %v1214 = vtanh.pop %v1194
    %v1215 = vmul.f32 %v1213, %v1160
    %1217 = vrot.lane.b32.xlu0 %v1214, 64
    %v1218 = vpop.permute.xlu0 %1217
    %v1220 = vmul.f32 %v1213, %v1218
    %1222 = vrot.lane.b32.xlu0 %v1220, 32
    %v1223 = vpop.permute.xlu0 %1222
    %v1225 = vadd.f32 %v1215, %v1223
    %v1226 = vtanh.pop %v1225
    %1228 = vrot.lane.b32.xlu0 %v1226, 64
    %v1229 = vpop.permute.xlu0 %1228
    %v1231 = vmul.f32 %v1213, %v1229
    %1233 = vst [vmem:[#allocation1] ss:$4 sm:$0xff] %v1231
    %v1234 = vld.sshfl [vmem:[#allocation1] sm:$0xff pattern:$0x73625140]
    %1235 = vrot.lane.b32.xlu0 %v1234, 32
    %v1236 = vpop.permute.xlu0 %1235
    %v1237 = vsel %vm322, %v1236, 0
    %1239 = vmatpush.msra.mxu0 0.0
    %1240 = vmatpush.msra.mxu0 0.0
    %1241 = vmatpush.msra.mxu0 0.0
    %1242 = vmatpush.msra.mxu0 0.0
    %1243 = vmatpush.msra.mxu0 0.0
    %1244 = vmatpush.msra.mxu0 0.0
    %1245 = vmatpush.msra.mxu0 0.0
    %1246 = vmatpush.msra.mxu0 0.0
    %1247 = vmatpush.msra.mxu0 0.0
    %1248 = vmatpush.msra.mxu0 0.0
    %1249 = vmatpush.msra.mxu0 0.0
    %1250 = vmatpush.msra.mxu0 0.0
    %1251 = vmatpush.msra.mxu0 %v846
    %1252 = vmatpush.msra.mxu0 %v845
    %1253 = vmatpush.msra.mxu0 %v844
    %1254 = vmatpush.msra.mxu0 %v843
    %1255 = vmatmul.f32.gmra.mxu0 %v1237
    %v1256 = vpop.f32.mrf.mxu0
    %v1257 = vadd.f32 0.0, %v1256
    %1258 = vdwg.mxu0
    %v1259 = vadd.f32 %v905, %v1257
    %v1260 = vxor.u32 %v1259, 2147483648
    %v1261 = vmul.f32 %v1260, 1.442695
    %v1262 = vpow.pop %v1261
    %v1263 = vadd.f32 %v1262, 1.0
    %v1264 = vrcp.pop %v1263
    %v1265 = vmul.f32 %v1263, %v1264
    %v1266 = vsub.f32 1.0, %v1265
    %v1267 = vmul.f32 %v1264, %v1266
    %v1268 = vadd.f32 %v1264, %v1267
    %vm1269 = vweird.f32 %v1263
    %vm1270 = vweird.f32 %v1264
    %vm1271 = vmor %vm1269, %vm1270
    %v1272 = vsel %vm1271, %v1264, %v1268
    %v1273 = vand.u32 2147483647, %v1263
    %vm1274 = vcmp.eq.f32.partialorder %v1273, 8.507059e+37
    %v1275 = vand.u32 %v1263, 2147483648
    %v1276 = vor.u32 1.1754944e-38, %v1275
    %v1277 = vsel %vm1274, %v1276, %v1272
    %v1278 = vmul.f32 1.0, %v1277
    %v1279 = vtanh.pop %v1259
    %v1280 = vmul.f32 %v1278, %v1225
    %1282 = vrot.lane.b32.xlu0 %v1279, 64
    %v1283 = vpop.permute.xlu0 %1282
    %v1285 = vmul.f32 %v1278, %v1283
    %1287 = vrot.lane.b32.xlu0 %v1285, 32
    %v1288 = vpop.permute.xlu0 %1287
    %v1290 = vadd.f32 %v1280, %v1288
    %v1291 = vtanh.pop %v1290
    %1293 = vrot.lane.b32.xlu0 %v1291, 64
    %v1294 = vpop.permute.xlu0 %1293
    %v1296 = vmul.f32 %v1278, %v1294
    %1298 = vst [vmem:[#allocation1] ss:$4 sm:$0xff] %v1296
    %v1299 = vld.sshfl [vmem:[#allocation1] sm:$0xff pattern:$0x73625140]
    %1300 = vrot.lane.b32.xlu0 %v1299, 32
    %v1301 = vpop.permute.xlu0 %1300
    %v1302 = vsel %vm322, %v1301, 0
    %1304 = vmatpush.msra.mxu0 0.0
    %1305 = vmatpush.msra.mxu0 0.0
    %1306 = vmatpush.msra.mxu0 0.0
    %1307 = vmatpush.msra.mxu0 0.0
    %1308 = vmatpush.msra.mxu0 0.0
    %1309 = vmatpush.msra.mxu0 0.0
    %1310 = vmatpush.msra.mxu0 0.0
    %1311 = vmatpush.msra.mxu0 0.0
    %1312 = vmatpush.msra.mxu0 0.0
    %1313 = vmatpush.msra.mxu0 0.0
    %1314 = vmatpush.msra.mxu0 0.0
    %1315 = vmatpush.msra.mxu0 0.0
    %1316 = vmatpush.msra.mxu0 %v846
    %1317 = vmatpush.msra.mxu0 %v845
    %1318 = vmatpush.msra.mxu0 %v844
    %1319 = vmatpush.msra.mxu0 %v843
    %1320 = vmatmul.f32.gmra.mxu0 %v1302
    %v1321 = vpop.f32.mrf.mxu0
    %v1322 = vadd.f32 0.0, %v1321
    %1323 = vdwg.mxu0
    %v1324 = vadd.f32 %v906, %v1322
    %v1325 = vxor.u32 %v1324, 2147483648
    %v1326 = vmul.f32 %v1325, 1.442695
    %v1327 = vpow.pop %v1326
    %v1328 = vadd.f32 %v1327, 1.0
    %v1329 = vrcp.pop %v1328
    %v1330 = vmul.f32 %v1328, %v1329
    %v1331 = vsub.f32 1.0, %v1330
    %v1332 = vmul.f32 %v1329, %v1331
    %v1333 = vadd.f32 %v1329, %v1332
    %vm1334 = vweird.f32 %v1328
    %vm1335 = vweird.f32 %v1329
    %vm1336 = vmor %vm1334, %vm1335
    %v1337 = vsel %vm1336, %v1329, %v1333
    %v1338 = vand.u32 2147483647, %v1328
    %vm1339 = vcmp.eq.f32.partialorder %v1338, 8.507059e+37
    %v1340 = vand.u32 %v1328, 2147483648
    %v1341 = vor.u32 1.1754944e-38, %v1340
    %v1342 = vsel %vm1339, %v1341, %v1337
    %v1343 = vmul.f32 1.0, %v1342
    %v1344 = vtanh.pop %v1324
    %v1345 = vmul.f32 %v1343, %v1290
    %1347 = vrot.lane.b32.xlu0 %v1344, 64
    %v1348 = vpop.permute.xlu0 %1347
    %v1350 = vmul.f32 %v1343, %v1348
    %1352 = vrot.lane.b32.xlu0 %v1350, 32
    %v1353 = vpop.permute.xlu0 %1352
    %v1355 = vadd.f32 %v1345, %v1353
    %v1356 = vtanh.pop %v1355
    %1358 = vrot.lane.b32.xlu0 %v1356, 64
    %v1359 = vpop.permute.xlu0 %1358
    %v1361 = vmul.f32 %v1343, %v1359
    %1363 = vst [vmem:[#allocation1] ss:$4 sm:$0xff] %v1361
    %v1364 = vld.sshfl [vmem:[#allocation1] sm:$0xff pattern:$0x73625140]
    %1365 = vrot.lane.b32.xlu0 %v1364, 32
    %v1366 = vpop.permute.xlu0 %1365
    %v1367 = vsel %vm322, %v1366, 0
    %1369 = vmatpush.msra.mxu0 0.0
    %1370 = vmatpush.msra.mxu0 0.0
    %1371 = vmatpush.msra.mxu0 0.0
    %1372 = vmatpush.msra.mxu0 0.0
    %1373 = vmatpush.msra.mxu0 0.0
    %1374 = vmatpush.msra.mxu0 0.0
    %1375 = vmatpush.msra.mxu0 0.0
    %1376 = vmatpush.msra.mxu0 0.0
    %1377 = vmatpush.msra.mxu0 0.0
    %1378 = vmatpush.msra.mxu0 0.0
    %1379 = vmatpush.msra.mxu0 0.0
    %1380 = vmatpush.msra.mxu0 0.0
    %1381 = vmatpush.msra.mxu0 %v846
    %1382 = vmatpush.msra.mxu0 %v845
    %1383 = vmatpush.msra.mxu0 %v844
    %1384 = vmatpush.msra.mxu0 %v843
    %1385 = vmatmul.f32.gmra.mxu0 %v1367
    %v1386 = vpop.f32.mrf.mxu0
    %v1387 = vadd.f32 0.0, %v1386
    %1388 = vdwg.mxu0
    %v1389 = vadd.f32 %v907, %v1387
    %v1390 = vxor.u32 %v1389, 2147483648
    %v1391 = vmul.f32 %v1390, 1.442695
    %v1392 = vpow.pop %v1391
    %v1393 = vadd.f32 %v1392, 1.0
    %v1394 = vrcp.pop %v1393
    %v1395 = vmul.f32 %v1393, %v1394
    %v1396 = vsub.f32 1.0, %v1395
    %v1397 = vmul.f32 %v1394, %v1396
    %v1398 = vadd.f32 %v1394, %v1397
    %vm1399 = vweird.f32 %v1393
    %vm1400 = vweird.f32 %v1394
    %vm1401 = vmor %vm1399, %vm1400
    %v1402 = vsel %vm1401, %v1394, %v1398
    %v1403 = vand.u32 2147483647, %v1393
    %vm1404 = vcmp.eq.f32.partialorder %v1403, 8.507059e+37
    %v1405 = vand.u32 %v1393, 2147483648
    %v1406 = vor.u32 1.1754944e-38, %v1405
    %v1407 = vsel %vm1404, %v1406, %v1402
    %v1408 = vmul.f32 1.0, %v1407
    %v1409 = vtanh.pop %v1389
    %v1410 = vmul.f32 %v1408, %v1355
    %1412 = vrot.lane.b32.xlu0 %v1409, 64
    %v1413 = vpop.permute.xlu0 %1412
    %v1415 = vmul.f32 %v1408, %v1413
    %1417 = vrot.lane.b32.xlu0 %v1415, 32
    %v1418 = vpop.permute.xlu0 %1417
    %v1420 = vadd.f32 %v1410, %v1418
    %v1421 = vtanh.pop %v1420
    %1423 = vrot.lane.b32.xlu0 %v1421, 64
    %v1424 = vpop.permute.xlu0 %1423
    %v1426 = vmul.f32 %v1408, %v1424
    %v1427 = vld [vmem:[%s8] sm:$0xff]
    %v1428 = vld [vmem:[%s8 + $0x8] sm:$0xff]
    %v1429 = vld [vmem:[%s8 + $0x10] sm:$0xff]
    %v1430 = vld [vmem:[%s8 + $0x18] sm:$0xff]
    %v1431 = vld [vmem:[#allocation8] sm:$0xff]
    %v1432 = vld [vmem:[#allocation8 + $0x8] sm:$0xff]
    %v1433 = vld [vmem:[#allocation8 + $0x10] sm:$0xff]
    %v1434 = vld [vmem:[#allocation8 + $0x18] sm:$0xff]
    %v1435 = vld [vmem:[#allocation10] sm:$0x1]
    %v1437 = vperm.slane %v1435, 0
    %1440 = vst [vmem:[#allocation1] ss:$4 sm:$0xff] %v971
    %s1441 = scalar_lea.vmem [#allocation1], 1
    %1442 = vst [vmem:[%s1441] ss:$4 sm:$0xff] %v1036
    %s1443 = scalar_lea.vmem [#allocation1], 2
    %1444 = vst [vmem:[%s1443] ss:$4 sm:$0xff] %v1101
    %s1445 = scalar_lea.vmem [#allocation1], 3
    %1446 = vst [vmem:[%s1445] ss:$4 sm:$0xff] %v1166
    %s1447 = scalar_lea.vmem [#allocation1], 32
    %1448 = vst [vmem:[%s1447] ss:$4 sm:$0xff] %v1231
    %s1449 = scalar_lea.vmem [#allocation1], 33
    %1450 = vst [vmem:[%s1449] ss:$4 sm:$0xff] %v1296
    %s1451 = scalar_lea.vmem [#allocation1], 34
    %1452 = vst [vmem:[%s1451] ss:$4 sm:$0xff] %v1361
    %s1453 = scalar_lea.vmem [#allocation1], 35
    %1454 = vst [vmem:[%s1453] ss:$4 sm:$0xff] %v1426
    %v1455 = vld.sshfl [vmem:[#allocation1] sm:$0xff pattern:$0x73625140]
    %v1456 = vld.sshfl [vmem:[#allocation1 + $0x20] sm:$0xff pattern:$0x73625140]
    %1457 = vrot.lane.b32.xlu0 %v1455, 32
    %v1458 = vpop.permute.xlu0 %1457
    %1459 = vrot.lane.b32.xlu0 %v1456, 32
    %v1460 = vpop.permute.xlu0 %1459
    %v1461 = vsel %vm322, %v1458, 0
    %v1463 = vsel %vm322, %v1460, 0
    %1465 = vmatpush.msra.mxu0 0.0
    %1466 = vmatpush.msra.mxu0 0.0
    %1467 = vmatpush.msra.mxu0 0.0
    %1468 = vmatpush.msra.mxu0 0.0
    %1469 = vmatpush.msra.mxu0 0.0
    %1470 = vmatpush.msra.mxu0 0.0
    %1471 = vmatpush.msra.mxu0 0.0
    %1472 = vmatpush.msra.mxu0 0.0
    %1473 = vmatpush.msra.mxu0 0.0
    %1474 = vmatpush.msra.mxu0 0.0
    %1475 = vmatpush.msra.mxu0 0.0
    %1476 = vmatpush.msra.mxu0 0.0
    %1477 = vmatpush.msra.mxu0 %v1430
    %1478 = vmatpush.msra.mxu0 %v1429
    %1479 = vmatpush.msra.mxu0 %v1428
    %1480 = vmatpush.msra.mxu0 %v1427
    %1481 = vmatmul.f32.gmra.mxu0 %v1461
    %v1482 = vpop.f32.mrf.mxu0
    %v1483 = vadd.f32 %v1437, %v1482
    %1484 = vmatmul.f32.gmra.mxu0 %v1463
    %v1485 = vpop.f32.mrf.mxu0
    %v1486 = vadd.f32 %v1437, %v1485
    %1487 = vdwg.mxu0
    %v1490 = vrot.slane %v1483, 2
    %v1491 = vrot.slane %v1483, 4
    %v1492 = vrot.slane %v1483, 6
    %v1493 = vrot.slane %v1486, 2
    %v1494 = vrot.slane %v1486, 4
    %v1495 = vrot.slane %v1486, 6
    %1502 = vmatpush.msra.mxu0 0.0
    %1503 = vmatpush.msra.mxu0 0.0
    %1504 = vmatpush.msra.mxu0 0.0
    %1505 = vmatpush.msra.mxu0 0.0
    %1506 = vmatpush.msra.mxu0 0.0
    %1507 = vmatpush.msra.mxu0 0.0
    %1508 = vmatpush.msra.mxu0 0.0
    %1509 = vmatpush.msra.mxu0 0.0
    %1510 = vmatpush.msra.mxu0 0.0
    %1511 = vmatpush.msra.mxu0 0.0
    %1512 = vmatpush.msra.mxu0 0.0
    %1513 = vmatpush.msra.mxu0 0.0
    %1514 = vmatpush.msra.mxu0 %v1434
    %1515 = vmatpush.msra.mxu0 %v1433
    %1516 = vmatpush.msra.mxu0 %v1432
    %1517 = vmatpush.msra.mxu0 %v1431
    %1518 = vmatmul.f32.gmra.mxu0 %v324
    %v1519 = vpop.f32.mrf.mxu0
    %v1520 = vadd.f32 0.0, %v1519
    %1521 = vdwg.mxu0
    %v1522 = vadd.f32 %v1483, %v1520
    %v1523 = vxor.u32 %v1522, 2147483648
    %v1524 = vmul.f32 %v1523, 1.442695
    %v1525 = vpow.pop %v1524
    %v1526 = vadd.f32 %v1525, 1.0
    %v1527 = vrcp.pop %v1526
    %v1528 = vmul.f32 %v1526, %v1527
    %v1529 = vsub.f32 1.0, %v1528
    %v1530 = vmul.f32 %v1527, %v1529
    %v1531 = vadd.f32 %v1527, %v1530
    %vm1532 = vweird.f32 %v1526
    %vm1533 = vweird.f32 %v1527
    %vm1534 = vmor %vm1532, %vm1533
    %v1535 = vsel %vm1534, %v1527, %v1531
    %v1536 = vand.u32 2147483647, %v1526
    %vm1537 = vcmp.eq.f32.partialorder %v1536, 8.507059e+37
    %v1538 = vand.u32 %v1526, 2147483648
    %v1539 = vor.u32 1.1754944e-38, %v1538
    %v1540 = vsel %vm1537, %v1539, %v1535
    %v1541 = vmul.f32 1.0, %v1540
    %v1542 = vtanh.pop %v1522
    %v1543 = vmul.f32 %v1541, 0.0
    %1545 = vrot.lane.b32.xlu0 %v1542, 64
    %v1546 = vpop.permute.xlu0 %1545
    %v1548 = vmul.f32 %v1541, %v1546
    %1550 = vrot.lane.b32.xlu0 %v1548, 32
    %v1551 = vpop.permute.xlu0 %1550
    %v1553 = vadd.f32 %v1543, %v1551
    %v1554 = vtanh.pop %v1553
    %1556 = vrot.lane.b32.xlu0 %v1554, 64
    %v1557 = vpop.permute.xlu0 %1556
    %v1559 = vmul.f32 %v1541, %v1557
    %1561 = vst [vmem:[#allocation1] ss:$4 sm:$0xff] %v1559
    %v1562 = vld.sshfl [vmem:[#allocation1] sm:$0xff pattern:$0x73625140]
    %1563 = vrot.lane.b32.xlu0 %v1562, 32
    %v1564 = vpop.permute.xlu0 %1563
    %v1565 = vsel %vm322, %v1564, 0
    %1567 = vmatpush.msra.mxu0 0.0
    %1568 = vmatpush.msra.mxu0 0.0
    %1569 = vmatpush.msra.mxu0 0.0
    %1570 = vmatpush.msra.mxu0 0.0
    %1571 = vmatpush.msra.mxu0 0.0
    %1572 = vmatpush.msra.mxu0 0.0
    %1573 = vmatpush.msra.mxu0 0.0
    %1574 = vmatpush.msra.mxu0 0.0
    %1575 = vmatpush.msra.mxu0 0.0
    %1576 = vmatpush.msra.mxu0 0.0
    %1577 = vmatpush.msra.mxu0 0.0
    %1578 = vmatpush.msra.mxu0 0.0
    %1579 = vmatpush.msra.mxu0 %v1434
    %1580 = vmatpush.msra.mxu0 %v1433
    %1581 = vmatpush.msra.mxu0 %v1432
    %1582 = vmatpush.msra.mxu0 %v1431
    %1583 = vmatmul.f32.gmra.mxu0 %v1565
    %v1584 = vpop.f32.mrf.mxu0
    %v1585 = vadd.f32 0.0, %v1584
    %1586 = vdwg.mxu0
    %v1587 = vadd.f32 %v1490, %v1585
    %v1588 = vxor.u32 %v1587, 2147483648
    %v1589 = vmul.f32 %v1588, 1.442695
    %v1590 = vpow.pop %v1589
    %v1591 = vadd.f32 %v1590, 1.0
    %v1592 = vrcp.pop %v1591
    %v1593 = vmul.f32 %v1591, %v1592
    %v1594 = vsub.f32 1.0, %v1593
    %v1595 = vmul.f32 %v1592, %v1594
    %v1596 = vadd.f32 %v1592, %v1595
    %vm1597 = vweird.f32 %v1591
    %vm1598 = vweird.f32 %v1592
    %vm1599 = vmor %vm1597, %vm1598
    %v1600 = vsel %vm1599, %v1592, %v1596
    %v1601 = vand.u32 2147483647, %v1591
    %vm1602 = vcmp.eq.f32.partialorder %v1601, 8.507059e+37
    %v1603 = vand.u32 %v1591, 2147483648
    %v1604 = vor.u32 1.1754944e-38, %v1603
    %v1605 = vsel %vm1602, %v1604, %v1600
    %v1606 = vmul.f32 1.0, %v1605
    %v1607 = vtanh.pop %v1587
    %v1608 = vmul.f32 %v1606, %v1553
    %1610 = vrot.lane.b32.xlu0 %v1607, 64
    %v1611 = vpop.permute.xlu0 %1610
    %v1613 = vmul.f32 %v1606, %v1611
    %1615 = vrot.lane.b32.xlu0 %v1613, 32
    %v1616 = vpop.permute.xlu0 %1615
    %v1618 = vadd.f32 %v1608, %v1616
    %v1619 = vtanh.pop %v1618
    %1621 = vrot.lane.b32.xlu0 %v1619, 64
    %v1622 = vpop.permute.xlu0 %1621
    %v1624 = vmul.f32 %v1606, %v1622
    %1626 = vst [vmem:[#allocation1] ss:$4 sm:$0xff] %v1624
    %v1627 = vld.sshfl [vmem:[#allocation1] sm:$0xff pattern:$0x73625140]
    %1628 = vrot.lane.b32.xlu0 %v1627, 32
    %v1629 = vpop.permute.xlu0 %1628
    %v1630 = vsel %vm322, %v1629, 0
    %1632 = vmatpush.msra.mxu0 0.0
    %1633 = vmatpush.msra.mxu0 0.0
    %1634 = vmatpush.msra.mxu0 0.0
    %1635 = vmatpush.msra.mxu0 0.0
    %1636 = vmatpush.msra.mxu0 0.0
    %1637 = vmatpush.msra.mxu0 0.0
    %1638 = vmatpush.msra.mxu0 0.0
    %1639 = vmatpush.msra.mxu0 0.0
    %1640 = vmatpush.msra.mxu0 0.0
    %1641 = vmatpush.msra.mxu0 0.0
    %1642 = vmatpush.msra.mxu0 0.0
    %1643 = vmatpush.msra.mxu0 0.0
    %1644 = vmatpush.msra.mxu0 %v1434
    %1645 = vmatpush.msra.mxu0 %v1433
    %1646 = vmatpush.msra.mxu0 %v1432
    %1647 = vmatpush.msra.mxu0 %v1431
    %1648 = vmatmul.f32.gmra.mxu0 %v1630
    %v1649 = vpop.f32.mrf.mxu0
    %v1650 = vadd.f32 0.0, %v1649
    %1651 = vdwg.mxu0
    %v1652 = vadd.f32 %v1491, %v1650
    %v1653 = vxor.u32 %v1652, 2147483648
    %v1654 = vmul.f32 %v1653, 1.442695
    %v1655 = vpow.pop %v1654
    %v1656 = vadd.f32 %v1655, 1.0
    %v1657 = vrcp.pop %v1656
    %v1658 = vmul.f32 %v1656, %v1657
    %v1659 = vsub.f32 1.0, %v1658
    %v1660 = vmul.f32 %v1657, %v1659
    %v1661 = vadd.f32 %v1657, %v1660
    %vm1662 = vweird.f32 %v1656
    %vm1663 = vweird.f32 %v1657
    %vm1664 = vmor %vm1662, %vm1663
    %v1665 = vsel %vm1664, %v1657, %v1661
    %v1666 = vand.u32 2147483647, %v1656
    %vm1667 = vcmp.eq.f32.partialorder %v1666, 8.507059e+37
    %v1668 = vand.u32 %v1656, 2147483648
    %v1669 = vor.u32 1.1754944e-38, %v1668
    %v1670 = vsel %vm1667, %v1669, %v1665
    %v1671 = vmul.f32 1.0, %v1670
    %v1672 = vtanh.pop %v1652
    %v1673 = vmul.f32 %v1671, %v1618
    %1675 = vrot.lane.b32.xlu0 %v1672, 64
    %v1676 = vpop.permute.xlu0 %1675
    %v1678 = vmul.f32 %v1671, %v1676
    %1680 = vrot.lane.b32.xlu0 %v1678, 32
    %v1681 = vpop.permute.xlu0 %1680
    %v1683 = vadd.f32 %v1673, %v1681
    %v1684 = vtanh.pop %v1683
    %1686 = vrot.lane.b32.xlu0 %v1684, 64
    %v1687 = vpop.permute.xlu0 %1686
    %v1689 = vmul.f32 %v1671, %v1687
    %1691 = vst [vmem:[#allocation1] ss:$4 sm:$0xff] %v1689
    %v1692 = vld.sshfl [vmem:[#allocation1] sm:$0xff pattern:$0x73625140]
    %1693 = vrot.lane.b32.xlu0 %v1692, 32
    %v1694 = vpop.permute.xlu0 %1693
    %v1695 = vsel %vm322, %v1694, 0
    %1697 = vmatpush.msra.mxu0 0.0
    %1698 = vmatpush.msra.mxu0 0.0
    %1699 = vmatpush.msra.mxu0 0.0
    %1700 = vmatpush.msra.mxu0 0.0
    %1701 = vmatpush.msra.mxu0 0.0
    %1702 = vmatpush.msra.mxu0 0.0
    %1703 = vmatpush.msra.mxu0 0.0
    %1704 = vmatpush.msra.mxu0 0.0
    %1705 = vmatpush.msra.mxu0 0.0
    %1706 = vmatpush.msra.mxu0 0.0
    %1707 = vmatpush.msra.mxu0 0.0
    %1708 = vmatpush.msra.mxu0 0.0
    %1709 = vmatpush.msra.mxu0 %v1434
    %1710 = vmatpush.msra.mxu0 %v1433
    %1711 = vmatpush.msra.mxu0 %v1432
    %1712 = vmatpush.msra.mxu0 %v1431
    %1713 = vmatmul.f32.gmra.mxu0 %v1695
    %v1714 = vpop.f32.mrf.mxu0
    %v1715 = vadd.f32 0.0, %v1714
    %1716 = vdwg.mxu0
    %v1717 = vadd.f32 %v1492, %v1715
    %v1718 = vxor.u32 %v1717, 2147483648
    %v1719 = vmul.f32 %v1718, 1.442695
    %v1720 = vpow.pop %v1719
    %v1721 = vadd.f32 %v1720, 1.0
    %v1722 = vrcp.pop %v1721
    %v1723 = vmul.f32 %v1721, %v1722
    %v1724 = vsub.f32 1.0, %v1723
    %v1725 = vmul.f32 %v1722, %v1724
    %v1726 = vadd.f32 %v1722, %v1725
    %vm1727 = vweird.f32 %v1721
    %vm1728 = vweird.f32 %v1722
    %vm1729 = vmor %vm1727, %vm1728
    %v1730 = vsel %vm1729, %v1722, %v1726
    %v1731 = vand.u32 2147483647, %v1721
    %vm1732 = vcmp.eq.f32.partialorder %v1731, 8.507059e+37
    %v1733 = vand.u32 %v1721, 2147483648
    %v1734 = vor.u32 1.1754944e-38, %v1733
    %v1735 = vsel %vm1732, %v1734, %v1730
    %v1736 = vmul.f32 1.0, %v1735
    %v1737 = vtanh.pop %v1717
    %v1738 = vmul.f32 %v1736, %v1683
    %1740 = vrot.lane.b32.xlu0 %v1737, 64
    %v1741 = vpop.permute.xlu0 %1740
    %v1743 = vmul.f32 %v1736, %v1741
    %1745 = vrot.lane.b32.xlu0 %v1743, 32
    %v1746 = vpop.permute.xlu0 %1745
    %v1748 = vadd.f32 %v1738, %v1746
    %v1749 = vtanh.pop %v1748
    %1751 = vrot.lane.b32.xlu0 %v1749, 64
    %v1752 = vpop.permute.xlu0 %1751
    %v1754 = vmul.f32 %v1736, %v1752
    %1756 = vst [vmem:[#allocation1] ss:$4 sm:$0xff] %v1754
    %v1757 = vld.sshfl [vmem:[#allocation1] sm:$0xff pattern:$0x73625140]
    %1758 = vrot.lane.b32.xlu0 %v1757, 32
    %v1759 = vpop.permute.xlu0 %1758
    %v1760 = vsel %vm322, %v1759, 0
    %1762 = vmatpush.msra.mxu0 0.0
    %1763 = vmatpush.msra.mxu0 0.0
    %1764 = vmatpush.msra.mxu0 0.0
    %1765 = vmatpush.msra.mxu0 0.0
    %1766 = vmatpush.msra.mxu0 0.0
    %1767 = vmatpush.msra.mxu0 0.0
    %1768 = vmatpush.msra.mxu0 0.0
    %1769 = vmatpush.msra.mxu0 0.0
    %1770 = vmatpush.msra.mxu0 0.0
    %1771 = vmatpush.msra.mxu0 0.0
    %1772 = vmatpush.msra.mxu0 0.0
    %1773 = vmatpush.msra.mxu0 0.0
    %1774 = vmatpush.msra.mxu0 %v1434
    %1775 = vmatpush.msra.mxu0 %v1433
    %1776 = vmatpush.msra.mxu0 %v1432
    %1777 = vmatpush.msra.mxu0 %v1431
    %1778 = vmatmul.f32.gmra.mxu0 %v1760
    %v1779 = vpop.f32.mrf.mxu0
    %v1780 = vadd.f32 0.0, %v1779
    %1781 = vdwg.mxu0
    %v1782 = vadd.f32 %v1486, %v1780
    %v1783 = vxor.u32 %v1782, 2147483648
    %v1784 = vmul.f32 %v1783, 1.442695
    %v1785 = vpow.pop %v1784
    %v1786 = vadd.f32 %v1785, 1.0
    %v1787 = vrcp.pop %v1786
    %v1788 = vmul.f32 %v1786, %v1787
    %v1789 = vsub.f32 1.0, %v1788
    %v1790 = vmul.f32 %v1787, %v1789
    %v1791 = vadd.f32 %v1787, %v1790
    %vm1792 = vweird.f32 %v1786
    %vm1793 = vweird.f32 %v1787
    %vm1794 = vmor %vm1792, %vm1793
    %v1795 = vsel %vm1794, %v1787, %v1791
    %v1796 = vand.u32 2147483647, %v1786
    %vm1797 = vcmp.eq.f32.partialorder %v1796, 8.507059e+37
    %v1798 = vand.u32 %v1786, 2147483648
    %v1799 = vor.u32 1.1754944e-38, %v1798
    %v1800 = vsel %vm1797, %v1799, %v1795
    %v1801 = vmul.f32 1.0, %v1800
    %v1802 = vtanh.pop %v1782
    %v1803 = vmul.f32 %v1801, %v1748
    %1805 = vrot.lane.b32.xlu0 %v1802, 64
    %v1806 = vpop.permute.xlu0 %1805
    %v1808 = vmul.f32 %v1801, %v1806
    %1810 = vrot.lane.b32.xlu0 %v1808, 32
    %v1811 = vpop.permute.xlu0 %1810
    %v1813 = vadd.f32 %v1803, %v1811
    %v1814 = vtanh.pop %v1813
    %1816 = vrot.lane.b32.xlu0 %v1814, 64
    %v1817 = vpop.permute.xlu0 %1816
    %v1819 = vmul.f32 %v1801, %v1817
    %1821 = vst [vmem:[#allocation1] ss:$4 sm:$0xff] %v1819
    %v1822 = vld.sshfl [vmem:[#allocation1] sm:$0xff pattern:$0x73625140]
    %1823 = vrot.lane.b32.xlu0 %v1822, 32
    %v1824 = vpop.permute.xlu0 %1823
    %v1825 = vsel %vm322, %v1824, 0
    %1827 = vmatpush.msra.mxu0 0.0
    %1828 = vmatpush.msra.mxu0 0.0
    %1829 = vmatpush.msra.mxu0 0.0
    %1830 = vmatpush.msra.mxu0 0.0
    %1831 = vmatpush.msra.mxu0 0.0
    %1832 = vmatpush.msra.mxu0 0.0
    %1833 = vmatpush.msra.mxu0 0.0
    %1834 = vmatpush.msra.mxu0 0.0
    %1835 = vmatpush.msra.mxu0 0.0
    %1836 = vmatpush.msra.mxu0 0.0
    %1837 = vmatpush.msra.mxu0 0.0
    %1838 = vmatpush.msra.mxu0 0.0
    %1839 = vmatpush.msra.mxu0 %v1434
    %1840 = vmatpush.msra.mxu0 %v1433
    %1841 = vmatpush.msra.mxu0 %v1432
    %1842 = vmatpush.msra.mxu0 %v1431
    %1843 = vmatmul.f32.gmra.mxu0 %v1825
    %v1844 = vpop.f32.mrf.mxu0
    %v1845 = vadd.f32 0.0, %v1844
    %1846 = vdwg.mxu0
    %v1847 = vadd.f32 %v1493, %v1845
    %v1848 = vxor.u32 %v1847, 2147483648
    %v1849 = vmul.f32 %v1848, 1.442695
    %v1850 = vpow.pop %v1849
    %v1851 = vadd.f32 %v1850, 1.0
    %v1852 = vrcp.pop %v1851
    %v1853 = vmul.f32 %v1851, %v1852
    %v1854 = vsub.f32 1.0, %v1853
    %v1855 = vmul.f32 %v1852, %v1854
    %v1856 = vadd.f32 %v1852, %v1855
    %vm1857 = vweird.f32 %v1851
    %vm1858 = vweird.f32 %v1852
    %vm1859 = vmor %vm1857, %vm1858
    %v1860 = vsel %vm1859, %v1852, %v1856
    %v1861 = vand.u32 2147483647, %v1851
    %vm1862 = vcmp.eq.f32.partialorder %v1861, 8.507059e+37
    %v1863 = vand.u32 %v1851, 2147483648
    %v1864 = vor.u32 1.1754944e-38, %v1863
    %v1865 = vsel %vm1862, %v1864, %v1860
    %v1866 = vmul.f32 1.0, %v1865
    %v1867 = vtanh.pop %v1847
    %v1868 = vmul.f32 %v1866, %v1813
    %1870 = vrot.lane.b32.xlu0 %v1867, 64
    %v1871 = vpop.permute.xlu0 %1870
    %v1873 = vmul.f32 %v1866, %v1871
    %1875 = vrot.lane.b32.xlu0 %v1873, 32
    %v1876 = vpop.permute.xlu0 %1875
    %v1878 = vadd.f32 %v1868, %v1876
    %v1879 = vtanh.pop %v1878
    %1881 = vrot.lane.b32.xlu0 %v1879, 64
    %v1882 = vpop.permute.xlu0 %1881
    %v1884 = vmul.f32 %v1866, %v1882
    %1886 = vst [vmem:[#allocation1] ss:$4 sm:$0xff] %v1884
    %v1887 = vld.sshfl [vmem:[#allocation1] sm:$0xff pattern:$0x73625140]
    %1888 = vrot.lane.b32.xlu0 %v1887, 32
    %v1889 = vpop.permute.xlu0 %1888
    %v1890 = vsel %vm322, %v1889, 0
    %1892 = vmatpush.msra.mxu0 0.0
    %1893 = vmatpush.msra.mxu0 0.0
    %1894 = vmatpush.msra.mxu0 0.0
    %1895 = vmatpush.msra.mxu0 0.0
    %1896 = vmatpush.msra.mxu0 0.0
    %1897 = vmatpush.msra.mxu0 0.0
    %1898 = vmatpush.msra.mxu0 0.0
    %1899 = vmatpush.msra.mxu0 0.0
    %1900 = vmatpush.msra.mxu0 0.0
    %1901 = vmatpush.msra.mxu0 0.0
    %1902 = vmatpush.msra.mxu0 0.0
    %1903 = vmatpush.msra.mxu0 0.0
    %1904 = vmatpush.msra.mxu0 %v1434
    %1905 = vmatpush.msra.mxu0 %v1433
    %1906 = vmatpush.msra.mxu0 %v1432
    %1907 = vmatpush.msra.mxu0 %v1431
    %1908 = vmatmul.f32.gmra.mxu0 %v1890
    %v1909 = vpop.f32.mrf.mxu0
    %v1910 = vadd.f32 0.0, %v1909
    %1911 = vdwg.mxu0
    %v1912 = vadd.f32 %v1494, %v1910
    %v1913 = vxor.u32 %v1912, 2147483648
    %v1914 = vmul.f32 %v1913, 1.442695
    %v1915 = vpow.pop %v1914
    %v1916 = vadd.f32 %v1915, 1.0
    %v1917 = vrcp.pop %v1916
    %v1918 = vmul.f32 %v1916, %v1917
    %v1919 = vsub.f32 1.0, %v1918
    %v1920 = vmul.f32 %v1917, %v1919
    %v1921 = vadd.f32 %v1917, %v1920
    %vm1922 = vweird.f32 %v1916
    %vm1923 = vweird.f32 %v1917
    %vm1924 = vmor %vm1922, %vm1923
    %v1925 = vsel %vm1924, %v1917, %v1921
    %v1926 = vand.u32 2147483647, %v1916
    %vm1927 = vcmp.eq.f32.partialorder %v1926, 8.507059e+37
    %v1928 = vand.u32 %v1916, 2147483648
    %v1929 = vor.u32 1.1754944e-38, %v1928
    %v1930 = vsel %vm1927, %v1929, %v1925
    %v1931 = vmul.f32 1.0, %v1930
    %v1932 = vtanh.pop %v1912
    %v1933 = vmul.f32 %v1931, %v1878
    %1935 = vrot.lane.b32.xlu0 %v1932, 64
    %v1936 = vpop.permute.xlu0 %1935
    %v1938 = vmul.f32 %v1931, %v1936
    %1940 = vrot.lane.b32.xlu0 %v1938, 32
    %v1941 = vpop.permute.xlu0 %1940
    %v1943 = vadd.f32 %v1933, %v1941
    %v1944 = vtanh.pop %v1943
    %1946 = vrot.lane.b32.xlu0 %v1944, 64
    %v1947 = vpop.permute.xlu0 %1946
    %v1949 = vmul.f32 %v1931, %v1947
    %1951 = vst [vmem:[#allocation1] ss:$4 sm:$0xff] %v1949
    %v1952 = vld.sshfl [vmem:[#allocation1] sm:$0xff pattern:$0x73625140]
    %1953 = vrot.lane.b32.xlu0 %v1952, 32
    %v1954 = vpop.permute.xlu0 %1953
    %v1955 = vsel %vm322, %v1954, 0
    %1957 = vmatpush.msra.mxu0 0.0
    %1958 = vmatpush.msra.mxu0 0.0
    %1959 = vmatpush.msra.mxu0 0.0
    %1960 = vmatpush.msra.mxu0 0.0
    %1961 = vmatpush.msra.mxu0 0.0
    %1962 = vmatpush.msra.mxu0 0.0
    %1963 = vmatpush.msra.mxu0 0.0
    %1964 = vmatpush.msra.mxu0 0.0
    %1965 = vmatpush.msra.mxu0 0.0
    %1966 = vmatpush.msra.mxu0 0.0
    %1967 = vmatpush.msra.mxu0 0.0
    %1968 = vmatpush.msra.mxu0 0.0
    %1969 = vmatpush.msra.mxu0 %v1434
    %1970 = vmatpush.msra.mxu0 %v1433
    %1971 = vmatpush.msra.mxu0 %v1432
    %1972 = vmatpush.msra.mxu0 %v1431
    %1973 = vmatmul.f32.gmra.mxu0 %v1955
    %v1974 = vpop.f32.mrf.mxu0
    %v1975 = vadd.f32 0.0, %v1974
    %1976 = vdwg.mxu0
    %v1977 = vadd.f32 %v1495, %v1975
    %v1978 = vxor.u32 %v1977, 2147483648
    %v1979 = vmul.f32 %v1978, 1.442695
    %v1980 = vpow.pop %v1979
    %v1981 = vadd.f32 %v1980, 1.0
    %v1982 = vrcp.pop %v1981
    %v1983 = vmul.f32 %v1981, %v1982
    %v1984 = vsub.f32 1.0, %v1983
    %v1985 = vmul.f32 %v1982, %v1984
    %v1986 = vadd.f32 %v1982, %v1985
    %vm1987 = vweird.f32 %v1981
    %vm1988 = vweird.f32 %v1982
    %vm1989 = vmor %vm1987, %vm1988
    %v1990 = vsel %vm1989, %v1982, %v1986
    %v1991 = vand.u32 2147483647, %v1981
    %vm1992 = vcmp.eq.f32.partialorder %v1991, 8.507059e+37
    %v1993 = vand.u32 %v1981, 2147483648
    %v1994 = vor.u32 1.1754944e-38, %v1993
    %v1995 = vsel %vm1992, %v1994, %v1990
    %v1996 = vmul.f32 1.0, %v1995
    %v1997 = vtanh.pop %v1977
    %v1998 = vmul.f32 %v1996, %v1943
    %2000 = vrot.lane.b32.xlu0 %v1997, 64
    %v2001 = vpop.permute.xlu0 %2000
    %v2003 = vmul.f32 %v1996, %v2001
    %2005 = vrot.lane.b32.xlu0 %v2003, 32
    %v2006 = vpop.permute.xlu0 %2005
    %v2008 = vadd.f32 %v1998, %v2006
    %v2009 = vtanh.pop %v2008
    %2011 = vrot.lane.b32.xlu0 %v2009, 64
    %v2012 = vpop.permute.xlu0 %2011
    %v2014 = vmul.f32 %v1996, %v2012
    %v2015 = vld [vmem:[#allocation11] sm:$0xff]
    %v2016 = vld [vmem:[#allocation11 + $0x8] sm:$0xff]
    %v2017 = vld [vmem:[#allocation11 + $0x10] sm:$0xff]
    %v2018 = vld [vmem:[#allocation11 + $0x18] sm:$0xff]
    %v2019 = vld [vmem:[#allocation13] sm:$0xff]
    %v2020 = vld [vmem:[#allocation13 + $0x8] sm:$0xff]
    %v2021 = vld [vmem:[#allocation13 + $0x10] sm:$0xff]
    %v2022 = vld [vmem:[#allocation13 + $0x18] sm:$0xff]
    %v2023 = vld [vmem:[#allocation14] sm:$0x1]
    %v2025 = vperm.slane %v2023, 0
    %2028 = vst [vmem:[#allocation1] ss:$4 sm:$0xff] %v1559
    %s2029 = scalar_lea.vmem [#allocation1], 1
    %2030 = vst [vmem:[%s2029] ss:$4 sm:$0xff] %v1624
    %s2031 = scalar_lea.vmem [#allocation1], 2
    %2032 = vst [vmem:[%s2031] ss:$4 sm:$0xff] %v1689
    %s2033 = scalar_lea.vmem [#allocation1], 3
    %2034 = vst [vmem:[%s2033] ss:$4 sm:$0xff] %v1754
    %s2035 = scalar_lea.vmem [#allocation1], 32
    %2036 = vst [vmem:[%s2035] ss:$4 sm:$0xff] %v1819
    %s2037 = scalar_lea.vmem [#allocation1], 33
    %2038 = vst [vmem:[%s2037] ss:$4 sm:$0xff] %v1884
    %s2039 = scalar_lea.vmem [#allocation1], 34
    %2040 = vst [vmem:[%s2039] ss:$4 sm:$0xff] %v1949
    %s2041 = scalar_lea.vmem [#allocation1], 35
    %2042 = vst [vmem:[%s2041] ss:$4 sm:$0xff] %v2014
    %v2043 = vld.sshfl [vmem:[#allocation1] sm:$0xff pattern:$0x73625140]
    %v2044 = vld.sshfl [vmem:[#allocation1 + $0x20] sm:$0xff pattern:$0x73625140]
    %2045 = vrot.lane.b32.xlu0 %v2043, 32
    %v2046 = vpop.permute.xlu0 %2045
    %2047 = vrot.lane.b32.xlu0 %v2044, 32
    %v2048 = vpop.permute.xlu0 %2047
    %v2049 = vsel %vm322, %v2046, 0
    %v2051 = vsel %vm322, %v2048, 0
    %2053 = vmatpush.msra.mxu0 0.0
    %2054 = vmatpush.msra.mxu0 0.0
    %2055 = vmatpush.msra.mxu0 0.0
    %2056 = vmatpush.msra.mxu0 0.0
    %2057 = vmatpush.msra.mxu0 0.0
    %2058 = vmatpush.msra.mxu0 0.0
    %2059 = vmatpush.msra.mxu0 0.0
    %2060 = vmatpush.msra.mxu0 0.0
    %2061 = vmatpush.msra.mxu0 0.0
    %2062 = vmatpush.msra.mxu0 0.0
    %2063 = vmatpush.msra.mxu0 0.0
    %2064 = vmatpush.msra.mxu0 0.0
    %2065 = vmatpush.msra.mxu0 %v2018
    %2066 = vmatpush.msra.mxu0 %v2017
    %2067 = vmatpush.msra.mxu0 %v2016
    %2068 = vmatpush.msra.mxu0 %v2015
    %2069 = vmatmul.f32.gmra.mxu0 %v2049
    %v2070 = vpop.f32.mrf.mxu0
    %v2071 = vadd.f32 %v2025, %v2070
    %2072 = vmatmul.f32.gmra.mxu0 %v2051
    %v2073 = vpop.f32.mrf.mxu0
    %v2074 = vadd.f32 %v2025, %v2073
    %2075 = vdwg.mxu0
    %v2078 = vrot.slane %v2071, 2
    %v2079 = vrot.slane %v2071, 4
    %v2080 = vrot.slane %v2071, 6
    %v2081 = vrot.slane %v2074, 2
    %v2082 = vrot.slane %v2074, 4
    %v2083 = vrot.slane %v2074, 6
    %2090 = vmatpush.msra.mxu0 0.0
    %2091 = vmatpush.msra.mxu0 0.0
    %2092 = vmatpush.msra.mxu0 0.0
    %2093 = vmatpush.msra.mxu0 0.0
    %2094 = vmatpush.msra.mxu0 0.0
    %2095 = vmatpush.msra.mxu0 0.0
    %2096 = vmatpush.msra.mxu0 0.0
    %2097 = vmatpush.msra.mxu0 0.0
    %2098 = vmatpush.msra.mxu0 0.0
    %2099 = vmatpush.msra.mxu0 0.0
    %2100 = vmatpush.msra.mxu0 0.0
    %2101 = vmatpush.msra.mxu0 0.0
    %2102 = vmatpush.msra.mxu0 %v2022
    %2103 = vmatpush.msra.mxu0 %v2021
    %2104 = vmatpush.msra.mxu0 %v2020
    %2105 = vmatpush.msra.mxu0 %v2019
    %2106 = vmatmul.f32.gmra.mxu0 %v324
    %v2107 = vpop.f32.mrf.mxu0
    %v2108 = vadd.f32 0.0, %v2107
    %2109 = vdwg.mxu0
    %v2110 = vadd.f32 %v2071, %v2108
    %v2111 = vxor.u32 %v2110, 2147483648
    %v2112 = vmul.f32 %v2111, 1.442695
    %v2113 = vpow.pop %v2112
    %v2114 = vadd.f32 %v2113, 1.0
    %v2115 = vrcp.pop %v2114
    %v2116 = vmul.f32 %v2114, %v2115
    %v2117 = vsub.f32 1.0, %v2116
    %v2118 = vmul.f32 %v2115, %v2117
    %v2119 = vadd.f32 %v2115, %v2118
    %vm2120 = vweird.f32 %v2114
    %vm2121 = vweird.f32 %v2115
    %vm2122 = vmor %vm2120, %vm2121
    %v2123 = vsel %vm2122, %v2115, %v2119
    %v2124 = vand.u32 2147483647, %v2114
    %vm2125 = vcmp.eq.f32.partialorder %v2124, 8.507059e+37
    %v2126 = vand.u32 %v2114, 2147483648
    %v2127 = vor.u32 1.1754944e-38, %v2126
    %v2128 = vsel %vm2125, %v2127, %v2123
    %v2129 = vmul.f32 1.0, %v2128
    %v2130 = vtanh.pop %v2110
    %v2131 = vmul.f32 %v2129, 0.0
    %2133 = vrot.lane.b32.xlu0 %v2130, 64
    %v2134 = vpop.permute.xlu0 %2133
    %v2136 = vmul.f32 %v2129, %v2134
    %2138 = vrot.lane.b32.xlu0 %v2136, 32
    %v2139 = vpop.permute.xlu0 %2138
    %v2141 = vadd.f32 %v2131, %v2139
    %v2142 = vtanh.pop %v2141
    %2144 = vrot.lane.b32.xlu0 %v2142, 64
    %v2145 = vpop.permute.xlu0 %2144
    %v2147 = vmul.f32 %v2129, %v2145
    %2149 = vst [vmem:[#allocation1] ss:$4 sm:$0xff] %v2147
    %v2150 = vld.sshfl [vmem:[#allocation1] sm:$0xff pattern:$0x73625140]
    %2151 = vrot.lane.b32.xlu0 %v2150, 32
    %v2152 = vpop.permute.xlu0 %2151
    %v2153 = vsel %vm322, %v2152, 0
    %2155 = vmatpush.msra.mxu0 0.0
    %2156 = vmatpush.msra.mxu0 0.0
    %2157 = vmatpush.msra.mxu0 0.0
    %2158 = vmatpush.msra.mxu0 0.0
    %2159 = vmatpush.msra.mxu0 0.0
    %2160 = vmatpush.msra.mxu0 0.0
    %2161 = vmatpush.msra.mxu0 0.0
    %2162 = vmatpush.msra.mxu0 0.0
    %2163 = vmatpush.msra.mxu0 0.0
    %2164 = vmatpush.msra.mxu0 0.0
    %2165 = vmatpush.msra.mxu0 0.0
    %2166 = vmatpush.msra.mxu0 0.0
    %2167 = vmatpush.msra.mxu0 %v2022
    %2168 = vmatpush.msra.mxu0 %v2021
    %2169 = vmatpush.msra.mxu0 %v2020
    %2170 = vmatpush.msra.mxu0 %v2019
    %2171 = vmatmul.f32.gmra.mxu0 %v2153
    %v2172 = vpop.f32.mrf.mxu0
    %v2173 = vadd.f32 0.0, %v2172
    %2174 = vdwg.mxu0
    %v2175 = vadd.f32 %v2078, %v2173
    %v2176 = vxor.u32 %v2175, 2147483648
    %v2177 = vmul.f32 %v2176, 1.442695
    %v2178 = vpow.pop %v2177
    %v2179 = vadd.f32 %v2178, 1.0
    %v2180 = vrcp.pop %v2179
    %v2181 = vmul.f32 %v2179, %v2180
    %v2182 = vsub.f32 1.0, %v2181
    %v2183 = vmul.f32 %v2180, %v2182
    %v2184 = vadd.f32 %v2180, %v2183
    %vm2185 = vweird.f32 %v2179
    %vm2186 = vweird.f32 %v2180
    %vm2187 = vmor %vm2185, %vm2186
    %v2188 = vsel %vm2187, %v2180, %v2184
    %v2189 = vand.u32 2147483647, %v2179
    %vm2190 = vcmp.eq.f32.partialorder %v2189, 8.507059e+37
    %v2191 = vand.u32 %v2179, 2147483648
    %v2192 = vor.u32 1.1754944e-38, %v2191
    %v2193 = vsel %vm2190, %v2192, %v2188
    %v2194 = vmul.f32 1.0, %v2193
    %v2195 = vtanh.pop %v2175
    %v2196 = vmul.f32 %v2194, %v2141
    %2198 = vrot.lane.b32.xlu0 %v2195, 64
    %v2199 = vpop.permute.xlu0 %2198
    %v2201 = vmul.f32 %v2194, %v2199
    %2203 = vrot.lane.b32.xlu0 %v2201, 32
    %v2204 = vpop.permute.xlu0 %2203
    %v2206 = vadd.f32 %v2196, %v2204
    %v2207 = vtanh.pop %v2206
    %2209 = vrot.lane.b32.xlu0 %v2207, 64
    %v2210 = vpop.permute.xlu0 %2209
    %v2212 = vmul.f32 %v2194, %v2210
    %2214 = vst [vmem:[#allocation1] ss:$4 sm:$0xff] %v2212
    %v2215 = vld.sshfl [vmem:[#allocation1] sm:$0xff pattern:$0x73625140]
    %2216 = vrot.lane.b32.xlu0 %v2215, 32
    %v2217 = vpop.permute.xlu0 %2216
    %v2218 = vsel %vm322, %v2217, 0
    %2220 = vmatpush.msra.mxu0 0.0
    %2221 = vmatpush.msra.mxu0 0.0
    %2222 = vmatpush.msra.mxu0 0.0
    %2223 = vmatpush.msra.mxu0 0.0
    %2224 = vmatpush.msra.mxu0 0.0
    %2225 = vmatpush.msra.mxu0 0.0
    %2226 = vmatpush.msra.mxu0 0.0
    %2227 = vmatpush.msra.mxu0 0.0
    %2228 = vmatpush.msra.mxu0 0.0
    %2229 = vmatpush.msra.mxu0 0.0
    %2230 = vmatpush.msra.mxu0 0.0
    %2231 = vmatpush.msra.mxu0 0.0
    %2232 = vmatpush.msra.mxu0 %v2022
    %2233 = vmatpush.msra.mxu0 %v2021
    %2234 = vmatpush.msra.mxu0 %v2020
    %2235 = vmatpush.msra.mxu0 %v2019
    %2236 = vmatmul.f32.gmra.mxu0 %v2218
    %v2237 = vpop.f32.mrf.mxu0
    %v2238 = vadd.f32 0.0, %v2237
    %2239 = vdwg.mxu0
    %v2240 = vadd.f32 %v2079, %v2238
    %v2241 = vxor.u32 %v2240, 2147483648
    %v2242 = vmul.f32 %v2241, 1.442695
    %v2243 = vpow.pop %v2242
    %v2244 = vadd.f32 %v2243, 1.0
    %v2245 = vrcp.pop %v2244
    %v2246 = vmul.f32 %v2244, %v2245
    %v2247 = vsub.f32 1.0, %v2246
    %v2248 = vmul.f32 %v2245, %v2247
    %v2249 = vadd.f32 %v2245, %v2248
    %vm2250 = vweird.f32 %v2244
    %vm2251 = vweird.f32 %v2245
    %vm2252 = vmor %vm2250, %vm2251
    %v2253 = vsel %vm2252, %v2245, %v2249
    %v2254 = vand.u32 2147483647, %v2244
    %vm2255 = vcmp.eq.f32.partialorder %v2254, 8.507059e+37
    %v2256 = vand.u32 %v2244, 2147483648
    %v2257 = vor.u32 1.1754944e-38, %v2256
    %v2258 = vsel %vm2255, %v2257, %v2253
    %v2259 = vmul.f32 1.0, %v2258
    %v2260 = vtanh.pop %v2240
    %v2261 = vmul.f32 %v2259, %v2206
    %2263 = vrot.lane.b32.xlu0 %v2260, 64
    %v2264 = vpop.permute.xlu0 %2263
    %v2266 = vmul.f32 %v2259, %v2264
    %2268 = vrot.lane.b32.xlu0 %v2266, 32
    %v2269 = vpop.permute.xlu0 %2268
    %v2271 = vadd.f32 %v2261, %v2269
    %v2272 = vtanh.pop %v2271
    %2274 = vrot.lane.b32.xlu0 %v2272, 64
    %v2275 = vpop.permute.xlu0 %2274
    %v2277 = vmul.f32 %v2259, %v2275
    %2279 = vst [vmem:[#allocation1] ss:$4 sm:$0xff] %v2277
    %v2280 = vld.sshfl [vmem:[#allocation1] sm:$0xff pattern:$0x73625140]
    %2281 = vrot.lane.b32.xlu0 %v2280, 32
    %v2282 = vpop.permute.xlu0 %2281
    %v2283 = vsel %vm322, %v2282, 0
    %2285 = vmatpush.msra.mxu0 0.0
    %2286 = vmatpush.msra.mxu0 0.0
    %2287 = vmatpush.msra.mxu0 0.0
    %2288 = vmatpush.msra.mxu0 0.0
    %2289 = vmatpush.msra.mxu0 0.0
    %2290 = vmatpush.msra.mxu0 0.0
    %2291 = vmatpush.msra.mxu0 0.0
    %2292 = vmatpush.msra.mxu0 0.0
    %2293 = vmatpush.msra.mxu0 0.0
    %2294 = vmatpush.msra.mxu0 0.0
    %2295 = vmatpush.msra.mxu0 0.0
    %2296 = vmatpush.msra.mxu0 0.0
    %2297 = vmatpush.msra.mxu0 %v2022
    %2298 = vmatpush.msra.mxu0 %v2021
    %2299 = vmatpush.msra.mxu0 %v2020
    %2300 = vmatpush.msra.mxu0 %v2019
    %2301 = vmatmul.f32.gmra.mxu0 %v2283
    %v2302 = vpop.f32.mrf.mxu0
    %v2303 = vadd.f32 0.0, %v2302
    %2304 = vdwg.mxu0
    %v2305 = vadd.f32 %v2080, %v2303
    %v2306 = vxor.u32 %v2305, 2147483648
    %v2307 = vmul.f32 %v2306, 1.442695
    %v2308 = vpow.pop %v2307
    %v2309 = vadd.f32 %v2308, 1.0
    %v2310 = vrcp.pop %v2309
    %v2311 = vmul.f32 %v2309, %v2310
    %v2312 = vsub.f32 1.0, %v2311
    %v2313 = vmul.f32 %v2310, %v2312
    %v2314 = vadd.f32 %v2310, %v2313
    %vm2315 = vweird.f32 %v2309
    %vm2316 = vweird.f32 %v2310
    %vm2317 = vmor %vm2315, %vm2316
    %v2318 = vsel %vm2317, %v2310, %v2314
    %v2319 = vand.u32 2147483647, %v2309
    %vm2320 = vcmp.eq.f32.partialorder %v2319, 8.507059e+37
    %v2321 = vand.u32 %v2309, 2147483648
    %v2322 = vor.u32 1.1754944e-38, %v2321
    %v2323 = vsel %vm2320, %v2322, %v2318
    %v2324 = vmul.f32 1.0, %v2323
    %v2325 = vtanh.pop %v2305
    %v2326 = vmul.f32 %v2324, %v2271
    %2328 = vrot.lane.b32.xlu0 %v2325, 64
    %v2329 = vpop.permute.xlu0 %2328
    %v2331 = vmul.f32 %v2324, %v2329
    %2333 = vrot.lane.b32.xlu0 %v2331, 32
    %v2334 = vpop.permute.xlu0 %2333
    %v2336 = vadd.f32 %v2326, %v2334
    %v2337 = vtanh.pop %v2336
    %2339 = vrot.lane.b32.xlu0 %v2337, 64
    %v2340 = vpop.permute.xlu0 %2339
    %v2342 = vmul.f32 %v2324, %v2340
    %2344 = vst [vmem:[#allocation1] ss:$4 sm:$0xff] %v2342
    %v2345 = vld.sshfl [vmem:[#allocation1] sm:$0xff pattern:$0x73625140]
    %2346 = vrot.lane.b32.xlu0 %v2345, 32
    %v2347 = vpop.permute.xlu0 %2346
    %v2348 = vsel %vm322, %v2347, 0
    %2350 = vmatpush.msra.mxu0 0.0
    %2351 = vmatpush.msra.mxu0 0.0
    %2352 = vmatpush.msra.mxu0 0.0
    %2353 = vmatpush.msra.mxu0 0.0
    %2354 = vmatpush.msra.mxu0 0.0
    %2355 = vmatpush.msra.mxu0 0.0
    %2356 = vmatpush.msra.mxu0 0.0
    %2357 = vmatpush.msra.mxu0 0.0
    %2358 = vmatpush.msra.mxu0 0.0
    %2359 = vmatpush.msra.mxu0 0.0
    %2360 = vmatpush.msra.mxu0 0.0
    %2361 = vmatpush.msra.mxu0 0.0
    %2362 = vmatpush.msra.mxu0 %v2022
    %2363 = vmatpush.msra.mxu0 %v2021
    %2364 = vmatpush.msra.mxu0 %v2020
    %2365 = vmatpush.msra.mxu0 %v2019
    %2366 = vmatmul.f32.gmra.mxu0 %v2348
    %v2367 = vpop.f32.mrf.mxu0
    %v2368 = vadd.f32 0.0, %v2367
    %2369 = vdwg.mxu0
    %v2370 = vadd.f32 %v2074, %v2368
    %v2371 = vxor.u32 %v2370, 2147483648
    %v2372 = vmul.f32 %v2371, 1.442695
    %v2373 = vpow.pop %v2372
    %v2374 = vadd.f32 %v2373, 1.0
    %v2375 = vrcp.pop %v2374
    %v2376 = vmul.f32 %v2374, %v2375
    %v2377 = vsub.f32 1.0, %v2376
    %v2378 = vmul.f32 %v2375, %v2377
    %v2379 = vadd.f32 %v2375, %v2378
    %vm2380 = vweird.f32 %v2374
    %vm2381 = vweird.f32 %v2375
    %vm2382 = vmor %vm2380, %vm2381
    %v2383 = vsel %vm2382, %v2375, %v2379
    %v2384 = vand.u32 2147483647, %v2374
    %vm2385 = vcmp.eq.f32.partialorder %v2384, 8.507059e+37
    %v2386 = vand.u32 %v2374, 2147483648
    %v2387 = vor.u32 1.1754944e-38, %v2386
    %v2388 = vsel %vm2385, %v2387, %v2383
    %v2389 = vmul.f32 1.0, %v2388
    %v2390 = vtanh.pop %v2370
    %v2391 = vmul.f32 %v2389, %v2336
    %2393 = vrot.lane.b32.xlu0 %v2390, 64
    %v2394 = vpop.permute.xlu0 %2393
    %v2396 = vmul.f32 %v2389, %v2394
    %2398 = vrot.lane.b32.xlu0 %v2396, 32
    %v2399 = vpop.permute.xlu0 %2398
    %v2401 = vadd.f32 %v2391, %v2399
    %v2402 = vtanh.pop %v2401
    %2404 = vrot.lane.b32.xlu0 %v2402, 64
    %v2405 = vpop.permute.xlu0 %2404
    %v2407 = vmul.f32 %v2389, %v2405
    %2409 = vst [vmem:[#allocation1] ss:$4 sm:$0xff] %v2407
    %v2410 = vld.sshfl [vmem:[#allocation1] sm:$0xff pattern:$0x73625140]
    %2411 = vrot.lane.b32.xlu0 %v2410, 32
    %v2412 = vpop.permute.xlu0 %2411
    %v2413 = vsel %vm322, %v2412, 0
    %2415 = vmatpush.msra.mxu0 0.0
    %2416 = vmatpush.msra.mxu0 0.0
    %2417 = vmatpush.msra.mxu0 0.0
    %2418 = vmatpush.msra.mxu0 0.0
    %2419 = vmatpush.msra.mxu0 0.0
    %2420 = vmatpush.msra.mxu0 0.0
    %2421 = vmatpush.msra.mxu0 0.0
    %2422 = vmatpush.msra.mxu0 0.0
    %2423 = vmatpush.msra.mxu0 0.0
    %2424 = vmatpush.msra.mxu0 0.0
    %2425 = vmatpush.msra.mxu0 0.0
    %2426 = vmatpush.msra.mxu0 0.0
    %2427 = vmatpush.msra.mxu0 %v2022
    %2428 = vmatpush.msra.mxu0 %v2021
    %2429 = vmatpush.msra.mxu0 %v2020
    %2430 = vmatpush.msra.mxu0 %v2019
    %2431 = vmatmul.f32.gmra.mxu0 %v2413
    %v2432 = vpop.f32.mrf.mxu0
    %v2433 = vadd.f32 0.0, %v2432
    %2434 = vdwg.mxu0
    %v2435 = vadd.f32 %v2081, %v2433
    %v2436 = vxor.u32 %v2435, 2147483648
    %v2437 = vmul.f32 %v2436, 1.442695
    %v2438 = vpow.pop %v2437
    %v2439 = vadd.f32 %v2438, 1.0
    %v2440 = vrcp.pop %v2439
    %v2441 = vmul.f32 %v2439, %v2440
    %v2442 = vsub.f32 1.0, %v2441
    %v2443 = vmul.f32 %v2440, %v2442
    %v2444 = vadd.f32 %v2440, %v2443
    %vm2445 = vweird.f32 %v2439
    %vm2446 = vweird.f32 %v2440
    %vm2447 = vmor %vm2445, %vm2446
    %v2448 = vsel %vm2447, %v2440, %v2444
    %v2449 = vand.u32 2147483647, %v2439
    %vm2450 = vcmp.eq.f32.partialorder %v2449, 8.507059e+37
    %v2451 = vand.u32 %v2439, 2147483648
    %v2452 = vor.u32 1.1754944e-38, %v2451
    %v2453 = vsel %vm2450, %v2452, %v2448
    %v2454 = vmul.f32 1.0, %v2453
    %v2455 = vtanh.pop %v2435
    %v2456 = vmul.f32 %v2454, %v2401
    %2458 = vrot.lane.b32.xlu0 %v2455, 64
    %v2459 = vpop.permute.xlu0 %2458
    %v2461 = vmul.f32 %v2454, %v2459
    %2463 = vrot.lane.b32.xlu0 %v2461, 32
    %v2464 = vpop.permute.xlu0 %2463
    %v2466 = vadd.f32 %v2456, %v2464
    %v2467 = vtanh.pop %v2466
    %2469 = vrot.lane.b32.xlu0 %v2467, 64
    %v2470 = vpop.permute.xlu0 %2469
    %v2472 = vmul.f32 %v2454, %v2470
    %2474 = vst [vmem:[#allocation1] ss:$4 sm:$0xff] %v2472
    %v2475 = vld.sshfl [vmem:[#allocation1] sm:$0xff pattern:$0x73625140]
    %2476 = vrot.lane.b32.xlu0 %v2475, 32
    %v2477 = vpop.permute.xlu0 %2476
    %v2478 = vsel %vm322, %v2477, 0
    %2480 = vmatpush.msra.mxu0 0.0
    %2481 = vmatpush.msra.mxu0 0.0
    %2482 = vmatpush.msra.mxu0 0.0
    %2483 = vmatpush.msra.mxu0 0.0
    %2484 = vmatpush.msra.mxu0 0.0
    %2485 = vmatpush.msra.mxu0 0.0
    %2486 = vmatpush.msra.mxu0 0.0
    %2487 = vmatpush.msra.mxu0 0.0
    %2488 = vmatpush.msra.mxu0 0.0
    %2489 = vmatpush.msra.mxu0 0.0
    %2490 = vmatpush.msra.mxu0 0.0
    %2491 = vmatpush.msra.mxu0 0.0
    %2492 = vmatpush.msra.mxu0 %v2022
    %2493 = vmatpush.msra.mxu0 %v2021
    %2494 = vmatpush.msra.mxu0 %v2020
    %2495 = vmatpush.msra.mxu0 %v2019
    %2496 = vmatmul.f32.gmra.mxu0 %v2478
    %v2497 = vpop.f32.mrf.mxu0
    %v2498 = vadd.f32 0.0, %v2497
    %2499 = vdwg.mxu0
    %v2500 = vadd.f32 %v2082, %v2498
    %v2501 = vxor.u32 %v2500, 2147483648
    %v2502 = vmul.f32 %v2501, 1.442695
    %v2503 = vpow.pop %v2502
    %v2504 = vadd.f32 %v2503, 1.0
    %v2505 = vrcp.pop %v2504
    %v2506 = vmul.f32 %v2504, %v2505
    %v2507 = vsub.f32 1.0, %v2506
    %v2508 = vmul.f32 %v2505, %v2507
    %v2509 = vadd.f32 %v2505, %v2508
    %vm2510 = vweird.f32 %v2504
    %vm2511 = vweird.f32 %v2505
    %vm2512 = vmor %vm2510, %vm2511
    %v2513 = vsel %vm2512, %v2505, %v2509
    %v2514 = vand.u32 2147483647, %v2504
    %vm2515 = vcmp.eq.f32.partialorder %v2514, 8.507059e+37
    %v2516 = vand.u32 %v2504, 2147483648
    %v2517 = vor.u32 1.1754944e-38, %v2516
    %v2518 = vsel %vm2515, %v2517, %v2513
    %v2519 = vmul.f32 1.0, %v2518
    %v2520 = vtanh.pop %v2500
    %v2521 = vmul.f32 %v2519, %v2466
    %2523 = vrot.lane.b32.xlu0 %v2520, 64
    %v2524 = vpop.permute.xlu0 %2523
    %v2526 = vmul.f32 %v2519, %v2524
    %2528 = vrot.lane.b32.xlu0 %v2526, 32
    %v2529 = vpop.permute.xlu0 %2528
    %v2531 = vadd.f32 %v2521, %v2529
    %v2532 = vtanh.pop %v2531
    %2534 = vrot.lane.b32.xlu0 %v2532, 64
    %v2535 = vpop.permute.xlu0 %2534
    %v2537 = vmul.f32 %v2519, %v2535
    %2539 = vst [vmem:[#allocation1] ss:$4 sm:$0xff] %v2537
    %v2540 = vld.sshfl [vmem:[#allocation1] sm:$0xff pattern:$0x73625140]
    %2541 = vrot.lane.b32.xlu0 %v2540, 32
    %v2542 = vpop.permute.xlu0 %2541
    %v2543 = vsel %vm322, %v2542, 0
    %2545 = vmatpush.msra.mxu0 0.0
    %2546 = vmatpush.msra.mxu0 0.0
    %2547 = vmatpush.msra.mxu0 0.0
    %2548 = vmatpush.msra.mxu0 0.0
    %2549 = vmatpush.msra.mxu0 0.0
    %2550 = vmatpush.msra.mxu0 0.0
    %2551 = vmatpush.msra.mxu0 0.0
    %2552 = vmatpush.msra.mxu0 0.0
    %2553 = vmatpush.msra.mxu0 0.0
    %2554 = vmatpush.msra.mxu0 0.0
    %2555 = vmatpush.msra.mxu0 0.0
    %2556 = vmatpush.msra.mxu0 0.0
    %2557 = vmatpush.msra.mxu0 %v2022
    %2558 = vmatpush.msra.mxu0 %v2021
    %2559 = vmatpush.msra.mxu0 %v2020
    %2560 = vmatpush.msra.mxu0 %v2019
    %2561 = vmatmul.f32.gmra.mxu0 %v2543
    %v2562 = vpop.f32.mrf.mxu0
    %v2563 = vadd.f32 0.0, %v2562
    %2564 = vdwg.mxu0
    %v2565 = vadd.f32 %v2083, %v2563
    %v2566 = vxor.u32 %v2565, 2147483648
    %v2567 = vmul.f32 %v2566, 1.442695
    %v2568 = vpow.pop %v2567
    %v2569 = vadd.f32 %v2568, 1.0
    %v2570 = vrcp.pop %v2569
    %v2571 = vmul.f32 %v2569, %v2570
    %v2572 = vsub.f32 1.0, %v2571
    %v2573 = vmul.f32 %v2570, %v2572
    %v2574 = vadd.f32 %v2570, %v2573
    %vm2575 = vweird.f32 %v2569
    %vm2576 = vweird.f32 %v2570
    %vm2577 = vmor %vm2575, %vm2576
    %v2578 = vsel %vm2577, %v2570, %v2574
    %v2579 = vand.u32 2147483647, %v2569
    %vm2580 = vcmp.eq.f32.partialorder %v2579, 8.507059e+37
    %v2581 = vand.u32 %v2569, 2147483648
    %v2582 = vor.u32 1.1754944e-38, %v2581
    %v2583 = vsel %vm2580, %v2582, %v2578
    %v2584 = vmul.f32 1.0, %v2583
    %v2585 = vtanh.pop %v2565
    %v2586 = vmul.f32 %v2584, %v2531
    %2588 = vrot.lane.b32.xlu0 %v2585, 64
    %v2589 = vpop.permute.xlu0 %2588
    %v2591 = vmul.f32 %v2584, %v2589
    %2593 = vrot.lane.b32.xlu0 %v2591, 32
    %v2594 = vpop.permute.xlu0 %2593
    %v2596 = vadd.f32 %v2586, %v2594
    %v2597 = vtanh.pop %v2596
    %2599 = vrot.lane.b32.xlu0 %v2597, 64
    %v2600 = vpop.permute.xlu0 %2599
    %v2602 = vmul.f32 %v2584, %v2600
    %v2603 = vld [vmem:[#allocation2] sm:$0x3]
    %v2604 = vld [vmem:[#allocation16] sm:$0xff]
    %v2605 = vld [vmem:[#allocation17] sm:$0x1]
    %v2607 = vperm.slane %v2605, 0
    %vm2609 = vcmask 64512
    %v2611 = vsel %vm2609, %v2603, 0
    %2613 = vmatpush.msra.mxu0 0.0
    %2614 = vmatpush.msra.mxu0 0.0
    %2615 = vmatpush.msra.mxu0 0.0
    %2616 = vmatpush.msra.mxu0 0.0
    %2617 = vmatpush.msra.mxu0 0.0
    %2618 = vmatpush.msra.mxu0 0.0
    %2619 = vmatpush.msra.mxu0 0.0
    %2620 = vmatpush.msra.mxu0 0.0
    %2621 = vmatpush.msra.mxu0 0.0
    %2622 = vmatpush.msra.mxu0 0.0
    %2623 = vmatpush.msra.mxu0 0.0
    %2624 = vmatpush.msra.mxu0 0.0
    %2625 = vmatpush.msra.mxu0 0.0
    %2626 = vmatpush.msra.mxu0 0.0
    %2627 = vmatpush.msra.mxu0 0.0
    %2628 = vmatpush.msra.mxu0 %v2604
    %2629 = vmatmul.f32.gmra.mxu0 %v2611
    %v2630 = vpop.f32.mrf.mxu0
    %v2631 = vadd.f32 %v2607, %v2630
    %2632 = vdwg.mxu0
    %v2633 = vmax.f32 %v2631, 0.0
    %2635 = vst [vmem:[#allocation1] ss:$4 sm:$0xff] %v2602
    %v2636 = vld.sshfl [vmem:[#allocation1] sm:$0xff pattern:$0x73625140]
    %2637 = vrot.lane.b32.xlu0 %v2636, 32
    %v2638 = vpop.permute.xlu0 %2637
    %2641 = vrot.lane.b32.xlu0 %v2633, 32
    %v2642 = vpop.permute.xlu0 %2641
    %v2644 = vsel %vm322, %v2638, %v2642
    %v2645 = vld [vmem:[%s16] sm:$0xff]
    %v2646 = vld [vmem:[%s16 + $0x8] sm:$0xff]
    %v2647 = vld [vmem:[%s16 + $0x10] sm:$0xff]
    %v2648 = vld [vmem:[%s16 + $0x18] sm:$0xff]
    %v2649 = vld [vmem:[%s16 + $0x20] sm:$0xff]
    %v2650 = vld [vmem:[%s16 + $0x28] sm:$0xff]
    %v2651 = vld [vmem:[%s16 + $0x30] sm:$0xff]
    %v2652 = vld [vmem:[%s16 + $0x38] sm:$0xff]
    %v2653 = vld [vmem:[#allocation19] sm:$0x1]
    %v2655 = vperm.slane %v2653, 0
    %vm2657 = vcmask 523264
    %v2659 = vsel %vm2657, %v2644, 0
    %2661 = vmatpush.msra.mxu0 0.0
    %2662 = vmatpush.msra.mxu0 0.0
    %2663 = vmatpush.msra.mxu0 0.0
    %2664 = vmatpush.msra.mxu0 0.0
    %2665 = vmatpush.msra.mxu0 0.0
    %2666 = vmatpush.msra.mxu0 0.0
    %2667 = vmatpush.msra.mxu0 0.0
    %2668 = vmatpush.msra.mxu0 0.0
    %2669 = vmatpush.msra.mxu0 %v2652
    %2670 = vmatpush.msra.mxu0 %v2651
    %2671 = vmatpush.msra.mxu0 %v2650
    %2672 = vmatpush.msra.mxu0 %v2649
    %2673 = vmatpush.msra.mxu0 %v2648
    %2674 = vmatpush.msra.mxu0 %v2647
    %2675 = vmatpush.msra.mxu0 %v2646
    %2676 = vmatpush.msra.mxu0 %v2645
    %2677 = vmatmul.f32.gmra.mxu0 %v2659
    %v2678 = vpop.f32.mrf.mxu0
    %v2679 = vadd.f32 %v2655, %v2678
    %2680 = vdwg.mxu0
    %v2681 = vmax.f32 %v2679, 0.0
    %v2682 = vld [vmem:[%s18] sm:$0xff]
    %v2683 = vld [vmem:[%s18 + $0x8] sm:$0xff]
    %v2684 = vld [vmem:[%s18 + $0x10] sm:$0xff]
    %v2685 = vld [vmem:[%s18 + $0x18] sm:$0xff]
    %v2686 = vld [vmem:[#allocation20] sm:$0x1]
    %v2688 = vperm.slane %v2686, 0
    %v2691 = vsel %vm322, %v2681, 0
    %2693 = vmatpush.msra.mxu0 0.0
    %2694 = vmatpush.msra.mxu0 0.0
    %2695 = vmatpush.msra.mxu0 0.0
    %2696 = vmatpush.msra.mxu0 0.0
    %2697 = vmatpush.msra.mxu0 0.0
    %2698 = vmatpush.msra.mxu0 0.0
    %2699 = vmatpush.msra.mxu0 0.0
    %2700 = vmatpush.msra.mxu0 0.0
    %2701 = vmatpush.msra.mxu0 0.0
    %2702 = vmatpush.msra.mxu0 0.0
    %2703 = vmatpush.msra.mxu0 0.0
    %2704 = vmatpush.msra.mxu0 0.0
    %2705 = vmatpush.msra.mxu0 %v2685
    %2706 = vmatpush.msra.mxu0 %v2684
    %2707 = vmatpush.msra.mxu0 %v2683
    %2708 = vmatpush.msra.mxu0 %v2682
    %2709 = vmatmul.f32.gmra.mxu0 %v2691
    %v2710 = vpop.f32.mrf.mxu0
    %v2711 = vadd.f32 %v2688, %v2710
    %2712 = vdwg.mxu0
    %vm2713 = vcmask 58368
    %2714 = vst.msk [vmem:[#allocation22] sm:$0x3] %vm2713, %v2711
    // Predicated region
    $region130: #{emotion_predictor_forward.1} parent=1 // pred_check
      _
    $region131: #{emotion_predictor_forward.1} parent=1 // pred_check_branch
      %2716 = sbr.rel (0) target = $region133
    $region132: #{emotion_predictor_forward.1} parent=1 // pred_region
      %2718 = vsyncadd [#allocation4], 0
      %s2720 = sshll.u32 [#allocation22], 4
      %s2721 = int_to_ptr.vmem [resolvable:$true] %s2720
      %s2722 = sshll.u32 %s20, 4
      %s2723 = int_to_ptr.hbm [resolvable:$true] %s2722
      %2725 = dma.vmem_to_hbm [thread:$0]  %s2721, 32, %s2723, [#allocation4]
    $region133: #{emotion_predictor_forward.1} parent=1 // pred_fallthru
      _
    // Predicated region
    $region134: #{emotion_predictor_forward.1} parent=1 // pred_check
      _
    $region135: #{emotion_predictor_forward.1} parent=1 // pred_check_branch
      %2727 = sbr.rel (0) target = $region137
    $region136: #{emotion_predictor_forward.1} parent=1 // pred_region
      %2729 = dma.done [#allocation4], 32
    $region137: #{emotion_predictor_forward.1} parent=1 // pred_fallthru
      _
    %2730 = vsyncpa [#allocation3], 1
    %2731 = vsyncpa [#allocation6], 1
    %2732 = vsyncpa [#allocation9], 1
    %2733 = vsyncpa [#allocation12], 1
    %2734 = vsyncpa [#allocation15], 1
    %2735 = vsyncpa [#allocation18], 1
    %2736 = vsyncpa [#allocation21], 1
    %2737 = vsyncpa [#allocation4], 1

</llo_original>
